<compile_context>
chip_gen: v5e
topology: v5e:2x2
jax: 0.10.0
libtpu: 0.0.40
codegen_flags: <defaults>
</compile_context>

<pallas_src>
import jax
import jax.numpy as jnp
from jax.experimental import pallas as pl
from jax.experimental.pallas import tpu as pltpu

H = 64          # true GRU hidden size
HP = 128        # lane-padded hidden (one full 128-lane group per gate)
INPUT = 128
OUTPUT = 128


def gru_encoder_kernel(x_ref,                                   # (T*BP, INPUT)
                       wih0_ref, whh0_ref, b0_ref, bn0_ref,     # layer 0 (padded)
                       wih1_ref, whh1_ref, b1_ref, bn1_ref,     # layer 1 (padded)
                       wfc_ref, bfc_ref,                        # final FC
                       out_ref,                                 # (BP, OUTPUT)
                       gi_ref,                                  # (T*BP, 3*HP) scratch
                       h1_ref):                                 # (T*BP, HP)   scratch
    TB = x_ref.shape[0]
    BP = out_ref.shape[0]
    T = TB // BP

    def gru_step(gi, h, whh_ref, bn_ref):
        # Only the recurrent matmul + gate math stays on the serial path.
        gh = jnp.dot(h, whh_ref[...], preferred_element_type=jnp.float32)   # (BP, 3HP)
        rz = jax.nn.sigmoid(gi[:, :2 * HP] + gh[:, :2 * HP])                # fused r||z
        r = rz[:, :HP]
        z = rz[:, HP:]
        n = jnp.tanh(gi[:, 2 * HP:] + r * (gh[:, 2 * HP:] + bn_ref[...]))
        return (1.0 - z) * n + z * h

    h_init = jnp.zeros((BP, HP), jnp.float32)

    # ---- Layer 0: batched input projection for ALL time steps (one matmul) ----
    gi_ref[...] = (jnp.dot(x_ref[...], wih0_ref[...],
                           preferred_element_type=jnp.float32) + b0_ref[...])

    def step0(t, h):
        row = pl.multiple_of(t * BP, BP)
        h = gru_step(gi_ref[pl.ds(row, BP), :], h, whh0_ref, bn0_ref)
        h1_ref[pl.ds(row, BP), :] = h         # store layer-0 output sequence
        return h

    jax.lax.fori_loop(0, T, step0, h_init, unroll=True)

    # ---- Layer 1: batched input projection over the stored h1 sequence -------
    gi_ref[...] = (jnp.dot(h1_ref[...], wih1_ref[...],
                           preferred_element_type=jnp.float32) + b1_ref[...])

    def step1(t, h):
        row = pl.multiple_of(t * BP, BP)
        return gru_step(gi_ref[pl.ds(row, BP), :], h, whh1_ref, bn1_ref)

    h_last = jax.lax.fori_loop(0, T, step1, h_init, unroll=True)

    # ---- Final FC + ReLU on the last hidden state -----------------------------
    fc = jnp.dot(h_last, wfc_ref[...], preferred_element_type=jnp.float32) + bfc_ref[...]
    out_ref[...] = jnp.maximum(fc, 0.0)


# ------------------------- wrapper: padding & packing -------------------------
def _pad_gate_cols(w_t, pad_rows_to=None):
    """(in_dim, 3H) -> (rows, 3*HP): each H-wide gate block lane-padded to HP."""
    in_dim = w_t.shape[0]
    rows = in_dim if pad_rows_to is None else pad_rows_to
    out = jnp.zeros((rows, 3 * HP), jnp.float32)
    for g in range(3):
        out = out.at[:in_dim, g * HP:g * HP + H].set(w_t[:, g * H:(g + 1) * H])
    return out


def _pad_gate_vec(b):
    """(3H,) -> (1, 3*HP) with each gate block zero-padded to HP lanes."""
    out = jnp.zeros((3 * HP,), jnp.float32)
    for g in range(3):
        out = out.at[g * HP:g * HP + H].set(b[g * H:(g + 1) * H])
    return out.reshape(1, 3 * HP)


def gru_encoder(feature, params):
    """feature: (B, INPUT, T) float32 — same input layout as the PyTorch module."""
    B, D, T = feature.shape
    assert D == INPUT
    BP = ((B + 7) // 8) * 8                       # pad batch to full sublanes

    x = jnp.transpose(feature, (2, 0, 1))         # (T, B, INPUT)
    if BP != B:
        x = jnp.pad(x, ((0, 0), (0, BP - B), (0, 0)))
    x = x.reshape(T * BP, INPUT)                  # batched-projection layout

    # Layer 0: Wih (3H,128) / Whh (3H,64); merge bih+bhh for r,z; keep bhh_n apart.
    wih0 = _pad_gate_cols(params["weight_ih_l0"].T)                    # (128, 3HP)
    whh0 = _pad_gate_cols(params["weight_hh_l0"].T, pad_rows_to=HP)    # (HP, 3HP)
    b0 = _pad_gate_vec(params["bias_ih_l0"]
                       + jnp.concatenate([params["bias_hh_l0"][:2 * H],
                                          jnp.zeros((H,), jnp.float32)]))
    bn0 = jnp.zeros((1, HP), jnp.float32).at[0, :H].set(params["bias_hh_l0"][2 * H:])

    # Layer 1: input is the (padded) 128-wide h1 state.
    wih1 = _pad_gate_cols(params["weight_ih_l1"].T, pad_rows_to=HP)
    whh1 = _pad_gate_cols(params["weight_hh_l1"].T, pad_rows_to=HP)
    b1 = _pad_gate_vec(params["bias_ih_l1"]
                       + jnp.concatenate([params["bias_hh_l1"][:2 * H],
                                          jnp.zeros((H,), jnp.float32)]))
    bn1 = jnp.zeros((1, HP), jnp.float32).at[0, :H].set(params["bias_hh_l1"][2 * H:])

    # Final FC (64 -> 128), rows padded to HP (padded h lanes are exactly zero).
    wfc = jnp.zeros((HP, OUTPUT), jnp.float32).at[:H, :].set(params["fc_weight"].T)
    bfc = params["fc_bias"].reshape(1, OUTPUT)

    vmem = pl.BlockSpec(memory_space=pltpu.MemorySpace.VMEM)
    out = pl.pallas_call(
        gru_encoder_kernel,
        out_shape=jax.ShapeDtypeStruct((BP, OUTPUT), jnp.float32),
        in_specs=[vmem] * 11,
        out_specs=vmem,
        scratch_shapes=[
            pltpu.VMEM((T * BP, 3 * HP), jnp.float32),   # batched gate projections
            pltpu.VMEM((T * BP, HP), jnp.float32),       # layer-0 hidden sequence
        ],
        # TODO(synk): for production (large T / B) add a time-chunked grid and, on
        # v7x, a parallel batch axis over the two TensorCores.
    )(x, wih0, whh0, b0, bn0, wih1, whh1, b1, bn1, wfc, bfc)
    return out[:B]


# ---------------- pure-JAX reference (PyTorch-equivalent math) ----------------
def _gru_layer_ref(x, wih, whh, bih, bhh):
    B = x.shape[0]

    def step(h, xt):
        gi = xt @ wih.T + bih
        gh = h @ whh.T + bhh
        r = jax.nn.sigmoid(gi[:, :H] + gh[:, :H])
        z = jax.nn.sigmoid(gi[:, H:2 * H] + gh[:, H:2 * H])
        n = jnp.tanh(gi[:, 2 * H:] + r * gh[:, 2 * H:])
        h = (1.0 - z) * n + z * h
        return h, h

    h0 = jnp.zeros((B, H), jnp.float32)
    _, ys = jax.lax.scan(step, h0, jnp.transpose(x, (1, 0, 2)))
    return jnp.transpose(ys, (1, 0, 2))


def gru_encoder_ref(feature, params):
    x = jnp.transpose(feature, (0, 2, 1))
    y0 = _gru_layer_ref(x, params["weight_ih_l0"], params["weight_hh_l0"],
                        params["bias_ih_l0"], params["bias_hh_l0"])
    y1 = _gru_layer_ref(y0, params["weight_ih_l1"], params["weight_hh_l1"],
                        params["bias_ih_l1"], params["bias_hh_l1"])
    last = y1[:, -1, :]
    return jnp.maximum(last @ params["fc_weight"].T + params["fc_bias"], 0.0)


def init_params(key):
    k = 1.0 / jnp.sqrt(H)
    shapes = {
        "weight_ih_l0": (3 * H, INPUT),
        "weight_hh_l0": (3 * H, H),
        "bias_ih_l0": (3 * H,),
        "bias_hh_l0": (3 * H,),
        "weight_ih_l1": (3 * H, H),
        "weight_hh_l1": (3 * H, H),
        "bias_ih_l1": (3 * H,),
        "bias_hh_l1": (3 * H,),
        "fc_weight": (OUTPUT, H),
        "fc_bias": (OUTPUT,),
    }
    keys = jax.random.split(key, len(shapes))
    return {name: jax.random.uniform(kk, shp, jnp.float32, -k, k)
            for kk, (name, shp) in zip(keys, shapes.items())}


if __name__ == "__main__":
    key = jax.random.PRNGKey(0)
    kx, kp = jax.random.split(key)
    B, T = 4, 8
    feature = jax.random.normal(kx, (B, INPUT, T), jnp.float32)
    params = init_params(kp)

    out = gru_encoder(feature, params)
    jax.block_until_ready(out)

    ref = gru_encoder_ref(feature, params)
    assert out.shape == (B, OUTPUT)
    assert jnp.allclose(out, ref, atol=1e-4, rtol=1e-4), float(jnp.max(jnp.abs(out - ref)))
    print("KERNEL_OK")
</pallas_src>

<mosaic_0001>
module attributes {stable_mosaic.version = 11 : i64} {
  func.func @gru_encoder_kernel(%arg0: memref<64x128xf32, #tpu.memory_space<vmem>>, %arg1: memref<128x384xf32, #tpu.memory_space<vmem>>, %arg2: memref<128x384xf32, #tpu.memory_space<vmem>>, %arg3: memref<1x384xf32, #tpu.memory_space<vmem>>, %arg4: memref<1x128xf32, #tpu.memory_space<vmem>>, %arg5: memref<128x384xf32, #tpu.memory_space<vmem>>, %arg6: memref<128x384xf32, #tpu.memory_space<vmem>>, %arg7: memref<1x384xf32, #tpu.memory_space<vmem>>, %arg8: memref<1x128xf32, #tpu.memory_space<vmem>>, %arg9: memref<128x128xf32, #tpu.memory_space<vmem>>, %arg10: memref<1x128xf32, #tpu.memory_space<vmem>>, %arg11: memref<8x128xf32, #tpu.memory_space<vmem>>, %arg12: memref<64x384xf32, #tpu.memory_space<vmem>>, %arg13: memref<64x128xf32, #tpu.memory_space<vmem>>) attributes {dimension_semantics = [], scalar_prefetch = 0 : i64, scratch_operands = 2 : i64, tpu.core_type = #tpu.core_type<tc>} {
    %cst = arith.constant 0.000000e+00 : f32
    %0 = vector.broadcast %cst : f32 to vector<8x128xf32>
    %c0 = arith.constant 0 : index
    %c0_0 = arith.constant 0 : index
    %1 = vector.load %arg0[%c0, %c0_0] : memref<64x128xf32, #tpu.memory_space<vmem>>, vector<64x128xf32>
    %c0_1 = arith.constant 0 : index
    %c0_2 = arith.constant 0 : index
    %2 = vector.load %arg1[%c0_1, %c0_2] : memref<128x384xf32, #tpu.memory_space<vmem>>, vector<128x384xf32>
    %cst_3 = arith.constant dense<0.000000e+00> : vector<64x384xf32>
    %3 = tpu.matmul %1, %2, %cst_3 {dimension_numbers = #tpu.dot_dimension_numbers<[1], [0], [0], [1], [0, 0, 1, 1], [], []>} : vector<64x128xf32>, vector<128x384xf32>, vector<64x384xf32> -> vector<64x384xf32>
    %c0_4 = arith.constant 0 : index
    %c0_5 = arith.constant 0 : index
    %4 = vector.load %arg3[%c0_4, %c0_5] : memref<1x384xf32, #tpu.memory_space<vmem>>, vector<1x384xf32>
    %5 = vector.broadcast %4 : vector<1x384xf32> to vector<64x384xf32>
    %6 = arith.addf %3, %5 : vector<64x384xf32>
    %c0_6 = arith.constant 0 : index
    %c0_7 = arith.constant 0 : index
    %7 = vector.load %arg12[%c0_6, %c0_7] : memref<64x384xf32, #tpu.memory_space<vmem>>, vector<64x384xf32>
    tpu.vector_store %arg12[%c0_6, %c0_7], %6 {strides = array<i32>} : memref<64x384xf32, #tpu.memory_space<vmem>>, vector<64x384xf32>,
    %c0_i32 = arith.constant 0 : i32
    %c8_i32 = arith.constant 8 : i32
    %8 = arith.muli %c0_i32, %c8_i32 : i32
    %9 = tpu.assume_multiple %8, 8 : i32
    %10 = arith.index_cast %9 : i32 to index
    %c0_8 = arith.constant 0 : index
    %11 = vector.load %arg12[%10, %c0_8] : memref<64x384xf32, #tpu.memory_space<vmem>>, vector<8x384xf32>
    %c0_9 = arith.constant 0 : index
    %c0_10 = arith.constant 0 : index
    %12 = vector.load %arg2[%c0_9, %c0_10] : memref<128x384xf32, #tpu.memory_space<vmem>>, vector<128x384xf32>
    %cst_11 = arith.constant dense<0.000000e+00> : vector<8x384xf32>
    %13 = tpu.matmul %0, %12, %cst_11 {dimension_numbers = #tpu.dot_dimension_numbers<[1], [0], [0], [1], [0, 0, 1, 1], [], []>} : vector<8x128xf32>, vector<128x384xf32>, vector<8x384xf32> -> vector<8x384xf32>
    %14 = vector.extract_strided_slice %11 {offsets = [0, 0], sizes = [8, 256], strides = [1, 1]} : vector<8x384xf32> to vector<8x256xf32>
    %15 = vector.extract_strided_slice %13 {offsets = [0, 0], sizes = [8, 256], strides = [1, 1]} : vector<8x384xf32> to vector<8x256xf32>
    %16 = arith.addf %14, %15 : vector<8x256xf32>
    %17 = arith.negf %16 : vector<8x256xf32>
    %18 = math.exp %17 : vector<8x256xf32>
    %cst_12 = arith.constant 1.000000e+00 : f32
    %19 = vector.broadcast %cst_12 : f32 to vector<8x256xf32>
    %20 = arith.addf %19, %18 : vector<8x256xf32>
    %21 = arith.divf %19, %20 : vector<8x256xf32>
    %22 = vector.extract_strided_slice %21 {offsets = [0, 0], sizes = [8, 128], strides = [1, 1]} : vector<8x256xf32> to vector<8x128xf32>
    %23 = vector.extract_strided_slice %21 {offsets = [0, 128], sizes = [8, 128], strides = [1, 1]} : vector<8x256xf32> to vector<8x128xf32>
    %24 = vector.extract_strided_slice %11 {offsets = [0, 256], sizes = [8, 128], strides = [1, 1]} : vector<8x384xf32> to vector<8x128xf32>
    %25 = vector.extract_strided_slice %13 {offsets = [0, 256], sizes = [8, 128], strides = [1, 1]} : vector<8x384xf32> to vector<8x128xf32>
    %c0_13 = arith.constant 0 : index
    %c0_14 = arith.constant 0 : index
    %26 = vector.load %arg4[%c0_13, %c0_14] : memref<1x128xf32, #tpu.memory_space<vmem>>, vector<1x128xf32>
    %27 = vector.broadcast %26 : vector<1x128xf32> to vector<8x128xf32>
    %28 = arith.addf %25, %27 : vector<8x128xf32>
    %29 = arith.mulf %22, %28 : vector<8x128xf32>
    %30 = arith.addf %24, %29 : vector<8x128xf32>
    %31 = math.tanh %30 : vector<8x128xf32>
    %cst_15 = arith.constant 1.000000e+00 : f32
    %32 = vector.broadcast %cst_15 : f32 to vector<8x128xf32>
    %33 = arith.subf %32, %23 : vector<8x128xf32>
    %34 = arith.mulf %33, %31 : vector<8x128xf32>
    %35 = arith.mulf %23, %0 : vector<8x128xf32>
    %36 = arith.addf %34, %35 : vector<8x128xf32>
    %37 = arith.index_cast %9 : i32 to index
    %c0_16 = arith.constant 0 : index
    %38 = vector.load %arg13[%37, %c0_16] : memref<64x128xf32, #tpu.memory_space<vmem>>, vector<8x128xf32>
    tpu.vector_store %arg13[%37, %c0_16], %36 {strides = array<i32>} : memref<64x128xf32, #tpu.memory_space<vmem>>, vector<8x128xf32>,
    %c1_i32 = arith.constant 1 : i32
    %c8_i32_17 = arith.constant 8 : i32
    %39 = arith.muli %c1_i32, %c8_i32_17 : i32
    %40 = tpu.assume_multiple %39, 8 : i32
    %41 = arith.index_cast %40 : i32 to index
    %c0_18 = arith.constant 0 : index
    %42 = vector.load %arg12[%41, %c0_18] : memref<64x384xf32, #tpu.memory_space<vmem>>, vector<8x384xf32>
    %c0_19 = arith.constant 0 : index
    %c0_20 = arith.constant 0 : index
    %43 = vector.load %arg2[%c0_19, %c0_20] : memref<128x384xf32, #tpu.memory_space<vmem>>, vector<128x384xf32>
    %cst_21 = arith.constant dense<0.000000e+00> : vector<8x384xf32>
    %44 = tpu.matmul %36, %43, %cst_21 {dimension_numbers = #tpu.dot_dimension_numbers<[1], [0], [0], [1], [0, 0, 1, 1], [], []>} : vector<8x128xf32>, vector<128x384xf32>, vector<8x384xf32> -> vector<8x384xf32>
    %45 = vector.extract_strided_slice %42 {offsets = [0, 0], sizes = [8, 256], strides = [1, 1]} : vector<8x384xf32> to vector<8x256xf32>
    %46 = vector.extract_strided_slice %44 {offsets = [0, 0], sizes = [8, 256], strides = [1, 1]} : vector<8x384xf32> to vector<8x256xf32>
    %47 = arith.addf %45, %46 : vector<8x256xf32>
    %48 = arith.negf %47 : vector<8x256xf32>
    %49 = math.exp %48 : vector<8x256xf32>
    %cst_22 = arith.constant 1.000000e+00 : f32
    %50 = vector.broadcast %cst_22 : f32 to vector<8x256xf32>
    %51 = arith.addf %50, %49 : vector<8x256xf32>
    %52 = arith.divf %50, %51 : vector<8x256xf32>
    %53 = vector.extract_strided_slice %52 {offsets = [0, 0], sizes = [8, 128], strides = [1, 1]} : vector<8x256xf32> to vector<8x128xf32>
    %54 = vector.extract_strided_slice %52 {offsets = [0, 128], sizes = [8, 128], strides = [1, 1]} : vector<8x256xf32> to vector<8x128xf32>
    %55 = vector.extract_strided_slice %42 {offsets = [0, 256], sizes = [8, 128], strides = [1, 1]} : vector<8x384xf32> to vector<8x128xf32>
    %56 = vector.extract_strided_slice %44 {offsets = [0, 256], sizes = [8, 128], strides = [1, 1]} : vector<8x384xf32> to vector<8x128xf32>
    %c0_23 = arith.constant 0 : index
    %c0_24 = arith.constant 0 : index
    %57 = vector.load %arg4[%c0_23, %c0_24] : memref<1x128xf32, #tpu.memory_space<vmem>>, vector<1x128xf32>
    %58 = vector.broadcast %57 : vector<1x128xf32> to vector<8x128xf32>
    %59 = arith.addf %56, %58 : vector<8x128xf32>
    %60 = arith.mulf %53, %59 : vector<8x128xf32>
    %61 = arith.addf %55, %60 : vector<8x128xf32>
    %62 = math.tanh %61 : vector<8x128xf32>
    %cst_25 = arith.constant 1.000000e+00 : f32
    %63 = vector.broadcast %cst_25 : f32 to vector<8x128xf32>
    %64 = arith.subf %63, %54 : vector<8x128xf32>
    %65 = arith.mulf %64, %62 : vector<8x128xf32>
    %66 = arith.mulf %54, %36 : vector<8x128xf32>
    %67 = arith.addf %65, %66 : vector<8x128xf32>
    %68 = arith.index_cast %40 : i32 to index
    %c0_26 = arith.constant 0 : index
    %69 = vector.load %arg13[%68, %c0_26] : memref<64x128xf32, #tpu.memory_space<vmem>>, vector<8x128xf32>
    tpu.vector_store %arg13[%68, %c0_26], %67 {strides = array<i32>} : memref<64x128xf32, #tpu.memory_space<vmem>>, vector<8x128xf32>,
    %c2_i32 = arith.constant 2 : i32
    %c8_i32_27 = arith.constant 8 : i32
    %70 = arith.muli %c2_i32, %c8_i32_27 : i32
    %71 = tpu.assume_multiple %70, 8 : i32
    %72 = arith.index_cast %71 : i32 to index
    %c0_28 = arith.constant 0 : index
    %73 = vector.load %arg12[%72, %c0_28] : memref<64x384xf32, #tpu.memory_space<vmem>>, vector<8x384xf32>
    %c0_29 = arith.constant 0 : index
    %c0_30 = arith.constant 0 : index
    %74 = vector.load %arg2[%c0_29, %c0_30] : memref<128x384xf32, #tpu.memory_space<vmem>>, vector<128x384xf32>
    %cst_31 = arith.constant dense<0.000000e+00> : vector<8x384xf32>
    %75 = tpu.matmul %67, %74, %cst_31 {dimension_numbers = #tpu.dot_dimension_numbers<[1], [0], [0], [1], [0, 0, 1, 1], [], []>} : vector<8x128xf32>, vector<128x384xf32>, vector<8x384xf32> -> vector<8x384xf32>
    %76 = vector.extract_strided_slice %73 {offsets = [0, 0], sizes = [8, 256], strides = [1, 1]} : vector<8x384xf32> to vector<8x256xf32>
    %77 = vector.extract_strided_slice %75 {offsets = [0, 0], sizes = [8, 256], strides = [1, 1]} : vector<8x384xf32> to vector<8x256xf32>
    %78 = arith.addf %76, %77 : vector<8x256xf32>
    %79 = arith.negf %78 : vector<8x256xf32>
    %80 = math.exp %79 : vector<8x256xf32>
    %cst_32 = arith.constant 1.000000e+00 : f32
    %81 = vector.broadcast %cst_32 : f32 to vector<8x256xf32>
    %82 = arith.addf %81, %80 : vector<8x256xf32>
    %83 = arith.divf %81, %82 : vector<8x256xf32>
    %84 = vector.extract_strided_slice %83 {offsets = [0, 0], sizes = [8, 128], strides = [1, 1]} : vector<8x256xf32> to vector<8x128xf32>
    %85 = vector.extract_strided_slice %83 {offsets = [0, 128], sizes = [8, 128], strides = [1, 1]} : vector<8x256xf32> to vector<8x128xf32>
    %86 = vector.extract_strided_slice %73 {offsets = [0, 256], sizes = [8, 128], strides = [1, 1]} : vector<8x384xf32> to vector<8x128xf32>
    %87 = vector.extract_strided_slice %75 {offsets = [0, 256], sizes = [8, 128], strides = [1, 1]} : vector<8x384xf32> to vector<8x128xf32>
    %c0_33 = arith.constant 0 : index
    %c0_34 = arith.constant 0 : index
    %88 = vector.load %arg4[%c0_33, %c0_34] : memref<1x128xf32, #tpu.memory_space<vmem>>, vector<1x128xf32>
    %89 = vector.broadcast %88 : vector<1x128xf32> to vector<8x128xf32>
    %90 = arith.addf %87, %89 : vector<8x128xf32>
    %91 = arith.mulf %84, %90 : vector<8x128xf32>
    %92 = arith.addf %86, %91 : vector<8x128xf32>
    %93 = math.tanh %92 : vector<8x128xf32>
    %cst_35 = arith.constant 1.000000e+00 : f32
    %94 = vector.broadcast %cst_35 : f32 to vector<8x128xf32>
    %95 = arith.subf %94, %85 : vector<8x128xf32>
    %96 = arith.mulf %95, %93 : vector<8x128xf32>
    %97 = arith.mulf %85, %67 : vector<8x128xf32>
    %98 = arith.addf %96, %97 : vector<8x128xf32>
    %99 = arith.index_cast %71 : i32 to index
    %c0_36 = arith.constant 0 : index
    %100 = vector.load %arg13[%99, %c0_36] : memref<64x128xf32, #tpu.memory_space<vmem>>, vector<8x128xf32>
    tpu.vector_store %arg13[%99, %c0_36], %98 {strides = array<i32>} : memref<64x128xf32, #tpu.memory_space<vmem>>, vector<8x128xf32>,
    %c3_i32 = arith.constant 3 : i32
    %c8_i32_37 = arith.constant 8 : i32
    %101 = arith.muli %c3_i32, %c8_i32_37 : i32
    %102 = tpu.assume_multiple %101, 8 : i32
    %103 = arith.index_cast %102 : i32 to index
    %c0_38 = arith.constant 0 : index
    %104 = vector.load %arg12[%103, %c0_38] : memref<64x384xf32, #tpu.memory_space<vmem>>, vector<8x384xf32>
    %c0_39 = arith.constant 0 : index
    %c0_40 = arith.constant 0 : index
    %105 = vector.load %arg2[%c0_39, %c0_40] : memref<128x384xf32, #tpu.memory_space<vmem>>, vector<128x384xf32>
    %cst_41 = arith.constant dense<0.000000e+00> : vector<8x384xf32>
    %106 = tpu.matmul %98, %105, %cst_41 {dimension_numbers = #tpu.dot_dimension_numbers<[1], [0], [0], [1], [0, 0, 1, 1], [], []>} : vector<8x128xf32>, vector<128x384xf32>, vector<8x384xf32> -> vector<8x384xf32>
    %107 = vector.extract_strided_slice %104 {offsets = [0, 0], sizes = [8, 256], strides = [1, 1]} : vector<8x384xf32> to vector<8x256xf32>
    %108 = vector.extract_strided_slice %106 {offsets = [0, 0], sizes = [8, 256], strides = [1, 1]} : vector<8x384xf32> to vector<8x256xf32>
    %109 = arith.addf %107, %108 : vector<8x256xf32>
    %110 = arith.negf %109 : vector<8x256xf32>
    %111 = math.exp %110 : vector<8x256xf32>
    %cst_42 = arith.constant 1.000000e+00 : f32
    %112 = vector.broadcast %cst_42 : f32 to vector<8x256xf32>
    %113 = arith.addf %112, %111 : vector<8x256xf32>
    %114 = arith.divf %112, %113 : vector<8x256xf32>
    %115 = vector.extract_strided_slice %114 {offsets = [0, 0], sizes = [8, 128], strides = [1, 1]} : vector<8x256xf32> to vector<8x128xf32>
    %116 = vector.extract_strided_slice %114 {offsets = [0, 128], sizes = [8, 128], strides = [1, 1]} : vector<8x256xf32> to vector<8x128xf32>
    %117 = vector.extract_strided_slice %104 {offsets = [0, 256], sizes = [8, 128], strides = [1, 1]} : vector<8x384xf32> to vector<8x128xf32>
    %118 = vector.extract_strided_slice %106 {offsets = [0, 256], sizes = [8, 128], strides = [1, 1]} : vector<8x384xf32> to vector<8x128xf32>
    %c0_43 = arith.constant 0 : index
    %c0_44 = arith.constant 0 : index
    %119 = vector.load %arg4[%c0_43, %c0_44] : memref<1x128xf32, #tpu.memory_space<vmem>>, vector<1x128xf32>
    %120 = vector.broadcast %119 : vector<1x128xf32> to vector<8x128xf32>
    %121 = arith.addf %118, %120 : vector<8x128xf32>
    %122 = arith.mulf %115, %121 : vector<8x128xf32>
    %123 = arith.addf %117, %122 : vector<8x128xf32>
    %124 = math.tanh %123 : vector<8x128xf32>
    %cst_45 = arith.constant 1.000000e+00 : f32
    %125 = vector.broadcast %cst_45 : f32 to vector<8x128xf32>
    %126 = arith.subf %125, %116 : vector<8x128xf32>
    %127 = arith.mulf %126, %124 : vector<8x128xf32>
    %128 = arith.mulf %116, %98 : vector<8x128xf32>
    %129 = arith.addf %127, %128 : vector<8x128xf32>
    %130 = arith.index_cast %102 : i32 to index
    %c0_46 = arith.constant 0 : index
    %131 = vector.load %arg13[%130, %c0_46] : memref<64x128xf32, #tpu.memory_space<vmem>>, vector<8x128xf32>
    tpu.vector_store %arg13[%130, %c0_46], %129 {strides = array<i32>} : memref<64x128xf32, #tpu.memory_space<vmem>>, vector<8x128xf32>,
    %c4_i32 = arith.constant 4 : i32
    %c8_i32_47 = arith.constant 8 : i32
    %132 = arith.muli %c4_i32, %c8_i32_47 : i32
    %133 = tpu.assume_multiple %132, 8 : i32
    %134 = arith.index_cast %133 : i32 to index
    %c0_48 = arith.constant 0 : index
    %135 = vector.load %arg12[%134, %c0_48] : memref<64x384xf32, #tpu.memory_space<vmem>>, vector<8x384xf32>
    %c0_49 = arith.constant 0 : index
    %c0_50 = arith.constant 0 : index
    %136 = vector.load %arg2[%c0_49, %c0_50] : memref<128x384xf32, #tpu.memory_space<vmem>>, vector<128x384xf32>
    %cst_51 = arith.constant dense<0.000000e+00> : vector<8x384xf32>
    %137 = tpu.matmul %129, %136, %cst_51 {dimension_numbers = #tpu.dot_dimension_numbers<[1], [0], [0], [1], [0, 0, 1, 1], [], []>} : vector<8x128xf32>, vector<128x384xf32>, vector<8x384xf32> -> vector<8x384xf32>
    %138 = vector.extract_strided_slice %135 {offsets = [0, 0], sizes = [8, 256], strides = [1, 1]} : vector<8x384xf32> to vector<8x256xf32>
    %139 = vector.extract_strided_slice %137 {offsets = [0, 0], sizes = [8, 256], strides = [1, 1]} : vector<8x384xf32> to vector<8x256xf32>
    %140 = arith.addf %138, %139 : vector<8x256xf32>
    %141 = arith.negf %140 : vector<8x256xf32>
    %142 = math.exp %141 : vector<8x256xf32>
    %cst_52 = arith.constant 1.000000e+00 : f32
    %143 = vector.broadcast %cst_52 : f32 to vector<8x256xf32>
    %144 = arith.addf %143, %142 : vector<8x256xf32>
    %145 = arith.divf %143, %144 : vector<8x256xf32>
    %146 = vector.extract_strided_slice %145 {offsets = [0, 0], sizes = [8, 128], strides = [1, 1]} : vector<8x256xf32> to vector<8x128xf32>
    %147 = vector.extract_strided_slice %145 {offsets = [0, 128], sizes = [8, 128], strides = [1, 1]} : vector<8x256xf32> to vector<8x128xf32>
    %148 = vector.extract_strided_slice %135 {offsets = [0, 256], sizes = [8, 128], strides = [1, 1]} : vector<8x384xf32> to vector<8x128xf32>
    %149 = vector.extract_strided_slice %137 {offsets = [0, 256], sizes = [8, 128], strides = [1, 1]} : vector<8x384xf32> to vector<8x128xf32>
    %c0_53 = arith.constant 0 : index
    %c0_54 = arith.constant 0 : index
    %150 = vector.load %arg4[%c0_53, %c0_54] : memref<1x128xf32, #tpu.memory_space<vmem>>, vector<1x128xf32>
    %151 = vector.broadcast %150 : vector<1x128xf32> to vector<8x128xf32>
    %152 = arith.addf %149, %151 : vector<8x128xf32>
    %153 = arith.mulf %146, %152 : vector<8x128xf32>
    %154 = arith.addf %148, %153 : vector<8x128xf32>
    %155 = math.tanh %154 : vector<8x128xf32>
    %cst_55 = arith.constant 1.000000e+00 : f32
    %156 = vector.broadcast %cst_55 : f32 to vector<8x128xf32>
    %157 = arith.subf %156, %147 : vector<8x128xf32>
    %158 = arith.mulf %157, %155 : vector<8x128xf32>
    %159 = arith.mulf %147, %129 : vector<8x128xf32>
    %160 = arith.addf %158, %159 : vector<8x128xf32>
    %161 = arith.index_cast %133 : i32 to index
    %c0_56 = arith.constant 0 : index
    %162 = vector.load %arg13[%161, %c0_56] : memref<64x128xf32, #tpu.memory_space<vmem>>, vector<8x128xf32>
    tpu.vector_store %arg13[%161, %c0_56], %160 {strides = array<i32>} : memref<64x128xf32, #tpu.memory_space<vmem>>, vector<8x128xf32>,
    %c5_i32 = arith.constant 5 : i32
    %c8_i32_57 = arith.constant 8 : i32
    %163 = arith.muli %c5_i32, %c8_i32_57 : i32
    %164 = tpu.assume_multiple %163, 8 : i32
    %165 = arith.index_cast %164 : i32 to index
    %c0_58 = arith.constant 0 : index
    %166 = vector.load %arg12[%165, %c0_58] : memref<64x384xf32, #tpu.memory_space<vmem>>, vector<8x384xf32>
    %c0_59 = arith.constant 0 : index
    %c0_60 = arith.constant 0 : index
    %167 = vector.load %arg2[%c0_59, %c0_60] : memref<128x384xf32, #tpu.memory_space<vmem>>, vector<128x384xf32>
    %cst_61 = arith.constant dense<0.000000e+00> : vector<8x384xf32>
    %168 = tpu.matmul %160, %167, %cst_61 {dimension_numbers = #tpu.dot_dimension_numbers<[1], [0], [0], [1], [0, 0, 1, 1], [], []>} : vector<8x128xf32>, vector<128x384xf32>, vector<8x384xf32> -> vector<8x384xf32>
    %169 = vector.extract_strided_slice %166 {offsets = [0, 0], sizes = [8, 256], strides = [1, 1]} : vector<8x384xf32> to vector<8x256xf32>
    %170 = vector.extract_strided_slice %168 {offsets = [0, 0], sizes = [8, 256], strides = [1, 1]} : vector<8x384xf32> to vector<8x256xf32>
    %171 = arith.addf %169, %170 : vector<8x256xf32>
    %172 = arith.negf %171 : vector<8x256xf32>
    %173 = math.exp %172 : vector<8x256xf32>
    %cst_62 = arith.constant 1.000000e+00 : f32
    %174 = vector.broadcast %cst_62 : f32 to vector<8x256xf32>
    %175 = arith.addf %174, %173 : vector<8x256xf32>
    %176 = arith.divf %174, %175 : vector<8x256xf32>
    %177 = vector.extract_strided_slice %176 {offsets = [0, 0], sizes = [8, 128], strides = [1, 1]} : vector<8x256xf32> to vector<8x128xf32>
    %178 = vector.extract_strided_slice %176 {offsets = [0, 128], sizes = [8, 128], strides = [1, 1]} : vector<8x256xf32> to vector<8x128xf32>
    %179 = vector.extract_strided_slice %166 {offsets = [0, 256], sizes = [8, 128], strides = [1, 1]} : vector<8x384xf32> to vector<8x128xf32>
    %180 = vector.extract_strided_slice %168 {offsets = [0, 256], sizes = [8, 128], strides = [1, 1]} : vector<8x384xf32> to vector<8x128xf32>
    %c0_63 = arith.constant 0 : index
    %c0_64 = arith.constant 0 : index
    %181 = vector.load %arg4[%c0_63, %c0_64] : memref<1x128xf32, #tpu.memory_space<vmem>>, vector<1x128xf32>
    %182 = vector.broadcast %181 : vector<1x128xf32> to vector<8x128xf32>
    %183 = arith.addf %180, %182 : vector<8x128xf32>
    %184 = arith.mulf %177, %183 : vector<8x128xf32>
    %185 = arith.addf %179, %184 : vector<8x128xf32>
    %186 = math.tanh %185 : vector<8x128xf32>
    %cst_65 = arith.constant 1.000000e+00 : f32
    %187 = vector.broadcast %cst_65 : f32 to vector<8x128xf32>
    %188 = arith.subf %187, %178 : vector<8x128xf32>
    %189 = arith.mulf %188, %186 : vector<8x128xf32>
    %190 = arith.mulf %178, %160 : vector<8x128xf32>
    %191 = arith.addf %189, %190 : vector<8x128xf32>
    %192 = arith.index_cast %164 : i32 to index
    %c0_66 = arith.constant 0 : index
    %193 = vector.load %arg13[%192, %c0_66] : memref<64x128xf32, #tpu.memory_space<vmem>>, vector<8x128xf32>
    tpu.vector_store %arg13[%192, %c0_66], %191 {strides = array<i32>} : memref<64x128xf32, #tpu.memory_space<vmem>>, vector<8x128xf32>,
    %c6_i32 = arith.constant 6 : i32
    %c8_i32_67 = arith.constant 8 : i32
    %194 = arith.muli %c6_i32, %c8_i32_67 : i32
    %195 = tpu.assume_multiple %194, 8 : i32
    %196 = arith.index_cast %195 : i32 to index
    %c0_68 = arith.constant 0 : index
    %197 = vector.load %arg12[%196, %c0_68] : memref<64x384xf32, #tpu.memory_space<vmem>>, vector<8x384xf32>
    %c0_69 = arith.constant 0 : index
    %c0_70 = arith.constant 0 : index
    %198 = vector.load %arg2[%c0_69, %c0_70] : memref<128x384xf32, #tpu.memory_space<vmem>>, vector<128x384xf32>
    %cst_71 = arith.constant dense<0.000000e+00> : vector<8x384xf32>
    %199 = tpu.matmul %191, %198, %cst_71 {dimension_numbers = #tpu.dot_dimension_numbers<[1], [0], [0], [1], [0, 0, 1, 1], [], []>} : vector<8x128xf32>, vector<128x384xf32>, vector<8x384xf32> -> vector<8x384xf32>
    %200 = vector.extract_strided_slice %197 {offsets = [0, 0], sizes = [8, 256], strides = [1, 1]} : vector<8x384xf32> to vector<8x256xf32>
    %201 = vector.extract_strided_slice %199 {offsets = [0, 0], sizes = [8, 256], strides = [1, 1]} : vector<8x384xf32> to vector<8x256xf32>
    %202 = arith.addf %200, %201 : vector<8x256xf32>
    %203 = arith.negf %202 : vector<8x256xf32>
    %204 = math.exp %203 : vector<8x256xf32>
    %cst_72 = arith.constant 1.000000e+00 : f32
    %205 = vector.broadcast %cst_72 : f32 to vector<8x256xf32>
    %206 = arith.addf %205, %204 : vector<8x256xf32>
    %207 = arith.divf %205, %206 : vector<8x256xf32>
    %208 = vector.extract_strided_slice %207 {offsets = [0, 0], sizes = [8, 128], strides = [1, 1]} : vector<8x256xf32> to vector<8x128xf32>
    %209 = vector.extract_strided_slice %207 {offsets = [0, 128], sizes = [8, 128], strides = [1, 1]} : vector<8x256xf32> to vector<8x128xf32>
    %210 = vector.extract_strided_slice %197 {offsets = [0, 256], sizes = [8, 128], strides = [1, 1]} : vector<8x384xf32> to vector<8x128xf32>
    %211 = vector.extract_strided_slice %199 {offsets = [0, 256], sizes = [8, 128], strides = [1, 1]} : vector<8x384xf32> to vector<8x128xf32>
    %c0_73 = arith.constant 0 : index
    %c0_74 = arith.constant 0 : index
    %212 = vector.load %arg4[%c0_73, %c0_74] : memref<1x128xf32, #tpu.memory_space<vmem>>, vector<1x128xf32>
    %213 = vector.broadcast %212 : vector<1x128xf32> to vector<8x128xf32>
    %214 = arith.addf %211, %213 : vector<8x128xf32>
    %215 = arith.mulf %208, %214 : vector<8x128xf32>
    %216 = arith.addf %210, %215 : vector<8x128xf32>
    %217 = math.tanh %216 : vector<8x128xf32>
    %cst_75 = arith.constant 1.000000e+00 : f32
    %218 = vector.broadcast %cst_75 : f32 to vector<8x128xf32>
    %219 = arith.subf %218, %209 : vector<8x128xf32>
    %220 = arith.mulf %219, %217 : vector<8x128xf32>
    %221 = arith.mulf %209, %191 : vector<8x128xf32>
    %222 = arith.addf %220, %221 : vector<8x128xf32>
    %223 = arith.index_cast %195 : i32 to index
    %c0_76 = arith.constant 0 : index
    %224 = vector.load %arg13[%223, %c0_76] : memref<64x128xf32, #tpu.memory_space<vmem>>, vector<8x128xf32>
    tpu.vector_store %arg13[%223, %c0_76], %222 {strides = array<i32>} : memref<64x128xf32, #tpu.memory_space<vmem>>, vector<8x128xf32>,
    %c7_i32 = arith.constant 7 : i32
    %c8_i32_77 = arith.constant 8 : i32
    %225 = arith.muli %c7_i32, %c8_i32_77 : i32
    %226 = tpu.assume_multiple %225, 8 : i32
    %227 = arith.index_cast %226 : i32 to index
    %c0_78 = arith.constant 0 : index
    %228 = vector.load %arg12[%227, %c0_78] : memref<64x384xf32, #tpu.memory_space<vmem>>, vector<8x384xf32>
    %c0_79 = arith.constant 0 : index
    %c0_80 = arith.constant 0 : index
    %229 = vector.load %arg2[%c0_79, %c0_80] : memref<128x384xf32, #tpu.memory_space<vmem>>, vector<128x384xf32>
    %cst_81 = arith.constant dense<0.000000e+00> : vector<8x384xf32>
    %230 = tpu.matmul %222, %229, %cst_81 {dimension_numbers = #tpu.dot_dimension_numbers<[1], [0], [0], [1], [0, 0, 1, 1], [], []>} : vector<8x128xf32>, vector<128x384xf32>, vector<8x384xf32> -> vector<8x384xf32>
    %231 = vector.extract_strided_slice %228 {offsets = [0, 0], sizes = [8, 256], strides = [1, 1]} : vector<8x384xf32> to vector<8x256xf32>
    %232 = vector.extract_strided_slice %230 {offsets = [0, 0], sizes = [8, 256], strides = [1, 1]} : vector<8x384xf32> to vector<8x256xf32>
    %233 = arith.addf %231, %232 : vector<8x256xf32>
    %234 = arith.negf %233 : vector<8x256xf32>
    %235 = math.exp %234 : vector<8x256xf32>
    %cst_82 = arith.constant 1.000000e+00 : f32
    %236 = vector.broadcast %cst_82 : f32 to vector<8x256xf32>
    %237 = arith.addf %236, %235 : vector<8x256xf32>
    %238 = arith.divf %236, %237 : vector<8x256xf32>
    %239 = vector.extract_strided_slice %238 {offsets = [0, 0], sizes = [8, 128], strides = [1, 1]} : vector<8x256xf32> to vector<8x128xf32>
    %240 = vector.extract_strided_slice %238 {offsets = [0, 128], sizes = [8, 128], strides = [1, 1]} : vector<8x256xf32> to vector<8x128xf32>
    %241 = vector.extract_strided_slice %228 {offsets = [0, 256], sizes = [8, 128], strides = [1, 1]} : vector<8x384xf32> to vector<8x128xf32>
    %242 = vector.extract_strided_slice %230 {offsets = [0, 256], sizes = [8, 128], strides = [1, 1]} : vector<8x384xf32> to vector<8x128xf32>
    %c0_83 = arith.constant 0 : index
    %c0_84 = arith.constant 0 : index
    %243 = vector.load %arg4[%c0_83, %c0_84] : memref<1x128xf32, #tpu.memory_space<vmem>>, vector<1x128xf32>
    %244 = vector.broadcast %243 : vector<1x128xf32> to vector<8x128xf32>
    %245 = arith.addf %242, %244 : vector<8x128xf32>
    %246 = arith.mulf %239, %245 : vector<8x128xf32>
    %247 = arith.addf %241, %246 : vector<8x128xf32>
    %248 = math.tanh %247 : vector<8x128xf32>
    %cst_85 = arith.constant 1.000000e+00 : f32
    %249 = vector.broadcast %cst_85 : f32 to vector<8x128xf32>
    %250 = arith.subf %249, %240 : vector<8x128xf32>
    %251 = arith.mulf %250, %248 : vector<8x128xf32>
    %252 = arith.mulf %240, %222 : vector<8x128xf32>
    %253 = arith.addf %251, %252 : vector<8x128xf32>
    %254 = arith.index_cast %226 : i32 to index
    %c0_86 = arith.constant 0 : index
    %255 = vector.load %arg13[%254, %c0_86] : memref<64x128xf32, #tpu.memory_space<vmem>>, vector<8x128xf32>
    tpu.vector_store %arg13[%254, %c0_86], %253 {strides = array<i32>} : memref<64x128xf32, #tpu.memory_space<vmem>>, vector<8x128xf32>,
    %c8_i32_87 = arith.constant 8 : i32
    %c0_88 = arith.constant 0 : index
    %c0_89 = arith.constant 0 : index
    %256 = vector.load %arg13[%c0_88, %c0_89] : memref<64x128xf32, #tpu.memory_space<vmem>>, vector<64x128xf32>
    %c0_90 = arith.constant 0 : index
    %c0_91 = arith.constant 0 : index
    %257 = vector.load %arg5[%c0_90, %c0_91] : memref<128x384xf32, #tpu.memory_space<vmem>>, vector<128x384xf32>
    %cst_92 = arith.constant dense<0.000000e+00> : vector<64x384xf32>
    %258 = tpu.matmul %256, %257, %cst_92 {dimension_numbers = #tpu.dot_dimension_numbers<[1], [0], [0], [1], [0, 0, 1, 1], [], []>} : vector<64x128xf32>, vector<128x384xf32>, vector<64x384xf32> -> vector<64x384xf32>
    %c0_93 = arith.constant 0 : index
    %c0_94 = arith.constant 0 : index
    %259 = vector.load %arg7[%c0_93, %c0_94] : memref<1x384xf32, #tpu.memory_space<vmem>>, vector<1x384xf32>
    %260 = vector.broadcast %259 : vector<1x384xf32> to vector<64x384xf32>
    %261 = arith.addf %258, %260 : vector<64x384xf32>
    %c0_95 = arith.constant 0 : index
    %c0_96 = arith.constant 0 : index
    %262 = vector.load %arg12[%c0_95, %c0_96] : memref<64x384xf32, #tpu.memory_space<vmem>>, vector<64x384xf32>
    tpu.vector_store %arg12[%c0_95, %c0_96], %261 {strides = array<i32>} : memref<64x384xf32, #tpu.memory_space<vmem>>, vector<64x384xf32>,
    %c0_i32_97 = arith.constant 0 : i32
    %c8_i32_98 = arith.constant 8 : i32
    %263 = arith.muli %c0_i32_97, %c8_i32_98 : i32
    %264 = tpu.assume_multiple %263, 8 : i32
    %265 = arith.index_cast %264 : i32 to index
    %c0_99 = arith.constant 0 : index
    %266 = vector.load %arg12[%265, %c0_99] : memref<64x384xf32, #tpu.memory_space<vmem>>, vector<8x384xf32>
    %c0_100 = arith.constant 0 : index
    %c0_101 = arith.constant 0 : index
    %267 = vector.load %arg6[%c0_100, %c0_101] : memref<128x384xf32, #tpu.memory_space<vmem>>, vector<128x384xf32>
    %cst_102 = arith.constant dense<0.000000e+00> : vector<8x384xf32>
    %268 = tpu.matmul %0, %267, %cst_102 {dimension_numbers = #tpu.dot_dimension_numbers<[1], [0], [0], [1], [0, 0, 1, 1], [], []>} : vector<8x128xf32>, vector<128x384xf32>, vector<8x384xf32> -> vector<8x384xf32>
    %269 = vector.extract_strided_slice %266 {offsets = [0, 0], sizes = [8, 256], strides = [1, 1]} : vector<8x384xf32> to vector<8x256xf32>
    %270 = vector.extract_strided_slice %268 {offsets = [0, 0], sizes = [8, 256], strides = [1, 1]} : vector<8x384xf32> to vector<8x256xf32>
    %271 = arith.addf %269, %270 : vector<8x256xf32>
    %272 = arith.negf %271 : vector<8x256xf32>
    %273 = math.exp %272 : vector<8x256xf32>
    %cst_103 = arith.constant 1.000000e+00 : f32
    %274 = vector.broadcast %cst_103 : f32 to vector<8x256xf32>
    %275 = arith.addf %274, %273 : vector<8x256xf32>
    %276 = arith.divf %274, %275 : vector<8x256xf32>
    %277 = vector.extract_strided_slice %276 {offsets = [0, 0], sizes = [8, 128], strides = [1, 1]} : vector<8x256xf32> to vector<8x128xf32>
    %278 = vector.extract_strided_slice %276 {offsets = [0, 128], sizes = [8, 128], strides = [1, 1]} : vector<8x256xf32> to vector<8x128xf32>
    %279 = vector.extract_strided_slice %266 {offsets = [0, 256], sizes = [8, 128], strides = [1, 1]} : vector<8x384xf32> to vector<8x128xf32>
    %280 = vector.extract_strided_slice %268 {offsets = [0, 256], sizes = [8, 128], strides = [1, 1]} : vector<8x384xf32> to vector<8x128xf32>
    %c0_104 = arith.constant 0 : index
    %c0_105 = arith.constant 0 : index
    %281 = vector.load %arg8[%c0_104, %c0_105] : memref<1x128xf32, #tpu.memory_space<vmem>>, vector<1x128xf32>
    %282 = vector.broadcast %281 : vector<1x128xf32> to vector<8x128xf32>
    %283 = arith.addf %280, %282 : vector<8x128xf32>
    %284 = arith.mulf %277, %283 : vector<8x128xf32>
    %285 = arith.addf %279, %284 : vector<8x128xf32>
    %286 = math.tanh %285 : vector<8x128xf32>
    %cst_106 = arith.constant 1.000000e+00 : f32
    %287 = vector.broadcast %cst_106 : f32 to vector<8x128xf32>
    %288 = arith.subf %287, %278 : vector<8x128xf32>
    %289 = arith.mulf %288, %286 : vector<8x128xf32>
    %290 = arith.mulf %278, %0 : vector<8x128xf32>
    %291 = arith.addf %289, %290 : vector<8x128xf32>
    %c1_i32_107 = arith.constant 1 : i32
    %c8_i32_108 = arith.constant 8 : i32
    %292 = arith.muli %c1_i32_107, %c8_i32_108 : i32
    %293 = tpu.assume_multiple %292, 8 : i32
    %294 = arith.index_cast %293 : i32 to index
    %c0_109 = arith.constant 0 : index
    %295 = vector.load %arg12[%294, %c0_109] : memref<64x384xf32, #tpu.memory_space<vmem>>, vector<8x384xf32>
    %c0_110 = arith.constant 0 : index
    %c0_111 = arith.constant 0 : index
    %296 = vector.load %arg6[%c0_110, %c0_111] : memref<128x384xf32, #tpu.memory_space<vmem>>, vector<128x384xf32>
    %cst_112 = arith.constant dense<0.000000e+00> : vector<8x384xf32>
    %297 = tpu.matmul %291, %296, %cst_112 {dimension_numbers = #tpu.dot_dimension_numbers<[1], [0], [0], [1], [0, 0, 1, 1], [], []>} : vector<8x128xf32>, vector<128x384xf32>, vector<8x384xf32> -> vector<8x384xf32>
    %298 = vector.extract_strided_slice %295 {offsets = [0, 0], sizes = [8, 256], strides = [1, 1]} : vector<8x384xf32> to vector<8x256xf32>
    %299 = vector.extract_strided_slice %297 {offsets = [0, 0], sizes = [8, 256], strides = [1, 1]} : vector<8x384xf32> to vector<8x256xf32>
    %300 = arith.addf %298, %299 : vector<8x256xf32>
    %301 = arith.negf %300 : vector<8x256xf32>
    %302 = math.exp %301 : vector<8x256xf32>
    %cst_113 = arith.constant 1.000000e+00 : f32
    %303 = vector.broadcast %cst_113 : f32 to vector<8x256xf32>
    %304 = arith.addf %303, %302 : vector<8x256xf32>
    %305 = arith.divf %303, %304 : vector<8x256xf32>
    %306 = vector.extract_strided_slice %305 {offsets = [0, 0], sizes = [8, 128], strides = [1, 1]} : vector<8x256xf32> to vector<8x128xf32>
    %307 = vector.extract_strided_slice %305 {offsets = [0, 128], sizes = [8, 128], strides = [1, 1]} : vector<8x256xf32> to vector<8x128xf32>
    %308 = vector.extract_strided_slice %295 {offsets = [0, 256], sizes = [8, 128], strides = [1, 1]} : vector<8x384xf32> to vector<8x128xf32>
    %309 = vector.extract_strided_slice %297 {offsets = [0, 256], sizes = [8, 128], strides = [1, 1]} : vector<8x384xf32> to vector<8x128xf32>
    %c0_114 = arith.constant 0 : index
    %c0_115 = arith.constant 0 : index
    %310 = vector.load %arg8[%c0_114, %c0_115] : memref<1x128xf32, #tpu.memory_space<vmem>>, vector<1x128xf32>
    %311 = vector.broadcast %310 : vector<1x128xf32> to vector<8x128xf32>
    %312 = arith.addf %309, %311 : vector<8x128xf32>
    %313 = arith.mulf %306, %312 : vector<8x128xf32>
    %314 = arith.addf %308, %313 : vector<8x128xf32>
    %315 = math.tanh %314 : vector<8x128xf32>
    %cst_116 = arith.constant 1.000000e+00 : f32
    %316 = vector.broadcast %cst_116 : f32 to vector<8x128xf32>
    %317 = arith.subf %316, %307 : vector<8x128xf32>
    %318 = arith.mulf %317, %315 : vector<8x128xf32>
    %319 = arith.mulf %307, %291 : vector<8x128xf32>
    %320 = arith.addf %318, %319 : vector<8x128xf32>
    %c2_i32_117 = arith.constant 2 : i32
    %c8_i32_118 = arith.constant 8 : i32
    %321 = arith.muli %c2_i32_117, %c8_i32_118 : i32
    %322 = tpu.assume_multiple %321, 8 : i32
    %323 = arith.index_cast %322 : i32 to index
    %c0_119 = arith.constant 0 : index
    %324 = vector.load %arg12[%323, %c0_119] : memref<64x384xf32, #tpu.memory_space<vmem>>, vector<8x384xf32>
    %c0_120 = arith.constant 0 : index
    %c0_121 = arith.constant 0 : index
    %325 = vector.load %arg6[%c0_120, %c0_121] : memref<128x384xf32, #tpu.memory_space<vmem>>, vector<128x384xf32>
    %cst_122 = arith.constant dense<0.000000e+00> : vector<8x384xf32>
    %326 = tpu.matmul %320, %325, %cst_122 {dimension_numbers = #tpu.dot_dimension_numbers<[1], [0], [0], [1], [0, 0, 1, 1], [], []>} : vector<8x128xf32>, vector<128x384xf32>, vector<8x384xf32> -> vector<8x384xf32>
    %327 = vector.extract_strided_slice %324 {offsets = [0, 0], sizes = [8, 256], strides = [1, 1]} : vector<8x384xf32> to vector<8x256xf32>
    %328 = vector.extract_strided_slice %326 {offsets = [0, 0], sizes = [8, 256], strides = [1, 1]} : vector<8x384xf32> to vector<8x256xf32>
    %329 = arith.addf %327, %328 : vector<8x256xf32>
    %330 = arith.negf %329 : vector<8x256xf32>
    %331 = math.exp %330 : vector<8x256xf32>
    %cst_123 = arith.constant 1.000000e+00 : f32
    %332 = vector.broadcast %cst_123 : f32 to vector<8x256xf32>
    %333 = arith.addf %332, %331 : vector<8x256xf32>
    %334 = arith.divf %332, %333 : vector<8x256xf32>
    %335 = vector.extract_strided_slice %334 {offsets = [0, 0], sizes = [8, 128], strides = [1, 1]} : vector<8x256xf32> to vector<8x128xf32>
    %336 = vector.extract_strided_slice %334 {offsets = [0, 128], sizes = [8, 128], strides = [1, 1]} : vector<8x256xf32> to vector<8x128xf32>
    %337 = vector.extract_strided_slice %324 {offsets = [0, 256], sizes = [8, 128], strides = [1, 1]} : vector<8x384xf32> to vector<8x128xf32>
    %338 = vector.extract_strided_slice %326 {offsets = [0, 256], sizes = [8, 128], strides = [1, 1]} : vector<8x384xf32> to vector<8x128xf32>
    %c0_124 = arith.constant 0 : index
    %c0_125 = arith.constant 0 : index
    %339 = vector.load %arg8[%c0_124, %c0_125] : memref<1x128xf32, #tpu.memory_space<vmem>>, vector<1x128xf32>
    %340 = vector.broadcast %339 : vector<1x128xf32> to vector<8x128xf32>
    %341 = arith.addf %338, %340 : vector<8x128xf32>
    %342 = arith.mulf %335, %341 : vector<8x128xf32>
    %343 = arith.addf %337, %342 : vector<8x128xf32>
    %344 = math.tanh %343 : vector<8x128xf32>
    %cst_126 = arith.constant 1.000000e+00 : f32
    %345 = vector.broadcast %cst_126 : f32 to vector<8x128xf32>
    %346 = arith.subf %345, %336 : vector<8x128xf32>
    %347 = arith.mulf %346, %344 : vector<8x128xf32>
    %348 = arith.mulf %336, %320 : vector<8x128xf32>
    %349 = arith.addf %347, %348 : vector<8x128xf32>
    %c3_i32_127 = arith.constant 3 : i32
    %c8_i32_128 = arith.constant 8 : i32
    %350 = arith.muli %c3_i32_127, %c8_i32_128 : i32
    %351 = tpu.assume_multiple %350, 8 : i32
    %352 = arith.index_cast %351 : i32 to index
    %c0_129 = arith.constant 0 : index
    %353 = vector.load %arg12[%352, %c0_129] : memref<64x384xf32, #tpu.memory_space<vmem>>, vector<8x384xf32>
    %c0_130 = arith.constant 0 : index
    %c0_131 = arith.constant 0 : index
    %354 = vector.load %arg6[%c0_130, %c0_131] : memref<128x384xf32, #tpu.memory_space<vmem>>, vector<128x384xf32>
    %cst_132 = arith.constant dense<0.000000e+00> : vector<8x384xf32>
    %355 = tpu.matmul %349, %354, %cst_132 {dimension_numbers = #tpu.dot_dimension_numbers<[1], [0], [0], [1], [0, 0, 1, 1], [], []>} : vector<8x128xf32>, vector<128x384xf32>, vector<8x384xf32> -> vector<8x384xf32>
    %356 = vector.extract_strided_slice %353 {offsets = [0, 0], sizes = [8, 256], strides = [1, 1]} : vector<8x384xf32> to vector<8x256xf32>
    %357 = vector.extract_strided_slice %355 {offsets = [0, 0], sizes = [8, 256], strides = [1, 1]} : vector<8x384xf32> to vector<8x256xf32>
    %358 = arith.addf %356, %357 : vector<8x256xf32>
    %359 = arith.negf %358 : vector<8x256xf32>
    %360 = math.exp %359 : vector<8x256xf32>
    %cst_133 = arith.constant 1.000000e+00 : f32
    %361 = vector.broadcast %cst_133 : f32 to vector<8x256xf32>
    %362 = arith.addf %361, %360 : vector<8x256xf32>
    %363 = arith.divf %361, %362 : vector<8x256xf32>
    %364 = vector.extract_strided_slice %363 {offsets = [0, 0], sizes = [8, 128], strides = [1, 1]} : vector<8x256xf32> to vector<8x128xf32>
    %365 = vector.extract_strided_slice %363 {offsets = [0, 128], sizes = [8, 128], strides = [1, 1]} : vector<8x256xf32> to vector<8x128xf32>
    %366 = vector.extract_strided_slice %353 {offsets = [0, 256], sizes = [8, 128], strides = [1, 1]} : vector<8x384xf32> to vector<8x128xf32>
    %367 = vector.extract_strided_slice %355 {offsets = [0, 256], sizes = [8, 128], strides = [1, 1]} : vector<8x384xf32> to vector<8x128xf32>
    %c0_134 = arith.constant 0 : index
    %c0_135 = arith.constant 0 : index
    %368 = vector.load %arg8[%c0_134, %c0_135] : memref<1x128xf32, #tpu.memory_space<vmem>>, vector<1x128xf32>
    %369 = vector.broadcast %368 : vector<1x128xf32> to vector<8x128xf32>
    %370 = arith.addf %367, %369 : vector<8x128xf32>
    %371 = arith.mulf %364, %370 : vector<8x128xf32>
    %372 = arith.addf %366, %371 : vector<8x128xf32>
    %373 = math.tanh %372 : vector<8x128xf32>
    %cst_136 = arith.constant 1.000000e+00 : f32
    %374 = vector.broadcast %cst_136 : f32 to vector<8x128xf32>
    %375 = arith.subf %374, %365 : vector<8x128xf32>
    %376 = arith.mulf %375, %373 : vector<8x128xf32>
    %377 = arith.mulf %365, %349 : vector<8x128xf32>
    %378 = arith.addf %376, %377 : vector<8x128xf32>
    %c4_i32_137 = arith.constant 4 : i32
    %c8_i32_138 = arith.constant 8 : i32
    %379 = arith.muli %c4_i32_137, %c8_i32_138 : i32
    %380 = tpu.assume_multiple %379, 8 : i32
    %381 = arith.index_cast %380 : i32 to index
    %c0_139 = arith.constant 0 : index
    %382 = vector.load %arg12[%381, %c0_139] : memref<64x384xf32, #tpu.memory_space<vmem>>, vector<8x384xf32>
    %c0_140 = arith.constant 0 : index
    %c0_141 = arith.constant 0 : index
    %383 = vector.load %arg6[%c0_140, %c0_141] : memref<128x384xf32, #tpu.memory_space<vmem>>, vector<128x384xf32>
    %cst_142 = arith.constant dense<0.000000e+00> : vector<8x384xf32>
    %384 = tpu.matmul %378, %383, %cst_142 {dimension_numbers = #tpu.dot_dimension_numbers<[1], [0], [0], [1], [0, 0, 1, 1], [], []>} : vector<8x128xf32>, vector<128x384xf32>, vector<8x384xf32> -> vector<8x384xf32>
    %385 = vector.extract_strided_slice %382 {offsets = [0, 0], sizes = [8, 256], strides = [1, 1]} : vector<8x384xf32> to vector<8x256xf32>
    %386 = vector.extract_strided_slice %384 {offsets = [0, 0], sizes = [8, 256], strides = [1, 1]} : vector<8x384xf32> to vector<8x256xf32>
    %387 = arith.addf %385, %386 : vector<8x256xf32>
    %388 = arith.negf %387 : vector<8x256xf32>
    %389 = math.exp %388 : vector<8x256xf32>
    %cst_143 = arith.constant 1.000000e+00 : f32
    %390 = vector.broadcast %cst_143 : f32 to vector<8x256xf32>
    %391 = arith.addf %390, %389 : vector<8x256xf32>
    %392 = arith.divf %390, %391 : vector<8x256xf32>
    %393 = vector.extract_strided_slice %392 {offsets = [0, 0], sizes = [8, 128], strides = [1, 1]} : vector<8x256xf32> to vector<8x128xf32>
    %394 = vector.extract_strided_slice %392 {offsets = [0, 128], sizes = [8, 128], strides = [1, 1]} : vector<8x256xf32> to vector<8x128xf32>
    %395 = vector.extract_strided_slice %382 {offsets = [0, 256], sizes = [8, 128], strides = [1, 1]} : vector<8x384xf32> to vector<8x128xf32>
    %396 = vector.extract_strided_slice %384 {offsets = [0, 256], sizes = [8, 128], strides = [1, 1]} : vector<8x384xf32> to vector<8x128xf32>
    %c0_144 = arith.constant 0 : index
    %c0_145 = arith.constant 0 : index
    %397 = vector.load %arg8[%c0_144, %c0_145] : memref<1x128xf32, #tpu.memory_space<vmem>>, vector<1x128xf32>
    %398 = vector.broadcast %397 : vector<1x128xf32> to vector<8x128xf32>
    %399 = arith.addf %396, %398 : vector<8x128xf32>
    %400 = arith.mulf %393, %399 : vector<8x128xf32>
    %401 = arith.addf %395, %400 : vector<8x128xf32>
    %402 = math.tanh %401 : vector<8x128xf32>
    %cst_146 = arith.constant 1.000000e+00 : f32
    %403 = vector.broadcast %cst_146 : f32 to vector<8x128xf32>
    %404 = arith.subf %403, %394 : vector<8x128xf32>
    %405 = arith.mulf %404, %402 : vector<8x128xf32>
    %406 = arith.mulf %394, %378 : vector<8x128xf32>
    %407 = arith.addf %405, %406 : vector<8x128xf32>
    %c5_i32_147 = arith.constant 5 : i32
    %c8_i32_148 = arith.constant 8 : i32
    %408 = arith.muli %c5_i32_147, %c8_i32_148 : i32
    %409 = tpu.assume_multiple %408, 8 : i32
    %410 = arith.index_cast %409 : i32 to index
    %c0_149 = arith.constant 0 : index
    %411 = vector.load %arg12[%410, %c0_149] : memref<64x384xf32, #tpu.memory_space<vmem>>, vector<8x384xf32>
    %c0_150 = arith.constant 0 : index
    %c0_151 = arith.constant 0 : index
    %412 = vector.load %arg6[%c0_150, %c0_151] : memref<128x384xf32, #tpu.memory_space<vmem>>, vector<128x384xf32>
    %cst_152 = arith.constant dense<0.000000e+00> : vector<8x384xf32>
    %413 = tpu.matmul %407, %412, %cst_152 {dimension_numbers = #tpu.dot_dimension_numbers<[1], [0], [0], [1], [0, 0, 1, 1], [], []>} : vector<8x128xf32>, vector<128x384xf32>, vector<8x384xf32> -> vector<8x384xf32>
    %414 = vector.extract_strided_slice %411 {offsets = [0, 0], sizes = [8, 256], strides = [1, 1]} : vector<8x384xf32> to vector<8x256xf32>
    %415 = vector.extract_strided_slice %413 {offsets = [0, 0], sizes = [8, 256], strides = [1, 1]} : vector<8x384xf32> to vector<8x256xf32>
    %416 = arith.addf %414, %415 : vector<8x256xf32>
    %417 = arith.negf %416 : vector<8x256xf32>
    %418 = math.exp %417 : vector<8x256xf32>
    %cst_153 = arith.constant 1.000000e+00 : f32
    %419 = vector.broadcast %cst_153 : f32 to vector<8x256xf32>
    %420 = arith.addf %419, %418 : vector<8x256xf32>
    %421 = arith.divf %419, %420 : vector<8x256xf32>
    %422 = vector.extract_strided_slice %421 {offsets = [0, 0], sizes = [8, 128], strides = [1, 1]} : vector<8x256xf32> to vector<8x128xf32>
    %423 = vector.extract_strided_slice %421 {offsets = [0, 128], sizes = [8, 128], strides = [1, 1]} : vector<8x256xf32> to vector<8x128xf32>
    %424 = vector.extract_strided_slice %411 {offsets = [0, 256], sizes = [8, 128], strides = [1, 1]} : vector<8x384xf32> to vector<8x128xf32>
    %425 = vector.extract_strided_slice %413 {offsets = [0, 256], sizes = [8, 128], strides = [1, 1]} : vector<8x384xf32> to vector<8x128xf32>
    %c0_154 = arith.constant 0 : index
    %c0_155 = arith.constant 0 : index
    %426 = vector.load %arg8[%c0_154, %c0_155] : memref<1x128xf32, #tpu.memory_space<vmem>>, vector<1x128xf32>
    %427 = vector.broadcast %426 : vector<1x128xf32> to vector<8x128xf32>
    %428 = arith.addf %425, %427 : vector<8x128xf32>
    %429 = arith.mulf %422, %428 : vector<8x128xf32>
    %430 = arith.addf %424, %429 : vector<8x128xf32>
    %431 = math.tanh %430 : vector<8x128xf32>
    %cst_156 = arith.constant 1.000000e+00 : f32
    %432 = vector.broadcast %cst_156 : f32 to vector<8x128xf32>
    %433 = arith.subf %432, %423 : vector<8x128xf32>
    %434 = arith.mulf %433, %431 : vector<8x128xf32>
    %435 = arith.mulf %423, %407 : vector<8x128xf32>
    %436 = arith.addf %434, %435 : vector<8x128xf32>
    %c6_i32_157 = arith.constant 6 : i32
    %c8_i32_158 = arith.constant 8 : i32
    %437 = arith.muli %c6_i32_157, %c8_i32_158 : i32
    %438 = tpu.assume_multiple %437, 8 : i32
    %439 = arith.index_cast %438 : i32 to index
    %c0_159 = arith.constant 0 : index
    %440 = vector.load %arg12[%439, %c0_159] : memref<64x384xf32, #tpu.memory_space<vmem>>, vector<8x384xf32>
    %c0_160 = arith.constant 0 : index
    %c0_161 = arith.constant 0 : index
    %441 = vector.load %arg6[%c0_160, %c0_161] : memref<128x384xf32, #tpu.memory_space<vmem>>, vector<128x384xf32>
    %cst_162 = arith.constant dense<0.000000e+00> : vector<8x384xf32>
    %442 = tpu.matmul %436, %441, %cst_162 {dimension_numbers = #tpu.dot_dimension_numbers<[1], [0], [0], [1], [0, 0, 1, 1], [], []>} : vector<8x128xf32>, vector<128x384xf32>, vector<8x384xf32> -> vector<8x384xf32>
    %443 = vector.extract_strided_slice %440 {offsets = [0, 0], sizes = [8, 256], strides = [1, 1]} : vector<8x384xf32> to vector<8x256xf32>
    %444 = vector.extract_strided_slice %442 {offsets = [0, 0], sizes = [8, 256], strides = [1, 1]} : vector<8x384xf32> to vector<8x256xf32>
    %445 = arith.addf %443, %444 : vector<8x256xf32>
    %446 = arith.negf %445 : vector<8x256xf32>
    %447 = math.exp %446 : vector<8x256xf32>
    %cst_163 = arith.constant 1.000000e+00 : f32
    %448 = vector.broadcast %cst_163 : f32 to vector<8x256xf32>
    %449 = arith.addf %448, %447 : vector<8x256xf32>
    %450 = arith.divf %448, %449 : vector<8x256xf32>
    %451 = vector.extract_strided_slice %450 {offsets = [0, 0], sizes = [8, 128], strides = [1, 1]} : vector<8x256xf32> to vector<8x128xf32>
    %452 = vector.extract_strided_slice %450 {offsets = [0, 128], sizes = [8, 128], strides = [1, 1]} : vector<8x256xf32> to vector<8x128xf32>
    %453 = vector.extract_strided_slice %440 {offsets = [0, 256], sizes = [8, 128], strides = [1, 1]} : vector<8x384xf32> to vector<8x128xf32>
    %454 = vector.extract_strided_slice %442 {offsets = [0, 256], sizes = [8, 128], strides = [1, 1]} : vector<8x384xf32> to vector<8x128xf32>
    %c0_164 = arith.constant 0 : index
    %c0_165 = arith.constant 0 : index
    %455 = vector.load %arg8[%c0_164, %c0_165] : memref<1x128xf32, #tpu.memory_space<vmem>>, vector<1x128xf32>
    %456 = vector.broadcast %455 : vector<1x128xf32> to vector<8x128xf32>
    %457 = arith.addf %454, %456 : vector<8x128xf32>
    %458 = arith.mulf %451, %457 : vector<8x128xf32>
    %459 = arith.addf %453, %458 : vector<8x128xf32>
    %460 = math.tanh %459 : vector<8x128xf32>
    %cst_166 = arith.constant 1.000000e+00 : f32
    %461 = vector.broadcast %cst_166 : f32 to vector<8x128xf32>
    %462 = arith.subf %461, %452 : vector<8x128xf32>
    %463 = arith.mulf %462, %460 : vector<8x128xf32>
    %464 = arith.mulf %452, %436 : vector<8x128xf32>
    %465 = arith.addf %463, %464 : vector<8x128xf32>
    %c7_i32_167 = arith.constant 7 : i32
    %c8_i32_168 = arith.constant 8 : i32
    %466 = arith.muli %c7_i32_167, %c8_i32_168 : i32
    %467 = tpu.assume_multiple %466, 8 : i32
    %468 = arith.index_cast %467 : i32 to index
    %c0_169 = arith.constant 0 : index
    %469 = vector.load %arg12[%468, %c0_169] : memref<64x384xf32, #tpu.memory_space<vmem>>, vector<8x384xf32>
    %c0_170 = arith.constant 0 : index
    %c0_171 = arith.constant 0 : index
    %470 = vector.load %arg6[%c0_170, %c0_171] : memref<128x384xf32, #tpu.memory_space<vmem>>, vector<128x384xf32>
    %cst_172 = arith.constant dense<0.000000e+00> : vector<8x384xf32>
    %471 = tpu.matmul %465, %470, %cst_172 {dimension_numbers = #tpu.dot_dimension_numbers<[1], [0], [0], [1], [0, 0, 1, 1], [], []>} : vector<8x128xf32>, vector<128x384xf32>, vector<8x384xf32> -> vector<8x384xf32>
    %472 = vector.extract_strided_slice %469 {offsets = [0, 0], sizes = [8, 256], strides = [1, 1]} : vector<8x384xf32> to vector<8x256xf32>
    %473 = vector.extract_strided_slice %471 {offsets = [0, 0], sizes = [8, 256], strides = [1, 1]} : vector<8x384xf32> to vector<8x256xf32>
    %474 = arith.addf %472, %473 : vector<8x256xf32>
    %475 = arith.negf %474 : vector<8x256xf32>
    %476 = math.exp %475 : vector<8x256xf32>
    %cst_173 = arith.constant 1.000000e+00 : f32
    %477 = vector.broadcast %cst_173 : f32 to vector<8x256xf32>
    %478 = arith.addf %477, %476 : vector<8x256xf32>
    %479 = arith.divf %477, %478 : vector<8x256xf32>
    %480 = vector.extract_strided_slice %479 {offsets = [0, 0], sizes = [8, 128], strides = [1, 1]} : vector<8x256xf32> to vector<8x128xf32>
    %481 = vector.extract_strided_slice %479 {offsets = [0, 128], sizes = [8, 128], strides = [1, 1]} : vector<8x256xf32> to vector<8x128xf32>
    %482 = vector.extract_strided_slice %469 {offsets = [0, 256], sizes = [8, 128], strides = [1, 1]} : vector<8x384xf32> to vector<8x128xf32>
    %483 = vector.extract_strided_slice %471 {offsets = [0, 256], sizes = [8, 128], strides = [1, 1]} : vector<8x384xf32> to vector<8x128xf32>
    %c0_174 = arith.constant 0 : index
    %c0_175 = arith.constant 0 : index
    %484 = vector.load %arg8[%c0_174, %c0_175] : memref<1x128xf32, #tpu.memory_space<vmem>>, vector<1x128xf32>
    %485 = vector.broadcast %484 : vector<1x128xf32> to vector<8x128xf32>
    %486 = arith.addf %483, %485 : vector<8x128xf32>
    %487 = arith.mulf %480, %486 : vector<8x128xf32>
    %488 = arith.addf %482, %487 : vector<8x128xf32>
    %489 = math.tanh %488 : vector<8x128xf32>
    %cst_176 = arith.constant 1.000000e+00 : f32
    %490 = vector.broadcast %cst_176 : f32 to vector<8x128xf32>
    %491 = arith.subf %490, %481 : vector<8x128xf32>
    %492 = arith.mulf %491, %489 : vector<8x128xf32>
    %493 = arith.mulf %481, %465 : vector<8x128xf32>
    %494 = arith.addf %492, %493 : vector<8x128xf32>
    %c8_i32_177 = arith.constant 8 : i32
    %c0_178 = arith.constant 0 : index
    %c0_179 = arith.constant 0 : index
    %495 = vector.load %arg9[%c0_178, %c0_179] : memref<128x128xf32, #tpu.memory_space<vmem>>, vector<128x128xf32>
    %cst_180 = arith.constant dense<0.000000e+00> : vector<8x128xf32>
    %496 = tpu.matmul %494, %495, %cst_180 {dimension_numbers = #tpu.dot_dimension_numbers<[1], [0], [0], [1], [0, 0, 1, 1], [], []>} : vector<8x128xf32>, vector<128x128xf32>, vector<8x128xf32> -> vector<8x128xf32>
    %c0_181 = arith.constant 0 : index
    %c0_182 = arith.constant 0 : index
    %497 = vector.load %arg10[%c0_181, %c0_182] : memref<1x128xf32, #tpu.memory_space<vmem>>, vector<1x128xf32>
    %498 = vector.broadcast %497 : vector<1x128xf32> to vector<8x128xf32>
    %499 = arith.addf %496, %498 : vector<8x128xf32>
    %cst_183 = arith.constant 0.000000e+00 : f32
    %500 = vector.broadcast %cst_183 : f32 to vector<8x128xf32>
    %501 = arith.maximumf %499, %500 : vector<8x128xf32>
    %c0_184 = arith.constant 0 : index
    %c0_185 = arith.constant 0 : index
    %502 = vector.load %arg11[%c0_184, %c0_185] : memref<8x128xf32, #tpu.memory_space<vmem>>, vector<8x128xf32>
    tpu.vector_store %arg11[%c0_184, %c0_185], %501 {strides = array<i32>} : memref<8x128xf32, #tpu.memory_space<vmem>>, vector<8x128xf32>,
    return
  }
}

</mosaic_0001>

<llo_original>
// kernel: tpu_custom_call.1
$region0: #{tpu_custom_call.1}
  #allocation0 [shape = 'u32[]', space=smem, size = 0x4, offset = 0x4, fixed_abs, tag = 'smem constant byte address 0x4 - core index']
  #allocation1 [shape = 'u32[72,128]{1,0:T(1,128)}', space=vmem, size = 0x9000, scoped, tag = 'internal scratch']
  #allocation2 [shape = 'f32[64,384]{1,0:T(8,128)}', space=vmem, size = 0x18000, scoped, tag = 'scratch operand']
  #allocation3 [shape = 'f32[64,128]{1,0:T(8,128)}', space=vmem, size = 0x8000, scoped, tag = 'scratch operand']
  %s0 = inlined_call_operand.hbm [shape: f32[64,128], index: 0, kind: input, shape index: {}]
  %s1 = inlined_call_operand.hbm [shape: f32[128,384], index: 1, kind: input, shape index: {}]
  %s2 = inlined_call_operand.hbm [shape: f32[128,384], index: 2, kind: input, shape index: {}]
  %s3 = inlined_call_operand.hbm [shape: f32[1,384], index: 3, kind: input, shape index: {}]
  %s4 = inlined_call_operand.vmem [shape: f32[1,128], index: 4, kind: input, shape index: {}]
  %s5 = inlined_call_operand.hbm [shape: f32[128,384], index: 5, kind: input, shape index: {}]
  %s6 = inlined_call_operand.hbm [shape: f32[128,384], index: 6, kind: input, shape index: {}]
  %s7 = inlined_call_operand.vmem [shape: f32[1,384], index: 7, kind: input, shape index: {}]
  %s8 = inlined_call_operand.vmem [shape: f32[1,128], index: 8, kind: input, shape index: {}]
  %s9 = inlined_call_operand.hbm [shape: f32[128,128], index: 9, kind: input, shape index: {}]
  %s10 = inlined_call_operand.vmem [shape: f32[1,128], index: 10, kind: input, shape index: {}]
  %s11 = inlined_call_operand.hbm [shape: f32[8,128], index: 11, kind: output, shape index: {}]
  %s12 = sld [smem:[#allocation0]]
  $region82: #{tpu_custom_call.1} parent=0
    _
  %s14 = ssub.s32 1, %s12
  %s15 = scalar_select 0, %s14, %s12
  $region1: #{tpu_custom_call.1} parent=0
    #allocation4 [shape = 'u8[32768]{0}', space=vmem, size = 0x8000, scoped, tag = 'input window, operand 0, single buffered']
    #allocation5 [shape = 's32[1]{0}', space=sflag, size = 0x4, scoped, tag = 'scoped memory for tpu_custom_call.1']
    #allocation6 [shape = 's32[1]{0}', space=sflag, size = 0x4, scoped, tag = 'scoped memory for tpu_custom_call.1']
    #allocation7 [shape = 'u8[196608]{0}', space=vmem, size = 0x30000, scoped, tag = 'input window, operand 1, single buffered']
    #allocation8 [shape = 's32[1]{0}', space=sflag, size = 0x4, scoped, tag = 'scoped memory for tpu_custom_call.1']
    #allocation9 [shape = 'u8[196608]{0}', space=vmem, size = 0x30000, scoped, tag = 'input window, operand 2, single buffered']
    #allocation10 [shape = 'u8[1536]{0}', space=vmem, size = 0x800, scoped, tag = 'input window, operand 3, single buffered']
    #allocation11 [shape = 's32[1]{0}', space=sflag, size = 0x4, scoped, tag = 'scoped memory for tpu_custom_call.1']
    #allocation12 [shape = 'u8[196608]{0}', space=vmem, size = 0x30000, scoped, tag = 'input window, operand 5, single buffered']
    #allocation13 [shape = 'u8[196608]{0}', space=vmem, size = 0x30000, scoped, tag = 'input window, operand 6, single buffered']
    #allocation14 [shape = 's32[1]{0}', space=sflag, size = 0x4, scoped, tag = 'scoped memory for tpu_custom_call.1']
    #allocation15 [shape = 'u8[65536]{0}', space=vmem, size = 0x10000, scoped, tag = 'input window, operand 9, single buffered']
    #allocation16 [shape = 'u8[4096]{0}', space=vmem, size = 0x1000, scoped, tag = 'output window, operand 0, single buffered']
    %16 = vsyncpa [#allocation5], 0
    %17 = vsyncpa [#allocation8], 0
    %18 = vsyncpa [#allocation11], 0
    %19 = vsyncpa [#allocation14], 0
    %20 = vsyncpa [#allocation6], 0
    // Predicated region
    $region2: #{tpu_custom_call.1} parent=1 // pred_check
      _
    $region3: #{tpu_custom_call.1} parent=1 // pred_check_branch
      %22 = sbr.rel (0) target = $region5
    $region4: #{tpu_custom_call.1} parent=1 // pred_region
      %24 = vsyncadd [#allocation5], 0
      %s25 = sshll.u32 %s0, 4
      %s26 = int_to_ptr.hbm [resolvable:$true] %s25
      %s27 = sshll.u32 [#allocation4], 4
      %s28 = int_to_ptr.vmem [resolvable:$true] %s27
      %33 = dma.hbm_to_vmem [thread:$0]  %s26, 1024, %s28, [#allocation5], 128, 128, 8
    $region5: #{tpu_custom_call.1} parent=1 // pred_fallthru
      _
    // Predicated region
    $region6: #{tpu_custom_call.1} parent=1 // pred_check
      _
    $region7: #{tpu_custom_call.1} parent=1 // pred_check_branch
      %35 = sbr.rel (0) target = $region9
    $region8: #{tpu_custom_call.1} parent=1 // pred_region
      %37 = vsyncadd [#allocation8], 0
      %s38 = sshll.u32 %s1, 4
      %s39 = int_to_ptr.hbm [resolvable:$true] %s38
      %s40 = sshll.u32 [#allocation7], 4
      %s41 = int_to_ptr.vmem [resolvable:$true] %s40
      %46 = dma.hbm_to_vmem [thread:$0]  %s39, 6144, %s41, [#allocation8], 384, 384, 24
    $region9: #{tpu_custom_call.1} parent=1 // pred_fallthru
      _
    // Predicated region
    $region10: #{tpu_custom_call.1} parent=1 // pred_check
      _
    $region11: #{tpu_custom_call.1} parent=1 // pred_check_branch
      %48 = sbr.rel (0) target = $region13
    $region12: #{tpu_custom_call.1} parent=1 // pred_region
      %50 = vsyncadd [#allocation8], 0
      %s51 = sshll.u32 %s2, 4
      %s52 = int_to_ptr.hbm [resolvable:$true] %s51
      %s53 = sshll.u32 [#allocation9], 4
      %s54 = int_to_ptr.vmem [resolvable:$true] %s53
      %59 = dma.hbm_to_vmem [thread:$0]  %s52, 6144, %s54, [#allocation8], 384, 384, 24
    $region13: #{tpu_custom_call.1} parent=1 // pred_fallthru
      _
    // Predicated region
    $region14: #{tpu_custom_call.1} parent=1 // pred_check
      _
    $region15: #{tpu_custom_call.1} parent=1 // pred_check_branch
      %61 = sbr.rel (0) target = $region17
    $region16: #{tpu_custom_call.1} parent=1 // pred_region
      %63 = vsyncadd [#allocation11], 0
      %s65 = sshll.u32 %s3, 4
      %s66 = int_to_ptr.hbm [resolvable:$true] %s65
      %s67 = sshll.u32 [#allocation10], 4
      %s68 = int_to_ptr.vmem [resolvable:$true] %s67
      %70 = dma.hbm_to_vmem [thread:$0]  %s66, 48, %s68, [#allocation11]
    $region17: #{tpu_custom_call.1} parent=1 // pred_fallthru
      _
    // Predicated region
    $region18: #{tpu_custom_call.1} parent=1 // pred_check
      _
    $region19: #{tpu_custom_call.1} parent=1 // pred_check_branch
      %72 = sbr.rel (0) target = $region21
    $region20: #{tpu_custom_call.1} parent=1 // pred_region
      _
    $region21: #{tpu_custom_call.1} parent=1 // pred_fallthru
      _
    // Predicated region
    $region22: #{tpu_custom_call.1} parent=1 // pred_check
      _
    $region23: #{tpu_custom_call.1} parent=1 // pred_check_branch
      %74 = sbr.rel (0) target = $region25
    $region24: #{tpu_custom_call.1} parent=1 // pred_region
      %76 = vsyncadd [#allocation11], 0
      %s77 = sshll.u32 %s5, 4
      %s78 = int_to_ptr.hbm [resolvable:$true] %s77
      %s79 = sshll.u32 [#allocation12], 4
      %s80 = int_to_ptr.vmem [resolvable:$true] %s79
      %85 = dma.hbm_to_vmem [thread:$0]  %s78, 6144, %s80, [#allocation11], 384, 384, 24
    $region25: #{tpu_custom_call.1} parent=1 // pred_fallthru
      _
    // Predicated region
    $region26: #{tpu_custom_call.1} parent=1 // pred_check
      _
    $region27: #{tpu_custom_call.1} parent=1 // pred_check_branch
      %87 = sbr.rel (0) target = $region29
    $region28: #{tpu_custom_call.1} parent=1 // pred_region
      %89 = vsyncadd [#allocation14], 0
      %s90 = sshll.u32 %s6, 4
      %s91 = int_to_ptr.hbm [resolvable:$true] %s90
      %s92 = sshll.u32 [#allocation13], 4
      %s93 = int_to_ptr.vmem [resolvable:$true] %s92
      %98 = dma.hbm_to_vmem [thread:$0]  %s91, 6144, %s93, [#allocation14], 384, 384, 24
    $region29: #{tpu_custom_call.1} parent=1 // pred_fallthru
      _
    // Predicated region
    $region30: #{tpu_custom_call.1} parent=1 // pred_check
      _
    $region31: #{tpu_custom_call.1} parent=1 // pred_check_branch
      %100 = sbr.rel (0) target = $region33
    $region32: #{tpu_custom_call.1} parent=1 // pred_region
      _
    $region33: #{tpu_custom_call.1} parent=1 // pred_fallthru
      _
    // Predicated region
    $region34: #{tpu_custom_call.1} parent=1 // pred_check
      _
    $region35: #{tpu_custom_call.1} parent=1 // pred_check_branch
      %102 = sbr.rel (0) target = $region37
    $region36: #{tpu_custom_call.1} parent=1 // pred_region
      _
    $region37: #{tpu_custom_call.1} parent=1 // pred_fallthru
      _
    // Predicated region
    $region38: #{tpu_custom_call.1} parent=1 // pred_check
      _
    $region39: #{tpu_custom_call.1} parent=1 // pred_check_branch
      %104 = sbr.rel (0) target = $region41
    $region40: #{tpu_custom_call.1} parent=1 // pred_region
      %106 = vsyncadd [#allocation14], 0
      %s107 = sshll.u32 %s9, 4
      %s108 = int_to_ptr.hbm [resolvable:$true] %s107
      %s109 = sshll.u32 [#allocation15], 4
      %s110 = int_to_ptr.vmem [resolvable:$true] %s109
      %115 = dma.hbm_to_vmem [thread:$0]  %s108, 2048, %s110, [#allocation14], 128, 128, 8
    $region41: #{tpu_custom_call.1} parent=1 // pred_fallthru
      _
    // Predicated region
    $region42: #{tpu_custom_call.1} parent=1 // pred_check
      _
    $region43: #{tpu_custom_call.1} parent=1 // pred_check_branch
      %117 = sbr.rel (0) target = $region45
    $region44: #{tpu_custom_call.1} parent=1 // pred_region
      _
    $region45: #{tpu_custom_call.1} parent=1 // pred_fallthru
      _
    // Predicated region
    $region46: #{tpu_custom_call.1} parent=1 // pred_check
      _
    $region47: #{tpu_custom_call.1} parent=1 // pred_check_branch
      %119 = sbr.rel (0) target = $region49
    $region48: #{tpu_custom_call.1} parent=1 // pred_region
      %121 = dma.done [#allocation5], 1024
    $region49: #{tpu_custom_call.1} parent=1 // pred_fallthru
      _
    // Predicated region
    $region50: #{tpu_custom_call.1} parent=1 // pred_check
      _
    $region51: #{tpu_custom_call.1} parent=1 // pred_check_branch
      %123 = sbr.rel (0) target = $region53
    $region52: #{tpu_custom_call.1} parent=1 // pred_region
      %125 = dma.done [#allocation8], 6144
    $region53: #{tpu_custom_call.1} parent=1 // pred_fallthru
      _
    // Predicated region
    $region54: #{tpu_custom_call.1} parent=1 // pred_check
      _
    $region55: #{tpu_custom_call.1} parent=1 // pred_check_branch
      %127 = sbr.rel (0) target = $region57
    $region56: #{tpu_custom_call.1} parent=1 // pred_region
      %129 = dma.done [#allocation8], 6144
    $region57: #{tpu_custom_call.1} parent=1 // pred_fallthru
      _
    // Predicated region
    $region58: #{tpu_custom_call.1} parent=1 // pred_check
      _
    $region59: #{tpu_custom_call.1} parent=1 // pred_check_branch
      %131 = sbr.rel (0) target = $region61
    $region60: #{tpu_custom_call.1} parent=1 // pred_region
      %133 = dma.done [#allocation11], 48
    $region61: #{tpu_custom_call.1} parent=1 // pred_fallthru
      _
    // Predicated region
    $region62: #{tpu_custom_call.1} parent=1 // pred_check
      _
    $region63: #{tpu_custom_call.1} parent=1 // pred_check_branch
      %135 = sbr.rel (0) target = $region65
    $region64: #{tpu_custom_call.1} parent=1 // pred_region
      %137 = dma.done [#allocation11], 6144
    $region65: #{tpu_custom_call.1} parent=1 // pred_fallthru
      _
    // Predicated region
    $region66: #{tpu_custom_call.1} parent=1 // pred_check
      _
    $region67: #{tpu_custom_call.1} parent=1 // pred_check_branch
      %139 = sbr.rel (0) target = $region69
    $region68: #{tpu_custom_call.1} parent=1 // pred_region
      %141 = dma.done [#allocation14], 6144
    $region69: #{tpu_custom_call.1} parent=1 // pred_fallthru
      _
    // Predicated region
    $region70: #{tpu_custom_call.1} parent=1 // pred_check
      _
    $region71: #{tpu_custom_call.1} parent=1 // pred_check_branch
      %143 = sbr.rel (0) target = $region73
    $region72: #{tpu_custom_call.1} parent=1 // pred_region
      %145 = dma.done [#allocation14], 2048
    $region73: #{tpu_custom_call.1} parent=1 // pred_fallthru
      _
    %v146 = vld [vmem:[#allocation4] sm:$0xff]
    %v147 = vld [vmem:[#allocation4 + $0x8] sm:$0xff]
    %v148 = vld [vmem:[#allocation4 + $0x10] sm:$0xff]
    %v149 = vld [vmem:[#allocation4 + $0x18] sm:$0xff]
    %v150 = vld [vmem:[#allocation4 + $0x20] sm:$0xff]
    %v151 = vld [vmem:[#allocation4 + $0x28] sm:$0xff]
    %v152 = vld [vmem:[#allocation4 + $0x30] sm:$0xff]
    %v153 = vld [vmem:[#allocation4 + $0x38] sm:$0xff]
    %v154 = vld [vmem:[#allocation7] sm:$0xff]
    %v155 = vld [vmem:[#allocation7 + $0x8] sm:$0xff]
    %v156 = vld [vmem:[#allocation7 + $0x10] sm:$0xff]
    %v157 = vld [vmem:[#allocation7 + $0x18] sm:$0xff]
    %v158 = vld [vmem:[#allocation7 + $0x20] sm:$0xff]
    %v159 = vld [vmem:[#allocation7 + $0x28] sm:$0xff]
    %v160 = vld [vmem:[#allocation7 + $0x30] sm:$0xff]
    %v161 = vld [vmem:[#allocation7 + $0x38] sm:$0xff]
    %v162 = vld [vmem:[#allocation7 + $0x40] sm:$0xff]
    %v163 = vld [vmem:[#allocation7 + $0x48] sm:$0xff]
    %v164 = vld [vmem:[#allocation7 + $0x50] sm:$0xff]
    %v165 = vld [vmem:[#allocation7 + $0x58] sm:$0xff]
    %v166 = vld [vmem:[#allocation7 + $0x60] sm:$0xff]
    %v167 = vld [vmem:[#allocation7 + $0x68] sm:$0xff]
    %v168 = vld [vmem:[#allocation7 + $0x70] sm:$0xff]
    %v169 = vld [vmem:[#allocation7 + $0x78] sm:$0xff]
    %v170 = vld [vmem:[#allocation7 + $0x80] sm:$0xff]
    %v171 = vld [vmem:[#allocation7 + $0x88] sm:$0xff]
    %v172 = vld [vmem:[#allocation7 + $0x90] sm:$0xff]
    %v173 = vld [vmem:[#allocation7 + $0x98] sm:$0xff]
    %v174 = vld [vmem:[#allocation7 + $0xa0] sm:$0xff]
    %v175 = vld [vmem:[#allocation7 + $0xa8] sm:$0xff]
    %v176 = vld [vmem:[#allocation7 + $0xb0] sm:$0xff]
    %v177 = vld [vmem:[#allocation7 + $0xb8] sm:$0xff]
    %v178 = vld [vmem:[#allocation7 + $0xc0] sm:$0xff]
    %v179 = vld [vmem:[#allocation7 + $0xc8] sm:$0xff]
    %v180 = vld [vmem:[#allocation7 + $0xd0] sm:$0xff]
    %v181 = vld [vmem:[#allocation7 + $0xd8] sm:$0xff]
    %v182 = vld [vmem:[#allocation7 + $0xe0] sm:$0xff]
    %v183 = vld [vmem:[#allocation7 + $0xe8] sm:$0xff]
    %v184 = vld [vmem:[#allocation7 + $0xf0] sm:$0xff]
    %v185 = vld [vmem:[#allocation7 + $0xf8] sm:$0xff]
    %v186 = vld [vmem:[#allocation7 + $0x100] sm:$0xff]
    %v187 = vld [vmem:[#allocation7 + $0x108] sm:$0xff]
    %v188 = vld [vmem:[#allocation7 + $0x110] sm:$0xff]
    %v189 = vld [vmem:[#allocation7 + $0x118] sm:$0xff]
    %v190 = vld [vmem:[#allocation7 + $0x120] sm:$0xff]
    %v191 = vld [vmem:[#allocation7 + $0x128] sm:$0xff]
    %v192 = vld [vmem:[#allocation7 + $0x130] sm:$0xff]
    %v193 = vld [vmem:[#allocation7 + $0x138] sm:$0xff]
    %v194 = vld [vmem:[#allocation7 + $0x140] sm:$0xff]
    %v195 = vld [vmem:[#allocation7 + $0x148] sm:$0xff]
    %v196 = vld [vmem:[#allocation7 + $0x150] sm:$0xff]
    %v197 = vld [vmem:[#allocation7 + $0x158] sm:$0xff]
    %v198 = vld [vmem:[#allocation7 + $0x160] sm:$0xff]
    %v199 = vld [vmem:[#allocation7 + $0x168] sm:$0xff]
    %v200 = vld [vmem:[#allocation7 + $0x170] sm:$0xff]
    %v201 = vld [vmem:[#allocation7 + $0x178] sm:$0xff]
    %v202 = vld [vmem:[#allocation10] sm:$0x7]
    %v204 = vperm.slane %v202, 0
    %v205 = vperm.slane %v202, 1
    %v206 = vperm.slane %v202, 2
    %210 = vmatpush.msra.mxu0 %v199
    %211 = vmatpush.msra.mxu0 %v196
    %212 = vmatpush.msra.mxu0 %v193
    %213 = vmatpush.msra.mxu0 %v190
    %214 = vmatpush.msra.mxu0 %v187
    %215 = vmatpush.msra.mxu0 %v184
    %216 = vmatpush.msra.mxu0 %v181
    %217 = vmatpush.msra.mxu0 %v178
    %218 = vmatpush.msra.mxu0 %v175
    %219 = vmatpush.msra.mxu0 %v172
    %220 = vmatpush.msra.mxu0 %v169
    %221 = vmatpush.msra.mxu0 %v166
    %222 = vmatpush.msra.mxu0 %v163
    %223 = vmatpush.msra.mxu0 %v160
    %224 = vmatpush.msra.mxu0 %v157
    %225 = vmatpush.msra.mxu0 %v154
    %226 = vmatmul.f32.gmra.mxu0 %v146
    %v227 = vpop.f32.mrf.mxu0
    %v228 = vadd.f32 %v204, %v227
    %229 = vmatmul.f32.gmra.mxu0 %v147
    %v230 = vpop.f32.mrf.mxu0
    %v231 = vadd.f32 %v204, %v230
    %232 = vmatmul.f32.gmra.mxu0 %v148
    %v233 = vpop.f32.mrf.mxu0
    %v234 = vadd.f32 %v204, %v233
    %235 = vmatmul.f32.gmra.mxu0 %v149
    %v236 = vpop.f32.mrf.mxu0
    %v237 = vadd.f32 %v204, %v236
    %238 = vmatmul.f32.gmra.mxu0 %v150
    %v239 = vpop.f32.mrf.mxu0
    %v240 = vadd.f32 %v204, %v239
    %241 = vmatmul.f32.gmra.mxu0 %v151
    %v242 = vpop.f32.mrf.mxu0
    %v243 = vadd.f32 %v204, %v242
    %244 = vmatmul.f32.gmra.mxu0 %v152
    %v245 = vpop.f32.mrf.mxu0
    %v246 = vadd.f32 %v204, %v245
    %247 = vmatmul.f32.gmra.mxu0 %v153
    %v248 = vpop.f32.mrf.mxu0
    %v249 = vadd.f32 %v204, %v248
    %250 = vdwg.mxu0
    %251 = vmatpush.msra.mxu0 %v200
    %252 = vmatpush.msra.mxu0 %v197
    %253 = vmatpush.msra.mxu0 %v194
    %254 = vmatpush.msra.mxu0 %v191
    %255 = vmatpush.msra.mxu0 %v188
    %256 = vmatpush.msra.mxu0 %v185
    %257 = vmatpush.msra.mxu0 %v182
    %258 = vmatpush.msra.mxu0 %v179
    %259 = vmatpush.msra.mxu0 %v176
    %260 = vmatpush.msra.mxu0 %v173
    %261 = vmatpush.msra.mxu0 %v170
    %262 = vmatpush.msra.mxu0 %v167
    %263 = vmatpush.msra.mxu0 %v164
    %264 = vmatpush.msra.mxu0 %v161
    %265 = vmatpush.msra.mxu0 %v158
    %266 = vmatpush.msra.mxu0 %v155
    %267 = vmatmul.f32.gmra.mxu0 %v146
    %v268 = vpop.f32.mrf.mxu0
    %v269 = vadd.f32 %v205, %v268
    %270 = vmatmul.f32.gmra.mxu0 %v147
    %v271 = vpop.f32.mrf.mxu0
    %v272 = vadd.f32 %v205, %v271
    %273 = vmatmul.f32.gmra.mxu0 %v148
    %v274 = vpop.f32.mrf.mxu0
    %v275 = vadd.f32 %v205, %v274
    %276 = vmatmul.f32.gmra.mxu0 %v149
    %v277 = vpop.f32.mrf.mxu0
    %v278 = vadd.f32 %v205, %v277
    %279 = vmatmul.f32.gmra.mxu0 %v150
    %v280 = vpop.f32.mrf.mxu0
    %v281 = vadd.f32 %v205, %v280
    %282 = vmatmul.f32.gmra.mxu0 %v151
    %v283 = vpop.f32.mrf.mxu0
    %v284 = vadd.f32 %v205, %v283
    %285 = vmatmul.f32.gmra.mxu0 %v152
    %v286 = vpop.f32.mrf.mxu0
    %v287 = vadd.f32 %v205, %v286
    %288 = vmatmul.f32.gmra.mxu0 %v153
    %v289 = vpop.f32.mrf.mxu0
    %v290 = vadd.f32 %v205, %v289
    %291 = vdwg.mxu0
    %292 = vmatpush.msra.mxu0 %v201
    %293 = vmatpush.msra.mxu0 %v198
    %294 = vmatpush.msra.mxu0 %v195
    %295 = vmatpush.msra.mxu0 %v192
    %296 = vmatpush.msra.mxu0 %v189
    %297 = vmatpush.msra.mxu0 %v186
    %298 = vmatpush.msra.mxu0 %v183
    %299 = vmatpush.msra.mxu0 %v180
    %300 = vmatpush.msra.mxu0 %v177
    %301 = vmatpush.msra.mxu0 %v174
    %302 = vmatpush.msra.mxu0 %v171
    %303 = vmatpush.msra.mxu0 %v168
    %304 = vmatpush.msra.mxu0 %v165
    %305 = vmatpush.msra.mxu0 %v162
    %306 = vmatpush.msra.mxu0 %v159
    %307 = vmatpush.msra.mxu0 %v156
    %308 = vmatmul.f32.gmra.mxu0 %v146
    %v309 = vpop.f32.mrf.mxu0
    %v310 = vadd.f32 %v206, %v309
    %311 = vmatmul.f32.gmra.mxu0 %v147
    %v312 = vpop.f32.mrf.mxu0
    %v313 = vadd.f32 %v206, %v312
    %314 = vmatmul.f32.gmra.mxu0 %v148
    %v315 = vpop.f32.mrf.mxu0
    %v316 = vadd.f32 %v206, %v315
    %317 = vmatmul.f32.gmra.mxu0 %v149
    %v318 = vpop.f32.mrf.mxu0
    %v319 = vadd.f32 %v206, %v318
    %320 = vmatmul.f32.gmra.mxu0 %v150
    %v321 = vpop.f32.mrf.mxu0
    %v322 = vadd.f32 %v206, %v321
    %323 = vmatmul.f32.gmra.mxu0 %v151
    %v324 = vpop.f32.mrf.mxu0
    %v325 = vadd.f32 %v206, %v324
    %326 = vmatmul.f32.gmra.mxu0 %v152
    %v327 = vpop.f32.mrf.mxu0
    %v328 = vadd.f32 %v206, %v327
    %329 = vmatmul.f32.gmra.mxu0 %v153
    %v330 = vpop.f32.mrf.mxu0
    %v331 = vadd.f32 %v206, %v330
    %332 = vdwg.mxu0
    %333 = vst [vmem:[#allocation2] sm:$0xff] %v228
    %334 = vst [vmem:[#allocation2 + $0x8] sm:$0xff] %v269
    %335 = vst [vmem:[#allocation2 + $0x10] sm:$0xff] %v310
    %336 = vst [vmem:[#allocation2 + $0x18] sm:$0xff] %v231
    %337 = vst [vmem:[#allocation2 + $0x20] sm:$0xff] %v272
    %338 = vst [vmem:[#allocation2 + $0x28] sm:$0xff] %v313
    %339 = vst [vmem:[#allocation2 + $0x30] sm:$0xff] %v234
    %340 = vst [vmem:[#allocation2 + $0x38] sm:$0xff] %v275
    %341 = vst [vmem:[#allocation2 + $0x40] sm:$0xff] %v316
    %342 = vst [vmem:[#allocation2 + $0x48] sm:$0xff] %v237
    %343 = vst [vmem:[#allocation2 + $0x50] sm:$0xff] %v278
    %344 = vst [vmem:[#allocation2 + $0x58] sm:$0xff] %v319
    %345 = vst [vmem:[#allocation2 + $0x60] sm:$0xff] %v240
    %346 = vst [vmem:[#allocation2 + $0x68] sm:$0xff] %v281
    %347 = vst [vmem:[#allocation2 + $0x70] sm:$0xff] %v322
    %348 = vst [vmem:[#allocation2 + $0x78] sm:$0xff] %v243
    %349 = vst [vmem:[#allocation2 + $0x80] sm:$0xff] %v284
    %350 = vst [vmem:[#allocation2 + $0x88] sm:$0xff] %v325
    %351 = vst [vmem:[#allocation2 + $0x90] sm:$0xff] %v246
    %352 = vst [vmem:[#allocation2 + $0x98] sm:$0xff] %v287
    %353 = vst [vmem:[#allocation2 + $0xa0] sm:$0xff] %v328
    %354 = vst [vmem:[#allocation2 + $0xa8] sm:$0xff] %v249
    %355 = vst [vmem:[#allocation2 + $0xb0] sm:$0xff] %v290
    %356 = vst [vmem:[#allocation2 + $0xb8] sm:$0xff] %v331
    %s357 = smul.u32 0, 3
    %s358 = smul.addr %s357, 8
    %s359 = scalar_lea.vmem [#allocation2], %s358
    %v360 = vld [vmem:[%s359] sm:$0xff]
    %v361 = vld [vmem:[%s359 + $0x8] sm:$0xff]
    %v362 = vld [vmem:[%s359 + $0x10] sm:$0xff]
    %v363 = vld [vmem:[#allocation9] sm:$0xff]
    %v364 = vld [vmem:[#allocation9 + $0x8] sm:$0xff]
    %v365 = vld [vmem:[#allocation9 + $0x10] sm:$0xff]
    %v366 = vld [vmem:[#allocation9 + $0x18] sm:$0xff]
    %v367 = vld [vmem:[#allocation9 + $0x20] sm:$0xff]
    %v368 = vld [vmem:[#allocation9 + $0x28] sm:$0xff]
    %v369 = vld [vmem:[#allocation9 + $0x30] sm:$0xff]
    %v370 = vld [vmem:[#allocation9 + $0x38] sm:$0xff]
    %v371 = vld [vmem:[#allocation9 + $0x40] sm:$0xff]
    %v372 = vld [vmem:[#allocation9 + $0x48] sm:$0xff]
    %v373 = vld [vmem:[#allocation9 + $0x50] sm:$0xff]
    %v374 = vld [vmem:[#allocation9 + $0x58] sm:$0xff]
    %v375 = vld [vmem:[#allocation9 + $0x60] sm:$0xff]
    %v376 = vld [vmem:[#allocation9 + $0x68] sm:$0xff]
    %v377 = vld [vmem:[#allocation9 + $0x70] sm:$0xff]
    %v378 = vld [vmem:[#allocation9 + $0x78] sm:$0xff]
    %v379 = vld [vmem:[#allocation9 + $0x80] sm:$0xff]
    %v380 = vld [vmem:[#allocation9 + $0x88] sm:$0xff]
    %v381 = vld [vmem:[#allocation9 + $0x90] sm:$0xff]
    %v382 = vld [vmem:[#allocation9 + $0x98] sm:$0xff]
    %v383 = vld [vmem:[#allocation9 + $0xa0] sm:$0xff]
    %v384 = vld [vmem:[#allocation9 + $0xa8] sm:$0xff]
    %v385 = vld [vmem:[#allocation9 + $0xb0] sm:$0xff]
    %v386 = vld [vmem:[#allocation9 + $0xb8] sm:$0xff]
    %v387 = vld [vmem:[#allocation9 + $0xc0] sm:$0xff]
    %v388 = vld [vmem:[#allocation9 + $0xc8] sm:$0xff]
    %v389 = vld [vmem:[#allocation9 + $0xd0] sm:$0xff]
    %v390 = vld [vmem:[#allocation9 + $0xd8] sm:$0xff]
    %v391 = vld [vmem:[#allocation9 + $0xe0] sm:$0xff]
    %v392 = vld [vmem:[#allocation9 + $0xe8] sm:$0xff]
    %v393 = vld [vmem:[#allocation9 + $0xf0] sm:$0xff]
    %v394 = vld [vmem:[#allocation9 + $0xf8] sm:$0xff]
    %v395 = vld [vmem:[#allocation9 + $0x100] sm:$0xff]
    %v396 = vld [vmem:[#allocation9 + $0x108] sm:$0xff]
    %v397 = vld [vmem:[#allocation9 + $0x110] sm:$0xff]
    %v398 = vld [vmem:[#allocation9 + $0x118] sm:$0xff]
    %v399 = vld [vmem:[#allocation9 + $0x120] sm:$0xff]
    %v400 = vld [vmem:[#allocation9 + $0x128] sm:$0xff]
    %v401 = vld [vmem:[#allocation9 + $0x130] sm:$0xff]
    %v402 = vld [vmem:[#allocation9 + $0x138] sm:$0xff]
    %v403 = vld [vmem:[#allocation9 + $0x140] sm:$0xff]
    %v404 = vld [vmem:[#allocation9 + $0x148] sm:$0xff]
    %v405 = vld [vmem:[#allocation9 + $0x150] sm:$0xff]
    %v406 = vld [vmem:[#allocation9 + $0x158] sm:$0xff]
    %v407 = vld [vmem:[#allocation9 + $0x160] sm:$0xff]
    %v408 = vld [vmem:[#allocation9 + $0x168] sm:$0xff]
    %v409 = vld [vmem:[#allocation9 + $0x170] sm:$0xff]
    %v410 = vld [vmem:[#allocation9 + $0x178] sm:$0xff]
    %411 = vmatpush.msra.mxu0 %v408
    %412 = vmatpush.msra.mxu0 %v405
    %413 = vmatpush.msra.mxu0 %v402
    %414 = vmatpush.msra.mxu0 %v399
    %415 = vmatpush.msra.mxu0 %v396
    %416 = vmatpush.msra.mxu0 %v393
    %417 = vmatpush.msra.mxu0 %v390
    %418 = vmatpush.msra.mxu0 %v387
    %419 = vmatpush.msra.mxu0 %v384
    %420 = vmatpush.msra.mxu0 %v381
    %421 = vmatpush.msra.mxu0 %v378
    %422 = vmatpush.msra.mxu0 %v375
    %423 = vmatpush.msra.mxu0 %v372
    %424 = vmatpush.msra.mxu0 %v369
    %425 = vmatpush.msra.mxu0 %v366
    %426 = vmatpush.msra.mxu0 %v363
    %427 = vmatmul.f32.gmra.mxu0 0.0
    %v428 = vpop.f32.mrf.mxu0
    %v429 = vadd.f32 0.0, %v428
    %430 = vdwg.mxu0
    %431 = vmatpush.msra.mxu0 %v409
    %432 = vmatpush.msra.mxu0 %v406
    %433 = vmatpush.msra.mxu0 %v403
    %434 = vmatpush.msra.mxu0 %v400
    %435 = vmatpush.msra.mxu0 %v397
    %436 = vmatpush.msra.mxu0 %v394
    %437 = vmatpush.msra.mxu0 %v391
    %438 = vmatpush.msra.mxu0 %v388
    %439 = vmatpush.msra.mxu0 %v385
    %440 = vmatpush.msra.mxu0 %v382
    %441 = vmatpush.msra.mxu0 %v379
    %442 = vmatpush.msra.mxu0 %v376
    %443 = vmatpush.msra.mxu0 %v373
    %444 = vmatpush.msra.mxu0 %v370
    %445 = vmatpush.msra.mxu0 %v367
    %446 = vmatpush.msra.mxu0 %v364
    %447 = vmatmul.f32.gmra.mxu0 0.0
    %v448 = vpop.f32.mrf.mxu0
    %v449 = vadd.f32 0.0, %v448
    %450 = vdwg.mxu0
    %451 = vmatpush.msra.mxu0 %v410
    %452 = vmatpush.msra.mxu0 %v407
    %453 = vmatpush.msra.mxu0 %v404
    %454 = vmatpush.msra.mxu0 %v401
    %455 = vmatpush.msra.mxu0 %v398
    %456 = vmatpush.msra.mxu0 %v395
    %457 = vmatpush.msra.mxu0 %v392
    %458 = vmatpush.msra.mxu0 %v389
    %459 = vmatpush.msra.mxu0 %v386
    %460 = vmatpush.msra.mxu0 %v383
    %461 = vmatpush.msra.mxu0 %v380
    %462 = vmatpush.msra.mxu0 %v377
    %463 = vmatpush.msra.mxu0 %v374
    %464 = vmatpush.msra.mxu0 %v371
    %465 = vmatpush.msra.mxu0 %v368
    %466 = vmatpush.msra.mxu0 %v365
    %467 = vmatmul.f32.gmra.mxu0 0.0
    %v468 = vpop.f32.mrf.mxu0
    %v469 = vadd.f32 0.0, %v468
    %470 = vdwg.mxu0
    %v471 = vadd.f32 %v360, %v429
    %v472 = vadd.f32 %v361, %v449
    %v473 = vxor.u32 %v471, 2147483648
    %v474 = vxor.u32 %v472, 2147483648
    %v475 = vmul.f32 %v473, 1.442695
    %v476 = vpow.pop %v475
    %v477 = vmul.f32 %v474, 1.442695
    %v478 = vpow.pop %v477
    %v479 = vadd.f32 %v476, 1.0
    %v480 = vadd.f32 %v478, 1.0
    %v481 = vrcp.pop %v479
    %v482 = vmul.f32 %v479, %v481
    %v483 = vsub.f32 1.0, %v482
    %v484 = vmul.f32 %v481, %v483
    %v485 = vadd.f32 %v481, %v484
    %vm486 = vweird.f32 %v479
    %vm487 = vweird.f32 %v481
    %vm488 = vmor %vm486, %vm487
    %v489 = vsel %vm488, %v481, %v485
    %v490 = vand.u32 2147483647, %v479
    %vm491 = vcmp.eq.f32.partialorder %v490, 8.507059e+37
    %v492 = vand.u32 %v479, 2147483648
    %v493 = vor.u32 1.1754944e-38, %v492
    %v494 = vsel %vm491, %v493, %v489
    %v495 = vmul.f32 1.0, %v494
    %v496 = vrcp.pop %v480
    %v497 = vmul.f32 %v480, %v496
    %v498 = vsub.f32 1.0, %v497
    %v499 = vmul.f32 %v496, %v498
    %v500 = vadd.f32 %v496, %v499
    %vm501 = vweird.f32 %v480
    %vm502 = vweird.f32 %v496
    %vm503 = vmor %vm501, %vm502
    %v504 = vsel %vm503, %v496, %v500
    %v505 = vand.u32 2147483647, %v480
    %vm506 = vcmp.eq.f32.partialorder %v505, 8.507059e+37
    %v507 = vand.u32 %v480, 2147483648
    %v508 = vor.u32 1.1754944e-38, %v507
    %v509 = vsel %vm506, %v508, %v504
    %v510 = vmul.f32 1.0, %v509
    %v511 = vld [vmem:[%s4] sm:$0x1]
    %v513 = vperm.slane %v511, 0
    %v515 = vadd.f32 %v469, %v513
    %v516 = vmul.f32 %v495, %v515
    %v517 = vadd.f32 %v362, %v516
    %v518 = vtanh.pop %v517
    %v519 = vsub.f32 1.0, %v510
    %v520 = vmul.f32 %v519, %v518
    %v521 = vmul.f32 %v510, 0.0
    %v522 = vadd.f32 %v520, %v521
    %523 = vst [vmem:[#allocation3] sm:$0xff] %v522
    %s524 = smul.u32 1, 3
    %s525 = smul.addr %s524, 8
    %s526 = scalar_lea.vmem [#allocation2], %s525
    %v527 = vld [vmem:[%s526] sm:$0xff]
    %v528 = vld [vmem:[%s526 + $0x8] sm:$0xff]
    %v529 = vld [vmem:[%s526 + $0x10] sm:$0xff]
    %v530 = vld [vmem:[#allocation9] sm:$0xff]
    %v531 = vld [vmem:[#allocation9 + $0x8] sm:$0xff]
    %v532 = vld [vmem:[#allocation9 + $0x10] sm:$0xff]
    %v533 = vld [vmem:[#allocation9 + $0x18] sm:$0xff]
    %v534 = vld [vmem:[#allocation9 + $0x20] sm:$0xff]
    %v535 = vld [vmem:[#allocation9 + $0x28] sm:$0xff]
    %v536 = vld [vmem:[#allocation9 + $0x30] sm:$0xff]
    %v537 = vld [vmem:[#allocation9 + $0x38] sm:$0xff]
    %v538 = vld [vmem:[#allocation9 + $0x40] sm:$0xff]
    %v539 = vld [vmem:[#allocation9 + $0x48] sm:$0xff]
    %v540 = vld [vmem:[#allocation9 + $0x50] sm:$0xff]
    %v541 = vld [vmem:[#allocation9 + $0x58] sm:$0xff]
    %v542 = vld [vmem:[#allocation9 + $0x60] sm:$0xff]
    %v543 = vld [vmem:[#allocation9 + $0x68] sm:$0xff]
    %v544 = vld [vmem:[#allocation9 + $0x70] sm:$0xff]
    %v545 = vld [vmem:[#allocation9 + $0x78] sm:$0xff]
    %v546 = vld [vmem:[#allocation9 + $0x80] sm:$0xff]
    %v547 = vld [vmem:[#allocation9 + $0x88] sm:$0xff]
    %v548 = vld [vmem:[#allocation9 + $0x90] sm:$0xff]
    %v549 = vld [vmem:[#allocation9 + $0x98] sm:$0xff]
    %v550 = vld [vmem:[#allocation9 + $0xa0] sm:$0xff]
    %v551 = vld [vmem:[#allocation9 + $0xa8] sm:$0xff]
    %v552 = vld [vmem:[#allocation9 + $0xb0] sm:$0xff]
    %v553 = vld [vmem:[#allocation9 + $0xb8] sm:$0xff]
    %v554 = vld [vmem:[#allocation9 + $0xc0] sm:$0xff]
    %v555 = vld [vmem:[#allocation9 + $0xc8] sm:$0xff]
    %v556 = vld [vmem:[#allocation9 + $0xd0] sm:$0xff]
    %v557 = vld [vmem:[#allocation9 + $0xd8] sm:$0xff]
    %v558 = vld [vmem:[#allocation9 + $0xe0] sm:$0xff]
    %v559 = vld [vmem:[#allocation9 + $0xe8] sm:$0xff]
    %v560 = vld [vmem:[#allocation9 + $0xf0] sm:$0xff]
    %v561 = vld [vmem:[#allocation9 + $0xf8] sm:$0xff]
    %v562 = vld [vmem:[#allocation9 + $0x100] sm:$0xff]
    %v563 = vld [vmem:[#allocation9 + $0x108] sm:$0xff]
    %v564 = vld [vmem:[#allocation9 + $0x110] sm:$0xff]
    %v565 = vld [vmem:[#allocation9 + $0x118] sm:$0xff]
    %v566 = vld [vmem:[#allocation9 + $0x120] sm:$0xff]
    %v567 = vld [vmem:[#allocation9 + $0x128] sm:$0xff]
    %v568 = vld [vmem:[#allocation9 + $0x130] sm:$0xff]
    %v569 = vld [vmem:[#allocation9 + $0x138] sm:$0xff]
    %v570 = vld [vmem:[#allocation9 + $0x140] sm:$0xff]
    %v571 = vld [vmem:[#allocation9 + $0x148] sm:$0xff]
    %v572 = vld [vmem:[#allocation9 + $0x150] sm:$0xff]
    %v573 = vld [vmem:[#allocation9 + $0x158] sm:$0xff]
    %v574 = vld [vmem:[#allocation9 + $0x160] sm:$0xff]
    %v575 = vld [vmem:[#allocation9 + $0x168] sm:$0xff]
    %v576 = vld [vmem:[#allocation9 + $0x170] sm:$0xff]
    %v577 = vld [vmem:[#allocation9 + $0x178] sm:$0xff]
    %578 = vmatpush.msra.mxu0 %v575
    %579 = vmatpush.msra.mxu0 %v572
    %580 = vmatpush.msra.mxu0 %v569
    %581 = vmatpush.msra.mxu0 %v566
    %582 = vmatpush.msra.mxu0 %v563
    %583 = vmatpush.msra.mxu0 %v560
    %584 = vmatpush.msra.mxu0 %v557
    %585 = vmatpush.msra.mxu0 %v554
    %586 = vmatpush.msra.mxu0 %v551
    %587 = vmatpush.msra.mxu0 %v548
    %588 = vmatpush.msra.mxu0 %v545
    %589 = vmatpush.msra.mxu0 %v542
    %590 = vmatpush.msra.mxu0 %v539
    %591 = vmatpush.msra.mxu0 %v536
    %592 = vmatpush.msra.mxu0 %v533
    %593 = vmatpush.msra.mxu0 %v530
    %594 = vmatmul.f32.gmra.mxu0 %v522
    %v595 = vpop.f32.mrf.mxu0
    %v596 = vadd.f32 0.0, %v595
    %597 = vdwg.mxu0
    %598 = vmatpush.msra.mxu0 %v576
    %599 = vmatpush.msra.mxu0 %v573
    %600 = vmatpush.msra.mxu0 %v570
    %601 = vmatpush.msra.mxu0 %v567
    %602 = vmatpush.msra.mxu0 %v564
    %603 = vmatpush.msra.mxu0 %v561
    %604 = vmatpush.msra.mxu0 %v558
    %605 = vmatpush.msra.mxu0 %v555
    %606 = vmatpush.msra.mxu0 %v552
    %607 = vmatpush.msra.mxu0 %v549
    %608 = vmatpush.msra.mxu0 %v546
    %609 = vmatpush.msra.mxu0 %v543
    %610 = vmatpush.msra.mxu0 %v540
    %611 = vmatpush.msra.mxu0 %v537
    %612 = vmatpush.msra.mxu0 %v534
    %613 = vmatpush.msra.mxu0 %v531
    %614 = vmatmul.f32.gmra.mxu0 %v522
    %v615 = vpop.f32.mrf.mxu0
    %v616 = vadd.f32 0.0, %v615
    %617 = vdwg.mxu0
    %618 = vmatpush.msra.mxu0 %v577
    %619 = vmatpush.msra.mxu0 %v574
    %620 = vmatpush.msra.mxu0 %v571
    %621 = vmatpush.msra.mxu0 %v568
    %622 = vmatpush.msra.mxu0 %v565
    %623 = vmatpush.msra.mxu0 %v562
    %624 = vmatpush.msra.mxu0 %v559
    %625 = vmatpush.msra.mxu0 %v556
    %626 = vmatpush.msra.mxu0 %v553
    %627 = vmatpush.msra.mxu0 %v550
    %628 = vmatpush.msra.mxu0 %v547
    %629 = vmatpush.msra.mxu0 %v544
    %630 = vmatpush.msra.mxu0 %v541
    %631 = vmatpush.msra.mxu0 %v538
    %632 = vmatpush.msra.mxu0 %v535
    %633 = vmatpush.msra.mxu0 %v532
    %634 = vmatmul.f32.gmra.mxu0 %v522
    %v635 = vpop.f32.mrf.mxu0
    %v636 = vadd.f32 0.0, %v635
    %637 = vdwg.mxu0
    %v638 = vadd.f32 %v527, %v596
    %v639 = vadd.f32 %v528, %v616
    %v640 = vxor.u32 %v638, 2147483648
    %v641 = vxor.u32 %v639, 2147483648
    %v642 = vmul.f32 %v640, 1.442695
    %v643 = vpow.pop %v642
    %v644 = vmul.f32 %v641, 1.442695
    %v645 = vpow.pop %v644
    %v646 = vadd.f32 %v643, 1.0
    %v647 = vadd.f32 %v645, 1.0
    %v648 = vrcp.pop %v646
    %v649 = vmul.f32 %v646, %v648
    %v650 = vsub.f32 1.0, %v649
    %v651 = vmul.f32 %v648, %v650
    %v652 = vadd.f32 %v648, %v651
    %vm653 = vweird.f32 %v646
    %vm654 = vweird.f32 %v648
    %vm655 = vmor %vm653, %vm654
    %v656 = vsel %vm655, %v648, %v652
    %v657 = vand.u32 2147483647, %v646
    %vm658 = vcmp.eq.f32.partialorder %v657, 8.507059e+37
    %v659 = vand.u32 %v646, 2147483648
    %v660 = vor.u32 1.1754944e-38, %v659
    %v661 = vsel %vm658, %v660, %v656
    %v662 = vmul.f32 1.0, %v661
    %v663 = vrcp.pop %v647
    %v664 = vmul.f32 %v647, %v663
    %v665 = vsub.f32 1.0, %v664
    %v666 = vmul.f32 %v663, %v665
    %v667 = vadd.f32 %v663, %v666
    %vm668 = vweird.f32 %v647
    %vm669 = vweird.f32 %v663
    %vm670 = vmor %vm668, %vm669
    %v671 = vsel %vm670, %v663, %v667
    %v672 = vand.u32 2147483647, %v647
    %vm673 = vcmp.eq.f32.partialorder %v672, 8.507059e+37
    %v674 = vand.u32 %v647, 2147483648
    %v675 = vor.u32 1.1754944e-38, %v674
    %v676 = vsel %vm673, %v675, %v671
    %v677 = vmul.f32 1.0, %v676
    %v678 = vld [vmem:[%s4] sm:$0x1]
    %v680 = vperm.slane %v678, 0
    %v682 = vadd.f32 %v636, %v680
    %v683 = vmul.f32 %v662, %v682
    %v684 = vadd.f32 %v529, %v683
    %v685 = vtanh.pop %v684
    %v686 = vsub.f32 1.0, %v677
    %v687 = vmul.f32 %v686, %v685
    %v688 = vmul.f32 %v677, %v522
    %v689 = vadd.f32 %v687, %v688
    %s690 = scalar_lea.vmem [#allocation3], 8
    %691 = vst [vmem:[%s690] sm:$0xff] %v689
    %s692 = smul.u32 2, 3
    %s693 = smul.addr %s692, 8
    %s694 = scalar_lea.vmem [#allocation2], %s693
    %v695 = vld [vmem:[%s694] sm:$0xff]
    %v696 = vld [vmem:[%s694 + $0x8] sm:$0xff]
    %v697 = vld [vmem:[%s694 + $0x10] sm:$0xff]
    %v698 = vld [vmem:[#allocation9] sm:$0xff]
    %v699 = vld [vmem:[#allocation9 + $0x8] sm:$0xff]
    %v700 = vld [vmem:[#allocation9 + $0x10] sm:$0xff]
    %v701 = vld [vmem:[#allocation9 + $0x18] sm:$0xff]
    %v702 = vld [vmem:[#allocation9 + $0x20] sm:$0xff]
    %v703 = vld [vmem:[#allocation9 + $0x28] sm:$0xff]
    %v704 = vld [vmem:[#allocation9 + $0x30] sm:$0xff]
    %v705 = vld [vmem:[#allocation9 + $0x38] sm:$0xff]
    %v706 = vld [vmem:[#allocation9 + $0x40] sm:$0xff]
    %v707 = vld [vmem:[#allocation9 + $0x48] sm:$0xff]
    %v708 = vld [vmem:[#allocation9 + $0x50] sm:$0xff]
    %v709 = vld [vmem:[#allocation9 + $0x58] sm:$0xff]
    %v710 = vld [vmem:[#allocation9 + $0x60] sm:$0xff]
    %v711 = vld [vmem:[#allocation9 + $0x68] sm:$0xff]
    %v712 = vld [vmem:[#allocation9 + $0x70] sm:$0xff]
    %v713 = vld [vmem:[#allocation9 + $0x78] sm:$0xff]
    %v714 = vld [vmem:[#allocation9 + $0x80] sm:$0xff]
    %v715 = vld [vmem:[#allocation9 + $0x88] sm:$0xff]
    %v716 = vld [vmem:[#allocation9 + $0x90] sm:$0xff]
    %v717 = vld [vmem:[#allocation9 + $0x98] sm:$0xff]
    %v718 = vld [vmem:[#allocation9 + $0xa0] sm:$0xff]
    %v719 = vld [vmem:[#allocation9 + $0xa8] sm:$0xff]
    %v720 = vld [vmem:[#allocation9 + $0xb0] sm:$0xff]
    %v721 = vld [vmem:[#allocation9 + $0xb8] sm:$0xff]
    %v722 = vld [vmem:[#allocation9 + $0xc0] sm:$0xff]
    %v723 = vld [vmem:[#allocation9 + $0xc8] sm:$0xff]
    %v724 = vld [vmem:[#allocation9 + $0xd0] sm:$0xff]
    %v725 = vld [vmem:[#allocation9 + $0xd8] sm:$0xff]
    %v726 = vld [vmem:[#allocation9 + $0xe0] sm:$0xff]
    %v727 = vld [vmem:[#allocation9 + $0xe8] sm:$0xff]
    %v728 = vld [vmem:[#allocation9 + $0xf0] sm:$0xff]
    %v729 = vld [vmem:[#allocation9 + $0xf8] sm:$0xff]
    %v730 = vld [vmem:[#allocation9 + $0x100] sm:$0xff]
    %v731 = vld [vmem:[#allocation9 + $0x108] sm:$0xff]
    %v732 = vld [vmem:[#allocation9 + $0x110] sm:$0xff]
    %v733 = vld [vmem:[#allocation9 + $0x118] sm:$0xff]
    %v734 = vld [vmem:[#allocation9 + $0x120] sm:$0xff]
    %v735 = vld [vmem:[#allocation9 + $0x128] sm:$0xff]
    %v736 = vld [vmem:[#allocation9 + $0x130] sm:$0xff]
    %v737 = vld [vmem:[#allocation9 + $0x138] sm:$0xff]
    %v738 = vld [vmem:[#allocation9 + $0x140] sm:$0xff]
    %v739 = vld [vmem:[#allocation9 + $0x148] sm:$0xff]
    %v740 = vld [vmem:[#allocation9 + $0x150] sm:$0xff]
    %v741 = vld [vmem:[#allocation9 + $0x158] sm:$0xff]
    %v742 = vld [vmem:[#allocation9 + $0x160] sm:$0xff]
    %v743 = vld [vmem:[#allocation9 + $0x168] sm:$0xff]
    %v744 = vld [vmem:[#allocation9 + $0x170] sm:$0xff]
    %v745 = vld [vmem:[#allocation9 + $0x178] sm:$0xff]
    %746 = vmatpush.msra.mxu0 %v743
    %747 = vmatpush.msra.mxu0 %v740
    %748 = vmatpush.msra.mxu0 %v737
    %749 = vmatpush.msra.mxu0 %v734
    %750 = vmatpush.msra.mxu0 %v731
    %751 = vmatpush.msra.mxu0 %v728
    %752 = vmatpush.msra.mxu0 %v725
    %753 = vmatpush.msra.mxu0 %v722
    %754 = vmatpush.msra.mxu0 %v719
    %755 = vmatpush.msra.mxu0 %v716
    %756 = vmatpush.msra.mxu0 %v713
    %757 = vmatpush.msra.mxu0 %v710
    %758 = vmatpush.msra.mxu0 %v707
    %759 = vmatpush.msra.mxu0 %v704
    %760 = vmatpush.msra.mxu0 %v701
    %761 = vmatpush.msra.mxu0 %v698
    %762 = vmatmul.f32.gmra.mxu0 %v689
    %v763 = vpop.f32.mrf.mxu0
    %v764 = vadd.f32 0.0, %v763
    %765 = vdwg.mxu0
    %766 = vmatpush.msra.mxu0 %v744
    %767 = vmatpush.msra.mxu0 %v741
    %768 = vmatpush.msra.mxu0 %v738
    %769 = vmatpush.msra.mxu0 %v735
    %770 = vmatpush.msra.mxu0 %v732
    %771 = vmatpush.msra.mxu0 %v729
    %772 = vmatpush.msra.mxu0 %v726
    %773 = vmatpush.msra.mxu0 %v723
    %774 = vmatpush.msra.mxu0 %v720
    %775 = vmatpush.msra.mxu0 %v717
    %776 = vmatpush.msra.mxu0 %v714
    %777 = vmatpush.msra.mxu0 %v711
    %778 = vmatpush.msra.mxu0 %v708
    %779 = vmatpush.msra.mxu0 %v705
    %780 = vmatpush.msra.mxu0 %v702
    %781 = vmatpush.msra.mxu0 %v699
    %782 = vmatmul.f32.gmra.mxu0 %v689
    %v783 = vpop.f32.mrf.mxu0
    %v784 = vadd.f32 0.0, %v783
    %785 = vdwg.mxu0
    %786 = vmatpush.msra.mxu0 %v745
    %787 = vmatpush.msra.mxu0 %v742
    %788 = vmatpush.msra.mxu0 %v739
    %789 = vmatpush.msra.mxu0 %v736
    %790 = vmatpush.msra.mxu0 %v733
    %791 = vmatpush.msra.mxu0 %v730
    %792 = vmatpush.msra.mxu0 %v727
    %793 = vmatpush.msra.mxu0 %v724
    %794 = vmatpush.msra.mxu0 %v721
    %795 = vmatpush.msra.mxu0 %v718
    %796 = vmatpush.msra.mxu0 %v715
    %797 = vmatpush.msra.mxu0 %v712
    %798 = vmatpush.msra.mxu0 %v709
    %799 = vmatpush.msra.mxu0 %v706
    %800 = vmatpush.msra.mxu0 %v703
    %801 = vmatpush.msra.mxu0 %v700
    %802 = vmatmul.f32.gmra.mxu0 %v689
    %v803 = vpop.f32.mrf.mxu0
    %v804 = vadd.f32 0.0, %v803
    %805 = vdwg.mxu0
    %v806 = vadd.f32 %v695, %v764
    %v807 = vadd.f32 %v696, %v784
    %v808 = vxor.u32 %v806, 2147483648
    %v809 = vxor.u32 %v807, 2147483648
    %v810 = vmul.f32 %v808, 1.442695
    %v811 = vpow.pop %v810
    %v812 = vmul.f32 %v809, 1.442695
    %v813 = vpow.pop %v812
    %v814 = vadd.f32 %v811, 1.0
    %v815 = vadd.f32 %v813, 1.0
    %v816 = vrcp.pop %v814
    %v817 = vmul.f32 %v814, %v816
    %v818 = vsub.f32 1.0, %v817
    %v819 = vmul.f32 %v816, %v818
    %v820 = vadd.f32 %v816, %v819
    %vm821 = vweird.f32 %v814
    %vm822 = vweird.f32 %v816
    %vm823 = vmor %vm821, %vm822
    %v824 = vsel %vm823, %v816, %v820
    %v825 = vand.u32 2147483647, %v814
    %vm826 = vcmp.eq.f32.partialorder %v825, 8.507059e+37
    %v827 = vand.u32 %v814, 2147483648
    %v828 = vor.u32 1.1754944e-38, %v827
    %v829 = vsel %vm826, %v828, %v824
    %v830 = vmul.f32 1.0, %v829
    %v831 = vrcp.pop %v815
    %v832 = vmul.f32 %v815, %v831
    %v833 = vsub.f32 1.0, %v832
    %v834 = vmul.f32 %v831, %v833
    %v835 = vadd.f32 %v831, %v834
    %vm836 = vweird.f32 %v815
    %vm837 = vweird.f32 %v831
    %vm838 = vmor %vm836, %vm837
    %v839 = vsel %vm838, %v831, %v835
    %v840 = vand.u32 2147483647, %v815
    %vm841 = vcmp.eq.f32.partialorder %v840, 8.507059e+37
    %v842 = vand.u32 %v815, 2147483648
    %v843 = vor.u32 1.1754944e-38, %v842
    %v844 = vsel %vm841, %v843, %v839
    %v845 = vmul.f32 1.0, %v844
    %v846 = vld [vmem:[%s4] sm:$0x1]
    %v848 = vperm.slane %v846, 0
    %v850 = vadd.f32 %v804, %v848
    %v851 = vmul.f32 %v830, %v850
    %v852 = vadd.f32 %v697, %v851
    %v853 = vtanh.pop %v852
    %v854 = vsub.f32 1.0, %v845
    %v855 = vmul.f32 %v854, %v853
    %v856 = vmul.f32 %v845, %v689
    %v857 = vadd.f32 %v855, %v856
    %s858 = scalar_lea.vmem [#allocation3], 16
    %859 = vst [vmem:[%s858] sm:$0xff] %v857
    %s860 = smul.u32 3, 3
    %s861 = smul.addr %s860, 8
    %s862 = scalar_lea.vmem [#allocation2], %s861
    %v863 = vld [vmem:[%s862] sm:$0xff]
    %v864 = vld [vmem:[%s862 + $0x8] sm:$0xff]
    %v865 = vld [vmem:[%s862 + $0x10] sm:$0xff]
    %v866 = vld [vmem:[#allocation9] sm:$0xff]
    %v867 = vld [vmem:[#allocation9 + $0x8] sm:$0xff]
    %v868 = vld [vmem:[#allocation9 + $0x10] sm:$0xff]
    %v869 = vld [vmem:[#allocation9 + $0x18] sm:$0xff]
    %v870 = vld [vmem:[#allocation9 + $0x20] sm:$0xff]
    %v871 = vld [vmem:[#allocation9 + $0x28] sm:$0xff]
    %v872 = vld [vmem:[#allocation9 + $0x30] sm:$0xff]
    %v873 = vld [vmem:[#allocation9 + $0x38] sm:$0xff]
    %v874 = vld [vmem:[#allocation9 + $0x40] sm:$0xff]
    %v875 = vld [vmem:[#allocation9 + $0x48] sm:$0xff]
    %v876 = vld [vmem:[#allocation9 + $0x50] sm:$0xff]
    %v877 = vld [vmem:[#allocation9 + $0x58] sm:$0xff]
    %v878 = vld [vmem:[#allocation9 + $0x60] sm:$0xff]
    %v879 = vld [vmem:[#allocation9 + $0x68] sm:$0xff]
    %v880 = vld [vmem:[#allocation9 + $0x70] sm:$0xff]
    %v881 = vld [vmem:[#allocation9 + $0x78] sm:$0xff]
    %v882 = vld [vmem:[#allocation9 + $0x80] sm:$0xff]
    %v883 = vld [vmem:[#allocation9 + $0x88] sm:$0xff]
    %v884 = vld [vmem:[#allocation9 + $0x90] sm:$0xff]
    %v885 = vld [vmem:[#allocation9 + $0x98] sm:$0xff]
    %v886 = vld [vmem:[#allocation9 + $0xa0] sm:$0xff]
    %v887 = vld [vmem:[#allocation9 + $0xa8] sm:$0xff]
    %v888 = vld [vmem:[#allocation9 + $0xb0] sm:$0xff]
    %v889 = vld [vmem:[#allocation9 + $0xb8] sm:$0xff]
    %v890 = vld [vmem:[#allocation9 + $0xc0] sm:$0xff]
    %v891 = vld [vmem:[#allocation9 + $0xc8] sm:$0xff]
    %v892 = vld [vmem:[#allocation9 + $0xd0] sm:$0xff]
    %v893 = vld [vmem:[#allocation9 + $0xd8] sm:$0xff]
    %v894 = vld [vmem:[#allocation9 + $0xe0] sm:$0xff]
    %v895 = vld [vmem:[#allocation9 + $0xe8] sm:$0xff]
    %v896 = vld [vmem:[#allocation9 + $0xf0] sm:$0xff]
    %v897 = vld [vmem:[#allocation9 + $0xf8] sm:$0xff]
    %v898 = vld [vmem:[#allocation9 + $0x100] sm:$0xff]
    %v899 = vld [vmem:[#allocation9 + $0x108] sm:$0xff]
    %v900 = vld [vmem:[#allocation9 + $0x110] sm:$0xff]
    %v901 = vld [vmem:[#allocation9 + $0x118] sm:$0xff]
    %v902 = vld [vmem:[#allocation9 + $0x120] sm:$0xff]
    %v903 = vld [vmem:[#allocation9 + $0x128] sm:$0xff]
    %v904 = vld [vmem:[#allocation9 + $0x130] sm:$0xff]
    %v905 = vld [vmem:[#allocation9 + $0x138] sm:$0xff]
    %v906 = vld [vmem:[#allocation9 + $0x140] sm:$0xff]
    %v907 = vld [vmem:[#allocation9 + $0x148] sm:$0xff]
    %v908 = vld [vmem:[#allocation9 + $0x150] sm:$0xff]
    %v909 = vld [vmem:[#allocation9 + $0x158] sm:$0xff]
    %v910 = vld [vmem:[#allocation9 + $0x160] sm:$0xff]
    %v911 = vld [vmem:[#allocation9 + $0x168] sm:$0xff]
    %v912 = vld [vmem:[#allocation9 + $0x170] sm:$0xff]
    %v913 = vld [vmem:[#allocation9 + $0x178] sm:$0xff]
    %914 = vmatpush.msra.mxu0 %v911
    %915 = vmatpush.msra.mxu0 %v908
    %916 = vmatpush.msra.mxu0 %v905
    %917 = vmatpush.msra.mxu0 %v902
    %918 = vmatpush.msra.mxu0 %v899
    %919 = vmatpush.msra.mxu0 %v896
    %920 = vmatpush.msra.mxu0 %v893
    %921 = vmatpush.msra.mxu0 %v890
    %922 = vmatpush.msra.mxu0 %v887
    %923 = vmatpush.msra.mxu0 %v884
    %924 = vmatpush.msra.mxu0 %v881
    %925 = vmatpush.msra.mxu0 %v878
    %926 = vmatpush.msra.mxu0 %v875
    %927 = vmatpush.msra.mxu0 %v872
    %928 = vmatpush.msra.mxu0 %v869
    %929 = vmatpush.msra.mxu0 %v866
    %930 = vmatmul.f32.gmra.mxu0 %v857
    %v931 = vpop.f32.mrf.mxu0
    %v932 = vadd.f32 0.0, %v931
    %933 = vdwg.mxu0
    %934 = vmatpush.msra.mxu0 %v912
    %935 = vmatpush.msra.mxu0 %v909
    %936 = vmatpush.msra.mxu0 %v906
    %937 = vmatpush.msra.mxu0 %v903
    %938 = vmatpush.msra.mxu0 %v900
    %939 = vmatpush.msra.mxu0 %v897
    %940 = vmatpush.msra.mxu0 %v894
    %941 = vmatpush.msra.mxu0 %v891
    %942 = vmatpush.msra.mxu0 %v888
    %943 = vmatpush.msra.mxu0 %v885
    %944 = vmatpush.msra.mxu0 %v882
    %945 = vmatpush.msra.mxu0 %v879
    %946 = vmatpush.msra.mxu0 %v876
    %947 = vmatpush.msra.mxu0 %v873
    %948 = vmatpush.msra.mxu0 %v870
    %949 = vmatpush.msra.mxu0 %v867
    %950 = vmatmul.f32.gmra.mxu0 %v857
    %v951 = vpop.f32.mrf.mxu0
    %v952 = vadd.f32 0.0, %v951
    %953 = vdwg.mxu0
    %954 = vmatpush.msra.mxu0 %v913
    %955 = vmatpush.msra.mxu0 %v910
    %956 = vmatpush.msra.mxu0 %v907
    %957 = vmatpush.msra.mxu0 %v904
    %958 = vmatpush.msra.mxu0 %v901
    %959 = vmatpush.msra.mxu0 %v898
    %960 = vmatpush.msra.mxu0 %v895
    %961 = vmatpush.msra.mxu0 %v892
    %962 = vmatpush.msra.mxu0 %v889
    %963 = vmatpush.msra.mxu0 %v886
    %964 = vmatpush.msra.mxu0 %v883
    %965 = vmatpush.msra.mxu0 %v880
    %966 = vmatpush.msra.mxu0 %v877
    %967 = vmatpush.msra.mxu0 %v874
    %968 = vmatpush.msra.mxu0 %v871
    %969 = vmatpush.msra.mxu0 %v868
    %970 = vmatmul.f32.gmra.mxu0 %v857
    %v971 = vpop.f32.mrf.mxu0
    %v972 = vadd.f32 0.0, %v971
    %973 = vdwg.mxu0
    %v974 = vadd.f32 %v863, %v932
    %v975 = vadd.f32 %v864, %v952
    %v976 = vxor.u32 %v974, 2147483648
    %v977 = vxor.u32 %v975, 2147483648
    %v978 = vmul.f32 %v976, 1.442695
    %v979 = vpow.pop %v978
    %v980 = vmul.f32 %v977, 1.442695
    %v981 = vpow.pop %v980
    %v982 = vadd.f32 %v979, 1.0
    %v983 = vadd.f32 %v981, 1.0
    %v984 = vrcp.pop %v982
    %v985 = vmul.f32 %v982, %v984
    %v986 = vsub.f32 1.0, %v985
    %v987 = vmul.f32 %v984, %v986
    %v988 = vadd.f32 %v984, %v987
    %vm989 = vweird.f32 %v982
    %vm990 = vweird.f32 %v984
    %vm991 = vmor %vm989, %vm990
    %v992 = vsel %vm991, %v984, %v988
    %v993 = vand.u32 2147483647, %v982
    %vm994 = vcmp.eq.f32.partialorder %v993, 8.507059e+37
    %v995 = vand.u32 %v982, 2147483648
    %v996 = vor.u32 1.1754944e-38, %v995
    %v997 = vsel %vm994, %v996, %v992
    %v998 = vmul.f32 1.0, %v997
    %v999 = vrcp.pop %v983
    %v1000 = vmul.f32 %v983, %v999
    %v1001 = vsub.f32 1.0, %v1000
    %v1002 = vmul.f32 %v999, %v1001
    %v1003 = vadd.f32 %v999, %v1002
    %vm1004 = vweird.f32 %v983
    %vm1005 = vweird.f32 %v999
    %vm1006 = vmor %vm1004, %vm1005
    %v1007 = vsel %vm1006, %v999, %v1003
    %v1008 = vand.u32 2147483647, %v983
    %vm1009 = vcmp.eq.f32.partialorder %v1008, 8.507059e+37
    %v1010 = vand.u32 %v983, 2147483648
    %v1011 = vor.u32 1.1754944e-38, %v1010
    %v1012 = vsel %vm1009, %v1011, %v1007
    %v1013 = vmul.f32 1.0, %v1012
    %v1014 = vld [vmem:[%s4] sm:$0x1]
    %v1016 = vperm.slane %v1014, 0
    %v1018 = vadd.f32 %v972, %v1016
    %v1019 = vmul.f32 %v998, %v1018
    %v1020 = vadd.f32 %v865, %v1019
    %v1021 = vtanh.pop %v1020
    %v1022 = vsub.f32 1.0, %v1013
    %v1023 = vmul.f32 %v1022, %v1021
    %v1024 = vmul.f32 %v1013, %v857
    %v1025 = vadd.f32 %v1023, %v1024
    %s1026 = scalar_lea.vmem [#allocation3], 24
    %1027 = vst [vmem:[%s1026] sm:$0xff] %v1025
    %s1028 = smul.u32 4, 3
    %s1029 = smul.addr %s1028, 8
    %s1030 = scalar_lea.vmem [#allocation2], %s1029
    %v1031 = vld [vmem:[%s1030] sm:$0xff]
    %v1032 = vld [vmem:[%s1030 + $0x8] sm:$0xff]
    %v1033 = vld [vmem:[%s1030 + $0x10] sm:$0xff]
    %v1034 = vld [vmem:[#allocation9] sm:$0xff]
    %v1035 = vld [vmem:[#allocation9 + $0x8] sm:$0xff]
    %v1036 = vld [vmem:[#allocation9 + $0x10] sm:$0xff]
    %v1037 = vld [vmem:[#allocation9 + $0x18] sm:$0xff]
    %v1038 = vld [vmem:[#allocation9 + $0x20] sm:$0xff]
    %v1039 = vld [vmem:[#allocation9 + $0x28] sm:$0xff]
    %v1040 = vld [vmem:[#allocation9 + $0x30] sm:$0xff]
    %v1041 = vld [vmem:[#allocation9 + $0x38] sm:$0xff]
    %v1042 = vld [vmem:[#allocation9 + $0x40] sm:$0xff]
    %v1043 = vld [vmem:[#allocation9 + $0x48] sm:$0xff]
    %v1044 = vld [vmem:[#allocation9 + $0x50] sm:$0xff]
    %v1045 = vld [vmem:[#allocation9 + $0x58] sm:$0xff]
    %v1046 = vld [vmem:[#allocation9 + $0x60] sm:$0xff]
    %v1047 = vld [vmem:[#allocation9 + $0x68] sm:$0xff]
    %v1048 = vld [vmem:[#allocation9 + $0x70] sm:$0xff]
    %v1049 = vld [vmem:[#allocation9 + $0x78] sm:$0xff]
    %v1050 = vld [vmem:[#allocation9 + $0x80] sm:$0xff]
    %v1051 = vld [vmem:[#allocation9 + $0x88] sm:$0xff]
    %v1052 = vld [vmem:[#allocation9 + $0x90] sm:$0xff]
    %v1053 = vld [vmem:[#allocation9 + $0x98] sm:$0xff]
    %v1054 = vld [vmem:[#allocation9 + $0xa0] sm:$0xff]
    %v1055 = vld [vmem:[#allocation9 + $0xa8] sm:$0xff]
    %v1056 = vld [vmem:[#allocation9 + $0xb0] sm:$0xff]
    %v1057 = vld [vmem:[#allocation9 + $0xb8] sm:$0xff]
    %v1058 = vld [vmem:[#allocation9 + $0xc0] sm:$0xff]
    %v1059 = vld [vmem:[#allocation9 + $0xc8] sm:$0xff]
    %v1060 = vld [vmem:[#allocation9 + $0xd0] sm:$0xff]
    %v1061 = vld [vmem:[#allocation9 + $0xd8] sm:$0xff]
    %v1062 = vld [vmem:[#allocation9 + $0xe0] sm:$0xff]
    %v1063 = vld [vmem:[#allocation9 + $0xe8] sm:$0xff]
    %v1064 = vld [vmem:[#allocation9 + $0xf0] sm:$0xff]
    %v1065 = vld [vmem:[#allocation9 + $0xf8] sm:$0xff]
    %v1066 = vld [vmem:[#allocation9 + $0x100] sm:$0xff]
    %v1067 = vld [vmem:[#allocation9 + $0x108] sm:$0xff]
    %v1068 = vld [vmem:[#allocation9 + $0x110] sm:$0xff]
    %v1069 = vld [vmem:[#allocation9 + $0x118] sm:$0xff]
    %v1070 = vld [vmem:[#allocation9 + $0x120] sm:$0xff]
    %v1071 = vld [vmem:[#allocation9 + $0x128] sm:$0xff]
    %v1072 = vld [vmem:[#allocation9 + $0x130] sm:$0xff]
    %v1073 = vld [vmem:[#allocation9 + $0x138] sm:$0xff]
    %v1074 = vld [vmem:[#allocation9 + $0x140] sm:$0xff]
    %v1075 = vld [vmem:[#allocation9 + $0x148] sm:$0xff]
    %v1076 = vld [vmem:[#allocation9 + $0x150] sm:$0xff]
    %v1077 = vld [vmem:[#allocation9 + $0x158] sm:$0xff]
    %v1078 = vld [vmem:[#allocation9 + $0x160] sm:$0xff]
    %v1079 = vld [vmem:[#allocation9 + $0x168] sm:$0xff]
    %v1080 = vld [vmem:[#allocation9 + $0x170] sm:$0xff]
    %v1081 = vld [vmem:[#allocation9 + $0x178] sm:$0xff]
    %1082 = vmatpush.msra.mxu0 %v1079
    %1083 = vmatpush.msra.mxu0 %v1076
    %1084 = vmatpush.msra.mxu0 %v1073
    %1085 = vmatpush.msra.mxu0 %v1070
    %1086 = vmatpush.msra.mxu0 %v1067
    %1087 = vmatpush.msra.mxu0 %v1064
    %1088 = vmatpush.msra.mxu0 %v1061
    %1089 = vmatpush.msra.mxu0 %v1058
    %1090 = vmatpush.msra.mxu0 %v1055
    %1091 = vmatpush.msra.mxu0 %v1052
    %1092 = vmatpush.msra.mxu0 %v1049
    %1093 = vmatpush.msra.mxu0 %v1046
    %1094 = vmatpush.msra.mxu0 %v1043
    %1095 = vmatpush.msra.mxu0 %v1040
    %1096 = vmatpush.msra.mxu0 %v1037
    %1097 = vmatpush.msra.mxu0 %v1034
    %1098 = vmatmul.f32.gmra.mxu0 %v1025
    %v1099 = vpop.f32.mrf.mxu0
    %v1100 = vadd.f32 0.0, %v1099
    %1101 = vdwg.mxu0
    %1102 = vmatpush.msra.mxu0 %v1080
    %1103 = vmatpush.msra.mxu0 %v1077
    %1104 = vmatpush.msra.mxu0 %v1074
    %1105 = vmatpush.msra.mxu0 %v1071
    %1106 = vmatpush.msra.mxu0 %v1068
    %1107 = vmatpush.msra.mxu0 %v1065
    %1108 = vmatpush.msra.mxu0 %v1062
    %1109 = vmatpush.msra.mxu0 %v1059
    %1110 = vmatpush.msra.mxu0 %v1056
    %1111 = vmatpush.msra.mxu0 %v1053
    %1112 = vmatpush.msra.mxu0 %v1050
    %1113 = vmatpush.msra.mxu0 %v1047
    %1114 = vmatpush.msra.mxu0 %v1044
    %1115 = vmatpush.msra.mxu0 %v1041
    %1116 = vmatpush.msra.mxu0 %v1038
    %1117 = vmatpush.msra.mxu0 %v1035
    %1118 = vmatmul.f32.gmra.mxu0 %v1025
    %v1119 = vpop.f32.mrf.mxu0
    %v1120 = vadd.f32 0.0, %v1119
    %1121 = vdwg.mxu0
    %1122 = vmatpush.msra.mxu0 %v1081
    %1123 = vmatpush.msra.mxu0 %v1078
    %1124 = vmatpush.msra.mxu0 %v1075
    %1125 = vmatpush.msra.mxu0 %v1072
    %1126 = vmatpush.msra.mxu0 %v1069
    %1127 = vmatpush.msra.mxu0 %v1066
    %1128 = vmatpush.msra.mxu0 %v1063
    %1129 = vmatpush.msra.mxu0 %v1060
    %1130 = vmatpush.msra.mxu0 %v1057
    %1131 = vmatpush.msra.mxu0 %v1054
    %1132 = vmatpush.msra.mxu0 %v1051
    %1133 = vmatpush.msra.mxu0 %v1048
    %1134 = vmatpush.msra.mxu0 %v1045
    %1135 = vmatpush.msra.mxu0 %v1042
    %1136 = vmatpush.msra.mxu0 %v1039
    %1137 = vmatpush.msra.mxu0 %v1036
    %1138 = vmatmul.f32.gmra.mxu0 %v1025
    %v1139 = vpop.f32.mrf.mxu0
    %v1140 = vadd.f32 0.0, %v1139
    %1141 = vdwg.mxu0
    %v1142 = vadd.f32 %v1031, %v1100
    %v1143 = vadd.f32 %v1032, %v1120
    %v1144 = vxor.u32 %v1142, 2147483648
    %v1145 = vxor.u32 %v1143, 2147483648
    %v1146 = vmul.f32 %v1144, 1.442695
    %v1147 = vpow.pop %v1146
    %v1148 = vmul.f32 %v1145, 1.442695
    %v1149 = vpow.pop %v1148
    %v1150 = vadd.f32 %v1147, 1.0
    %v1151 = vadd.f32 %v1149, 1.0
    %v1152 = vrcp.pop %v1150
    %v1153 = vmul.f32 %v1150, %v1152
    %v1154 = vsub.f32 1.0, %v1153
    %v1155 = vmul.f32 %v1152, %v1154
    %v1156 = vadd.f32 %v1152, %v1155
    %vm1157 = vweird.f32 %v1150
    %vm1158 = vweird.f32 %v1152
    %vm1159 = vmor %vm1157, %vm1158
    %v1160 = vsel %vm1159, %v1152, %v1156
    %v1161 = vand.u32 2147483647, %v1150
    %vm1162 = vcmp.eq.f32.partialorder %v1161, 8.507059e+37
    %v1163 = vand.u32 %v1150, 2147483648
    %v1164 = vor.u32 1.1754944e-38, %v1163
    %v1165 = vsel %vm1162, %v1164, %v1160
    %v1166 = vmul.f32 1.0, %v1165
    %v1167 = vrcp.pop %v1151
    %v1168 = vmul.f32 %v1151, %v1167
    %v1169 = vsub.f32 1.0, %v1168
    %v1170 = vmul.f32 %v1167, %v1169
    %v1171 = vadd.f32 %v1167, %v1170
    %vm1172 = vweird.f32 %v1151
    %vm1173 = vweird.f32 %v1167
    %vm1174 = vmor %vm1172, %vm1173
    %v1175 = vsel %vm1174, %v1167, %v1171
    %v1176 = vand.u32 2147483647, %v1151
    %vm1177 = vcmp.eq.f32.partialorder %v1176, 8.507059e+37
    %v1178 = vand.u32 %v1151, 2147483648
    %v1179 = vor.u32 1.1754944e-38, %v1178
    %v1180 = vsel %vm1177, %v1179, %v1175
    %v1181 = vmul.f32 1.0, %v1180
    %v1182 = vld [vmem:[%s4] sm:$0x1]
    %v1184 = vperm.slane %v1182, 0
    %v1186 = vadd.f32 %v1140, %v1184
    %v1187 = vmul.f32 %v1166, %v1186
    %v1188 = vadd.f32 %v1033, %v1187
    %v1189 = vtanh.pop %v1188
    %v1190 = vsub.f32 1.0, %v1181
    %v1191 = vmul.f32 %v1190, %v1189
    %v1192 = vmul.f32 %v1181, %v1025
    %v1193 = vadd.f32 %v1191, %v1192
    %s1194 = scalar_lea.vmem [#allocation3], 32
    %1195 = vst [vmem:[%s1194] sm:$0xff] %v1193
    %s1196 = smul.u32 5, 3
    %s1197 = smul.addr %s1196, 8
    %s1198 = scalar_lea.vmem [#allocation2], %s1197
    %v1199 = vld [vmem:[%s1198] sm:$0xff]
    %v1200 = vld [vmem:[%s1198 + $0x8] sm:$0xff]
    %v1201 = vld [vmem:[%s1198 + $0x10] sm:$0xff]
    %v1202 = vld [vmem:[#allocation9] sm:$0xff]
    %v1203 = vld [vmem:[#allocation9 + $0x8] sm:$0xff]
    %v1204 = vld [vmem:[#allocation9 + $0x10] sm:$0xff]
    %v1205 = vld [vmem:[#allocation9 + $0x18] sm:$0xff]
    %v1206 = vld [vmem:[#allocation9 + $0x20] sm:$0xff]
    %v1207 = vld [vmem:[#allocation9 + $0x28] sm:$0xff]
    %v1208 = vld [vmem:[#allocation9 + $0x30] sm:$0xff]
    %v1209 = vld [vmem:[#allocation9 + $0x38] sm:$0xff]
    %v1210 = vld [vmem:[#allocation9 + $0x40] sm:$0xff]
    %v1211 = vld [vmem:[#allocation9 + $0x48] sm:$0xff]
    %v1212 = vld [vmem:[#allocation9 + $0x50] sm:$0xff]
    %v1213 = vld [vmem:[#allocation9 + $0x58] sm:$0xff]
    %v1214 = vld [vmem:[#allocation9 + $0x60] sm:$0xff]
    %v1215 = vld [vmem:[#allocation9 + $0x68] sm:$0xff]
    %v1216 = vld [vmem:[#allocation9 + $0x70] sm:$0xff]
    %v1217 = vld [vmem:[#allocation9 + $0x78] sm:$0xff]
    %v1218 = vld [vmem:[#allocation9 + $0x80] sm:$0xff]
    %v1219 = vld [vmem:[#allocation9 + $0x88] sm:$0xff]
    %v1220 = vld [vmem:[#allocation9 + $0x90] sm:$0xff]
    %v1221 = vld [vmem:[#allocation9 + $0x98] sm:$0xff]
    %v1222 = vld [vmem:[#allocation9 + $0xa0] sm:$0xff]
    %v1223 = vld [vmem:[#allocation9 + $0xa8] sm:$0xff]
    %v1224 = vld [vmem:[#allocation9 + $0xb0] sm:$0xff]
    %v1225 = vld [vmem:[#allocation9 + $0xb8] sm:$0xff]
    %v1226 = vld [vmem:[#allocation9 + $0xc0] sm:$0xff]
    %v1227 = vld [vmem:[#allocation9 + $0xc8] sm:$0xff]
    %v1228 = vld [vmem:[#allocation9 + $0xd0] sm:$0xff]
    %v1229 = vld [vmem:[#allocation9 + $0xd8] sm:$0xff]
    %v1230 = vld [vmem:[#allocation9 + $0xe0] sm:$0xff]
    %v1231 = vld [vmem:[#allocation9 + $0xe8] sm:$0xff]
    %v1232 = vld [vmem:[#allocation9 + $0xf0] sm:$0xff]
    %v1233 = vld [vmem:[#allocation9 + $0xf8] sm:$0xff]
    %v1234 = vld [vmem:[#allocation9 + $0x100] sm:$0xff]
    %v1235 = vld [vmem:[#allocation9 + $0x108] sm:$0xff]
    %v1236 = vld [vmem:[#allocation9 + $0x110] sm:$0xff]
    %v1237 = vld [vmem:[#allocation9 + $0x118] sm:$0xff]
    %v1238 = vld [vmem:[#allocation9 + $0x120] sm:$0xff]
    %v1239 = vld [vmem:[#allocation9 + $0x128] sm:$0xff]
    %v1240 = vld [vmem:[#allocation9 + $0x130] sm:$0xff]
    %v1241 = vld [vmem:[#allocation9 + $0x138] sm:$0xff]
    %v1242 = vld [vmem:[#allocation9 + $0x140] sm:$0xff]
    %v1243 = vld [vmem:[#allocation9 + $0x148] sm:$0xff]
    %v1244 = vld [vmem:[#allocation9 + $0x150] sm:$0xff]
    %v1245 = vld [vmem:[#allocation9 + $0x158] sm:$0xff]
    %v1246 = vld [vmem:[#allocation9 + $0x160] sm:$0xff]
    %v1247 = vld [vmem:[#allocation9 + $0x168] sm:$0xff]
    %v1248 = vld [vmem:[#allocation9 + $0x170] sm:$0xff]
    %v1249 = vld [vmem:[#allocation9 + $0x178] sm:$0xff]
    %1250 = vmatpush.msra.mxu0 %v1247
    %1251 = vmatpush.msra.mxu0 %v1244
    %1252 = vmatpush.msra.mxu0 %v1241
    %1253 = vmatpush.msra.mxu0 %v1238
    %1254 = vmatpush.msra.mxu0 %v1235
    %1255 = vmatpush.msra.mxu0 %v1232
    %1256 = vmatpush.msra.mxu0 %v1229
    %1257 = vmatpush.msra.mxu0 %v1226
    %1258 = vmatpush.msra.mxu0 %v1223
    %1259 = vmatpush.msra.mxu0 %v1220
    %1260 = vmatpush.msra.mxu0 %v1217
    %1261 = vmatpush.msra.mxu0 %v1214
    %1262 = vmatpush.msra.mxu0 %v1211
    %1263 = vmatpush.msra.mxu0 %v1208
    %1264 = vmatpush.msra.mxu0 %v1205
    %1265 = vmatpush.msra.mxu0 %v1202
    %1266 = vmatmul.f32.gmra.mxu0 %v1193
    %v1267 = vpop.f32.mrf.mxu0
    %v1268 = vadd.f32 0.0, %v1267
    %1269 = vdwg.mxu0
    %1270 = vmatpush.msra.mxu0 %v1248
    %1271 = vmatpush.msra.mxu0 %v1245
    %1272 = vmatpush.msra.mxu0 %v1242
    %1273 = vmatpush.msra.mxu0 %v1239
    %1274 = vmatpush.msra.mxu0 %v1236
    %1275 = vmatpush.msra.mxu0 %v1233
    %1276 = vmatpush.msra.mxu0 %v1230
    %1277 = vmatpush.msra.mxu0 %v1227
    %1278 = vmatpush.msra.mxu0 %v1224
    %1279 = vmatpush.msra.mxu0 %v1221
    %1280 = vmatpush.msra.mxu0 %v1218
    %1281 = vmatpush.msra.mxu0 %v1215
    %1282 = vmatpush.msra.mxu0 %v1212
    %1283 = vmatpush.msra.mxu0 %v1209
    %1284 = vmatpush.msra.mxu0 %v1206
    %1285 = vmatpush.msra.mxu0 %v1203
    %1286 = vmatmul.f32.gmra.mxu0 %v1193
    %v1287 = vpop.f32.mrf.mxu0
    %v1288 = vadd.f32 0.0, %v1287
    %1289 = vdwg.mxu0
    %1290 = vmatpush.msra.mxu0 %v1249
    %1291 = vmatpush.msra.mxu0 %v1246
    %1292 = vmatpush.msra.mxu0 %v1243
    %1293 = vmatpush.msra.mxu0 %v1240
    %1294 = vmatpush.msra.mxu0 %v1237
    %1295 = vmatpush.msra.mxu0 %v1234
    %1296 = vmatpush.msra.mxu0 %v1231
    %1297 = vmatpush.msra.mxu0 %v1228
    %1298 = vmatpush.msra.mxu0 %v1225
    %1299 = vmatpush.msra.mxu0 %v1222
    %1300 = vmatpush.msra.mxu0 %v1219
    %1301 = vmatpush.msra.mxu0 %v1216
    %1302 = vmatpush.msra.mxu0 %v1213
    %1303 = vmatpush.msra.mxu0 %v1210
    %1304 = vmatpush.msra.mxu0 %v1207
    %1305 = vmatpush.msra.mxu0 %v1204
    %1306 = vmatmul.f32.gmra.mxu0 %v1193
    %v1307 = vpop.f32.mrf.mxu0
    %v1308 = vadd.f32 0.0, %v1307
    %1309 = vdwg.mxu0
    %v1310 = vadd.f32 %v1199, %v1268
    %v1311 = vadd.f32 %v1200, %v1288
    %v1312 = vxor.u32 %v1310, 2147483648
    %v1313 = vxor.u32 %v1311, 2147483648
    %v1314 = vmul.f32 %v1312, 1.442695
    %v1315 = vpow.pop %v1314
    %v1316 = vmul.f32 %v1313, 1.442695
    %v1317 = vpow.pop %v1316
    %v1318 = vadd.f32 %v1315, 1.0
    %v1319 = vadd.f32 %v1317, 1.0
    %v1320 = vrcp.pop %v1318
    %v1321 = vmul.f32 %v1318, %v1320
    %v1322 = vsub.f32 1.0, %v1321
    %v1323 = vmul.f32 %v1320, %v1322
    %v1324 = vadd.f32 %v1320, %v1323
    %vm1325 = vweird.f32 %v1318
    %vm1326 = vweird.f32 %v1320
    %vm1327 = vmor %vm1325, %vm1326
    %v1328 = vsel %vm1327, %v1320, %v1324
    %v1329 = vand.u32 2147483647, %v1318
    %vm1330 = vcmp.eq.f32.partialorder %v1329, 8.507059e+37
    %v1331 = vand.u32 %v1318, 2147483648
    %v1332 = vor.u32 1.1754944e-38, %v1331
    %v1333 = vsel %vm1330, %v1332, %v1328
    %v1334 = vmul.f32 1.0, %v1333
    %v1335 = vrcp.pop %v1319
    %v1336 = vmul.f32 %v1319, %v1335
    %v1337 = vsub.f32 1.0, %v1336
    %v1338 = vmul.f32 %v1335, %v1337
    %v1339 = vadd.f32 %v1335, %v1338
    %vm1340 = vweird.f32 %v1319
    %vm1341 = vweird.f32 %v1335
    %vm1342 = vmor %vm1340, %vm1341
    %v1343 = vsel %vm1342, %v1335, %v1339
    %v1344 = vand.u32 2147483647, %v1319
    %vm1345 = vcmp.eq.f32.partialorder %v1344, 8.507059e+37
    %v1346 = vand.u32 %v1319, 2147483648
    %v1347 = vor.u32 1.1754944e-38, %v1346
    %v1348 = vsel %vm1345, %v1347, %v1343
    %v1349 = vmul.f32 1.0, %v1348
    %v1350 = vld [vmem:[%s4] sm:$0x1]
    %v1352 = vperm.slane %v1350, 0
    %v1354 = vadd.f32 %v1308, %v1352
    %v1355 = vmul.f32 %v1334, %v1354
    %v1356 = vadd.f32 %v1201, %v1355
    %v1357 = vtanh.pop %v1356
    %v1358 = vsub.f32 1.0, %v1349
    %v1359 = vmul.f32 %v1358, %v1357
    %v1360 = vmul.f32 %v1349, %v1193
    %v1361 = vadd.f32 %v1359, %v1360
    %s1362 = scalar_lea.vmem [#allocation3], 40
    %1363 = vst [vmem:[%s1362] sm:$0xff] %v1361
    %s1364 = smul.u32 6, 3
    %s1365 = smul.addr %s1364, 8
    %s1366 = scalar_lea.vmem [#allocation2], %s1365
    %v1367 = vld [vmem:[%s1366] sm:$0xff]
    %v1368 = vld [vmem:[%s1366 + $0x8] sm:$0xff]
    %v1369 = vld [vmem:[%s1366 + $0x10] sm:$0xff]
    %v1370 = vld [vmem:[#allocation9] sm:$0xff]
    %v1371 = vld [vmem:[#allocation9 + $0x8] sm:$0xff]
    %v1372 = vld [vmem:[#allocation9 + $0x10] sm:$0xff]
    %v1373 = vld [vmem:[#allocation9 + $0x18] sm:$0xff]
    %v1374 = vld [vmem:[#allocation9 + $0x20] sm:$0xff]
    %v1375 = vld [vmem:[#allocation9 + $0x28] sm:$0xff]
    %v1376 = vld [vmem:[#allocation9 + $0x30] sm:$0xff]
    %v1377 = vld [vmem:[#allocation9 + $0x38] sm:$0xff]
    %v1378 = vld [vmem:[#allocation9 + $0x40] sm:$0xff]
    %v1379 = vld [vmem:[#allocation9 + $0x48] sm:$0xff]
    %v1380 = vld [vmem:[#allocation9 + $0x50] sm:$0xff]
    %v1381 = vld [vmem:[#allocation9 + $0x58] sm:$0xff]
    %v1382 = vld [vmem:[#allocation9 + $0x60] sm:$0xff]
    %v1383 = vld [vmem:[#allocation9 + $0x68] sm:$0xff]
    %v1384 = vld [vmem:[#allocation9 + $0x70] sm:$0xff]
    %v1385 = vld [vmem:[#allocation9 + $0x78] sm:$0xff]
    %v1386 = vld [vmem:[#allocation9 + $0x80] sm:$0xff]
    %v1387 = vld [vmem:[#allocation9 + $0x88] sm:$0xff]
    %v1388 = vld [vmem:[#allocation9 + $0x90] sm:$0xff]
    %v1389 = vld [vmem:[#allocation9 + $0x98] sm:$0xff]
    %v1390 = vld [vmem:[#allocation9 + $0xa0] sm:$0xff]
    %v1391 = vld [vmem:[#allocation9 + $0xa8] sm:$0xff]
    %v1392 = vld [vmem:[#allocation9 + $0xb0] sm:$0xff]
    %v1393 = vld [vmem:[#allocation9 + $0xb8] sm:$0xff]
    %v1394 = vld [vmem:[#allocation9 + $0xc0] sm:$0xff]
    %v1395 = vld [vmem:[#allocation9 + $0xc8] sm:$0xff]
    %v1396 = vld [vmem:[#allocation9 + $0xd0] sm:$0xff]
    %v1397 = vld [vmem:[#allocation9 + $0xd8] sm:$0xff]
    %v1398 = vld [vmem:[#allocation9 + $0xe0] sm:$0xff]
    %v1399 = vld [vmem:[#allocation9 + $0xe8] sm:$0xff]
    %v1400 = vld [vmem:[#allocation9 + $0xf0] sm:$0xff]
    %v1401 = vld [vmem:[#allocation9 + $0xf8] sm:$0xff]
    %v1402 = vld [vmem:[#allocation9 + $0x100] sm:$0xff]
    %v1403 = vld [vmem:[#allocation9 + $0x108] sm:$0xff]
    %v1404 = vld [vmem:[#allocation9 + $0x110] sm:$0xff]
    %v1405 = vld [vmem:[#allocation9 + $0x118] sm:$0xff]
    %v1406 = vld [vmem:[#allocation9 + $0x120] sm:$0xff]
    %v1407 = vld [vmem:[#allocation9 + $0x128] sm:$0xff]
    %v1408 = vld [vmem:[#allocation9 + $0x130] sm:$0xff]
    %v1409 = vld [vmem:[#allocation9 + $0x138] sm:$0xff]
    %v1410 = vld [vmem:[#allocation9 + $0x140] sm:$0xff]
    %v1411 = vld [vmem:[#allocation9 + $0x148] sm:$0xff]
    %v1412 = vld [vmem:[#allocation9 + $0x150] sm:$0xff]
    %v1413 = vld [vmem:[#allocation9 + $0x158] sm:$0xff]
    %v1414 = vld [vmem:[#allocation9 + $0x160] sm:$0xff]
    %v1415 = vld [vmem:[#allocation9 + $0x168] sm:$0xff]
    %v1416 = vld [vmem:[#allocation9 + $0x170] sm:$0xff]
    %v1417 = vld [vmem:[#allocation9 + $0x178] sm:$0xff]
    %1418 = vmatpush.msra.mxu0 %v1415
    %1419 = vmatpush.msra.mxu0 %v1412
    %1420 = vmatpush.msra.mxu0 %v1409
    %1421 = vmatpush.msra.mxu0 %v1406
    %1422 = vmatpush.msra.mxu0 %v1403
    %1423 = vmatpush.msra.mxu0 %v1400
    %1424 = vmatpush.msra.mxu0 %v1397
    %1425 = vmatpush.msra.mxu0 %v1394
    %1426 = vmatpush.msra.mxu0 %v1391
    %1427 = vmatpush.msra.mxu0 %v1388
    %1428 = vmatpush.msra.mxu0 %v1385
    %1429 = vmatpush.msra.mxu0 %v1382
    %1430 = vmatpush.msra.mxu0 %v1379
    %1431 = vmatpush.msra.mxu0 %v1376
    %1432 = vmatpush.msra.mxu0 %v1373
    %1433 = vmatpush.msra.mxu0 %v1370
    %1434 = vmatmul.f32.gmra.mxu0 %v1361
    %v1435 = vpop.f32.mrf.mxu0
    %v1436 = vadd.f32 0.0, %v1435
    %1437 = vdwg.mxu0
    %1438 = vmatpush.msra.mxu0 %v1416
    %1439 = vmatpush.msra.mxu0 %v1413
    %1440 = vmatpush.msra.mxu0 %v1410
    %1441 = vmatpush.msra.mxu0 %v1407
    %1442 = vmatpush.msra.mxu0 %v1404
    %1443 = vmatpush.msra.mxu0 %v1401
    %1444 = vmatpush.msra.mxu0 %v1398
    %1445 = vmatpush.msra.mxu0 %v1395
    %1446 = vmatpush.msra.mxu0 %v1392
    %1447 = vmatpush.msra.mxu0 %v1389
    %1448 = vmatpush.msra.mxu0 %v1386
    %1449 = vmatpush.msra.mxu0 %v1383
    %1450 = vmatpush.msra.mxu0 %v1380
    %1451 = vmatpush.msra.mxu0 %v1377
    %1452 = vmatpush.msra.mxu0 %v1374
    %1453 = vmatpush.msra.mxu0 %v1371
    %1454 = vmatmul.f32.gmra.mxu0 %v1361
    %v1455 = vpop.f32.mrf.mxu0
    %v1456 = vadd.f32 0.0, %v1455
    %1457 = vdwg.mxu0
    %1458 = vmatpush.msra.mxu0 %v1417
    %1459 = vmatpush.msra.mxu0 %v1414
    %1460 = vmatpush.msra.mxu0 %v1411
    %1461 = vmatpush.msra.mxu0 %v1408
    %1462 = vmatpush.msra.mxu0 %v1405
    %1463 = vmatpush.msra.mxu0 %v1402
    %1464 = vmatpush.msra.mxu0 %v1399
    %1465 = vmatpush.msra.mxu0 %v1396
    %1466 = vmatpush.msra.mxu0 %v1393
    %1467 = vmatpush.msra.mxu0 %v1390
    %1468 = vmatpush.msra.mxu0 %v1387
    %1469 = vmatpush.msra.mxu0 %v1384
    %1470 = vmatpush.msra.mxu0 %v1381
    %1471 = vmatpush.msra.mxu0 %v1378
    %1472 = vmatpush.msra.mxu0 %v1375
    %1473 = vmatpush.msra.mxu0 %v1372
    %1474 = vmatmul.f32.gmra.mxu0 %v1361
    %v1475 = vpop.f32.mrf.mxu0
    %v1476 = vadd.f32 0.0, %v1475
    %1477 = vdwg.mxu0
    %v1478 = vadd.f32 %v1367, %v1436
    %v1479 = vadd.f32 %v1368, %v1456
    %v1480 = vxor.u32 %v1478, 2147483648
    %v1481 = vxor.u32 %v1479, 2147483648
    %v1482 = vmul.f32 %v1480, 1.442695
    %v1483 = vpow.pop %v1482
    %v1484 = vmul.f32 %v1481, 1.442695
    %v1485 = vpow.pop %v1484
    %v1486 = vadd.f32 %v1483, 1.0
    %v1487 = vadd.f32 %v1485, 1.0
    %v1488 = vrcp.pop %v1486
    %v1489 = vmul.f32 %v1486, %v1488
    %v1490 = vsub.f32 1.0, %v1489
    %v1491 = vmul.f32 %v1488, %v1490
    %v1492 = vadd.f32 %v1488, %v1491
    %vm1493 = vweird.f32 %v1486
    %vm1494 = vweird.f32 %v1488
    %vm1495 = vmor %vm1493, %vm1494
    %v1496 = vsel %vm1495, %v1488, %v1492
    %v1497 = vand.u32 2147483647, %v1486
    %vm1498 = vcmp.eq.f32.partialorder %v1497, 8.507059e+37
    %v1499 = vand.u32 %v1486, 2147483648
    %v1500 = vor.u32 1.1754944e-38, %v1499
    %v1501 = vsel %vm1498, %v1500, %v1496
    %v1502 = vmul.f32 1.0, %v1501
    %v1503 = vrcp.pop %v1487
    %v1504 = vmul.f32 %v1487, %v1503
    %v1505 = vsub.f32 1.0, %v1504
    %v1506 = vmul.f32 %v1503, %v1505
    %v1507 = vadd.f32 %v1503, %v1506
    %vm1508 = vweird.f32 %v1487
    %vm1509 = vweird.f32 %v1503
    %vm1510 = vmor %vm1508, %vm1509
    %v1511 = vsel %vm1510, %v1503, %v1507
    %v1512 = vand.u32 2147483647, %v1487
    %vm1513 = vcmp.eq.f32.partialorder %v1512, 8.507059e+37
    %v1514 = vand.u32 %v1487, 2147483648
    %v1515 = vor.u32 1.1754944e-38, %v1514
    %v1516 = vsel %vm1513, %v1515, %v1511
    %v1517 = vmul.f32 1.0, %v1516
    %v1518 = vld [vmem:[%s4] sm:$0x1]
    %v1520 = vperm.slane %v1518, 0
    %v1522 = vadd.f32 %v1476, %v1520
    %v1523 = vmul.f32 %v1502, %v1522
    %v1524 = vadd.f32 %v1369, %v1523
    %v1525 = vtanh.pop %v1524
    %v1526 = vsub.f32 1.0, %v1517
    %v1527 = vmul.f32 %v1526, %v1525
    %v1528 = vmul.f32 %v1517, %v1361
    %v1529 = vadd.f32 %v1527, %v1528
    %s1530 = scalar_lea.vmem [#allocation3], 48
    %1531 = vst [vmem:[%s1530] sm:$0xff] %v1529
    %s1532 = smul.u32 7, 3
    %s1533 = smul.addr %s1532, 8
    %s1534 = scalar_lea.vmem [#allocation2], %s1533
    %v1535 = vld [vmem:[%s1534] sm:$0xff]
    %v1536 = vld [vmem:[%s1534 + $0x8] sm:$0xff]
    %v1537 = vld [vmem:[%s1534 + $0x10] sm:$0xff]
    %v1538 = vld [vmem:[#allocation9] sm:$0xff]
    %v1539 = vld [vmem:[#allocation9 + $0x8] sm:$0xff]
    %v1540 = vld [vmem:[#allocation9 + $0x10] sm:$0xff]
    %v1541 = vld [vmem:[#allocation9 + $0x18] sm:$0xff]
    %v1542 = vld [vmem:[#allocation9 + $0x20] sm:$0xff]
    %v1543 = vld [vmem:[#allocation9 + $0x28] sm:$0xff]
    %v1544 = vld [vmem:[#allocation9 + $0x30] sm:$0xff]
    %v1545 = vld [vmem:[#allocation9 + $0x38] sm:$0xff]
    %v1546 = vld [vmem:[#allocation9 + $0x40] sm:$0xff]
    %v1547 = vld [vmem:[#allocation9 + $0x48] sm:$0xff]
    %v1548 = vld [vmem:[#allocation9 + $0x50] sm:$0xff]
    %v1549 = vld [vmem:[#allocation9 + $0x58] sm:$0xff]
    %v1550 = vld [vmem:[#allocation9 + $0x60] sm:$0xff]
    %v1551 = vld [vmem:[#allocation9 + $0x68] sm:$0xff]
    %v1552 = vld [vmem:[#allocation9 + $0x70] sm:$0xff]
    %v1553 = vld [vmem:[#allocation9 + $0x78] sm:$0xff]
    %v1554 = vld [vmem:[#allocation9 + $0x80] sm:$0xff]
    %v1555 = vld [vmem:[#allocation9 + $0x88] sm:$0xff]
    %v1556 = vld [vmem:[#allocation9 + $0x90] sm:$0xff]
    %v1557 = vld [vmem:[#allocation9 + $0x98] sm:$0xff]
    %v1558 = vld [vmem:[#allocation9 + $0xa0] sm:$0xff]
    %v1559 = vld [vmem:[#allocation9 + $0xa8] sm:$0xff]
    %v1560 = vld [vmem:[#allocation9 + $0xb0] sm:$0xff]
    %v1561 = vld [vmem:[#allocation9 + $0xb8] sm:$0xff]
    %v1562 = vld [vmem:[#allocation9 + $0xc0] sm:$0xff]
    %v1563 = vld [vmem:[#allocation9 + $0xc8] sm:$0xff]
    %v1564 = vld [vmem:[#allocation9 + $0xd0] sm:$0xff]
    %v1565 = vld [vmem:[#allocation9 + $0xd8] sm:$0xff]
    %v1566 = vld [vmem:[#allocation9 + $0xe0] sm:$0xff]
    %v1567 = vld [vmem:[#allocation9 + $0xe8] sm:$0xff]
    %v1568 = vld [vmem:[#allocation9 + $0xf0] sm:$0xff]
    %v1569 = vld [vmem:[#allocation9 + $0xf8] sm:$0xff]
    %v1570 = vld [vmem:[#allocation9 + $0x100] sm:$0xff]
    %v1571 = vld [vmem:[#allocation9 + $0x108] sm:$0xff]
    %v1572 = vld [vmem:[#allocation9 + $0x110] sm:$0xff]
    %v1573 = vld [vmem:[#allocation9 + $0x118] sm:$0xff]
    %v1574 = vld [vmem:[#allocation9 + $0x120] sm:$0xff]
    %v1575 = vld [vmem:[#allocation9 + $0x128] sm:$0xff]
    %v1576 = vld [vmem:[#allocation9 + $0x130] sm:$0xff]
    %v1577 = vld [vmem:[#allocation9 + $0x138] sm:$0xff]
    %v1578 = vld [vmem:[#allocation9 + $0x140] sm:$0xff]
    %v1579 = vld [vmem:[#allocation9 + $0x148] sm:$0xff]
    %v1580 = vld [vmem:[#allocation9 + $0x150] sm:$0xff]
    %v1581 = vld [vmem:[#allocation9 + $0x158] sm:$0xff]
    %v1582 = vld [vmem:[#allocation9 + $0x160] sm:$0xff]
    %v1583 = vld [vmem:[#allocation9 + $0x168] sm:$0xff]
    %v1584 = vld [vmem:[#allocation9 + $0x170] sm:$0xff]
    %v1585 = vld [vmem:[#allocation9 + $0x178] sm:$0xff]
    %1586 = vmatpush.msra.mxu0 %v1583
    %1587 = vmatpush.msra.mxu0 %v1580
    %1588 = vmatpush.msra.mxu0 %v1577
    %1589 = vmatpush.msra.mxu0 %v1574
    %1590 = vmatpush.msra.mxu0 %v1571
    %1591 = vmatpush.msra.mxu0 %v1568
    %1592 = vmatpush.msra.mxu0 %v1565
    %1593 = vmatpush.msra.mxu0 %v1562
    %1594 = vmatpush.msra.mxu0 %v1559
    %1595 = vmatpush.msra.mxu0 %v1556
    %1596 = vmatpush.msra.mxu0 %v1553
    %1597 = vmatpush.msra.mxu0 %v1550
    %1598 = vmatpush.msra.mxu0 %v1547
    %1599 = vmatpush.msra.mxu0 %v1544
    %1600 = vmatpush.msra.mxu0 %v1541
    %1601 = vmatpush.msra.mxu0 %v1538
    %1602 = vmatmul.f32.gmra.mxu0 %v1529
    %v1603 = vpop.f32.mrf.mxu0
    %v1604 = vadd.f32 0.0, %v1603
    %1605 = vdwg.mxu0
    %1606 = vmatpush.msra.mxu0 %v1584
    %1607 = vmatpush.msra.mxu0 %v1581
    %1608 = vmatpush.msra.mxu0 %v1578
    %1609 = vmatpush.msra.mxu0 %v1575
    %1610 = vmatpush.msra.mxu0 %v1572
    %1611 = vmatpush.msra.mxu0 %v1569
    %1612 = vmatpush.msra.mxu0 %v1566
    %1613 = vmatpush.msra.mxu0 %v1563
    %1614 = vmatpush.msra.mxu0 %v1560
    %1615 = vmatpush.msra.mxu0 %v1557
    %1616 = vmatpush.msra.mxu0 %v1554
    %1617 = vmatpush.msra.mxu0 %v1551
    %1618 = vmatpush.msra.mxu0 %v1548
    %1619 = vmatpush.msra.mxu0 %v1545
    %1620 = vmatpush.msra.mxu0 %v1542
    %1621 = vmatpush.msra.mxu0 %v1539
    %1622 = vmatmul.f32.gmra.mxu0 %v1529
    %v1623 = vpop.f32.mrf.mxu0
    %v1624 = vadd.f32 0.0, %v1623
    %1625 = vdwg.mxu0
    %1626 = vmatpush.msra.mxu0 %v1585
    %1627 = vmatpush.msra.mxu0 %v1582
    %1628 = vmatpush.msra.mxu0 %v1579
    %1629 = vmatpush.msra.mxu0 %v1576
    %1630 = vmatpush.msra.mxu0 %v1573
    %1631 = vmatpush.msra.mxu0 %v1570
    %1632 = vmatpush.msra.mxu0 %v1567
    %1633 = vmatpush.msra.mxu0 %v1564
    %1634 = vmatpush.msra.mxu0 %v1561
    %1635 = vmatpush.msra.mxu0 %v1558
    %1636 = vmatpush.msra.mxu0 %v1555
    %1637 = vmatpush.msra.mxu0 %v1552
    %1638 = vmatpush.msra.mxu0 %v1549
    %1639 = vmatpush.msra.mxu0 %v1546
    %1640 = vmatpush.msra.mxu0 %v1543
    %1641 = vmatpush.msra.mxu0 %v1540
    %1642 = vmatmul.f32.gmra.mxu0 %v1529
    %v1643 = vpop.f32.mrf.mxu0
    %v1644 = vadd.f32 0.0, %v1643
    %1645 = vdwg.mxu0
    %v1646 = vadd.f32 %v1535, %v1604
    %v1647 = vadd.f32 %v1536, %v1624
    %v1648 = vxor.u32 %v1646, 2147483648
    %v1649 = vxor.u32 %v1647, 2147483648
    %v1650 = vmul.f32 %v1648, 1.442695
    %v1651 = vpow.pop %v1650
    %v1652 = vmul.f32 %v1649, 1.442695
    %v1653 = vpow.pop %v1652
    %v1654 = vadd.f32 %v1651, 1.0
    %v1655 = vadd.f32 %v1653, 1.0
    %v1656 = vrcp.pop %v1654
    %v1657 = vmul.f32 %v1654, %v1656
    %v1658 = vsub.f32 1.0, %v1657
    %v1659 = vmul.f32 %v1656, %v1658
    %v1660 = vadd.f32 %v1656, %v1659
    %vm1661 = vweird.f32 %v1654
    %vm1662 = vweird.f32 %v1656
    %vm1663 = vmor %vm1661, %vm1662
    %v1664 = vsel %vm1663, %v1656, %v1660
    %v1665 = vand.u32 2147483647, %v1654
    %vm1666 = vcmp.eq.f32.partialorder %v1665, 8.507059e+37
    %v1667 = vand.u32 %v1654, 2147483648
    %v1668 = vor.u32 1.1754944e-38, %v1667
    %v1669 = vsel %vm1666, %v1668, %v1664
    %v1670 = vmul.f32 1.0, %v1669
    %v1671 = vrcp.pop %v1655
    %v1672 = vmul.f32 %v1655, %v1671
    %v1673 = vsub.f32 1.0, %v1672
    %v1674 = vmul.f32 %v1671, %v1673
    %v1675 = vadd.f32 %v1671, %v1674
    %vm1676 = vweird.f32 %v1655
    %vm1677 = vweird.f32 %v1671
    %vm1678 = vmor %vm1676, %vm1677
    %v1679 = vsel %vm1678, %v1671, %v1675
    %v1680 = vand.u32 2147483647, %v1655
    %vm1681 = vcmp.eq.f32.partialorder %v1680, 8.507059e+37
    %v1682 = vand.u32 %v1655, 2147483648
    %v1683 = vor.u32 1.1754944e-38, %v1682
    %v1684 = vsel %vm1681, %v1683, %v1679
    %v1685 = vmul.f32 1.0, %v1684
    %v1686 = vld [vmem:[%s4] sm:$0x1]
    %v1688 = vperm.slane %v1686, 0
    %v1690 = vadd.f32 %v1644, %v1688
    %v1691 = vmul.f32 %v1670, %v1690
    %v1692 = vadd.f32 %v1537, %v1691
    %v1693 = vtanh.pop %v1692
    %v1694 = vsub.f32 1.0, %v1685
    %v1695 = vmul.f32 %v1694, %v1693
    %v1696 = vmul.f32 %v1685, %v1529
    %v1697 = vadd.f32 %v1695, %v1696
    %s1698 = scalar_lea.vmem [#allocation3], 56
    %1699 = vst [vmem:[%s1698] sm:$0xff] %v1697
    %v1700 = vld [vmem:[#allocation3] sm:$0xff]
    %v1701 = vld [vmem:[#allocation3 + $0x8] sm:$0xff]
    %v1702 = vld [vmem:[#allocation3 + $0x10] sm:$0xff]
    %v1703 = vld [vmem:[#allocation3 + $0x18] sm:$0xff]
    %v1704 = vld [vmem:[#allocation3 + $0x20] sm:$0xff]
    %v1705 = vld [vmem:[#allocation3 + $0x28] sm:$0xff]
    %v1706 = vld [vmem:[#allocation3 + $0x30] sm:$0xff]
    %v1707 = vld [vmem:[#allocation3 + $0x38] sm:$0xff]
    %v1708 = vld [vmem:[#allocation12] sm:$0xff]
    %v1709 = vld [vmem:[#allocation12 + $0x8] sm:$0xff]
    %v1710 = vld [vmem:[#allocation12 + $0x10] sm:$0xff]
    %v1711 = vld [vmem:[#allocation12 + $0x18] sm:$0xff]
    %v1712 = vld [vmem:[#allocation12 + $0x20] sm:$0xff]
    %v1713 = vld [vmem:[#allocation12 + $0x28] sm:$0xff]
    %v1714 = vld [vmem:[#allocation12 + $0x30] sm:$0xff]
    %v1715 = vld [vmem:[#allocation12 + $0x38] sm:$0xff]
    %v1716 = vld [vmem:[#allocation12 + $0x40] sm:$0xff]
    %v1717 = vld [vmem:[#allocation12 + $0x48] sm:$0xff]
    %v1718 = vld [vmem:[#allocation12 + $0x50] sm:$0xff]
    %v1719 = vld [vmem:[#allocation12 + $0x58] sm:$0xff]
    %v1720 = vld [vmem:[#allocation12 + $0x60] sm:$0xff]
    %v1721 = vld [vmem:[#allocation12 + $0x68] sm:$0xff]
    %v1722 = vld [vmem:[#allocation12 + $0x70] sm:$0xff]
    %v1723 = vld [vmem:[#allocation12 + $0x78] sm:$0xff]
    %v1724 = vld [vmem:[#allocation12 + $0x80] sm:$0xff]
    %v1725 = vld [vmem:[#allocation12 + $0x88] sm:$0xff]
    %v1726 = vld [vmem:[#allocation12 + $0x90] sm:$0xff]
    %v1727 = vld [vmem:[#allocation12 + $0x98] sm:$0xff]
    %v1728 = vld [vmem:[#allocation12 + $0xa0] sm:$0xff]
    %v1729 = vld [vmem:[#allocation12 + $0xa8] sm:$0xff]
    %v1730 = vld [vmem:[#allocation12 + $0xb0] sm:$0xff]
    %v1731 = vld [vmem:[#allocation12 + $0xb8] sm:$0xff]
    %v1732 = vld [vmem:[#allocation12 + $0xc0] sm:$0xff]
    %v1733 = vld [vmem:[#allocation12 + $0xc8] sm:$0xff]
    %v1734 = vld [vmem:[#allocation12 + $0xd0] sm:$0xff]
    %v1735 = vld [vmem:[#allocation12 + $0xd8] sm:$0xff]
    %v1736 = vld [vmem:[#allocation12 + $0xe0] sm:$0xff]
    %v1737 = vld [vmem:[#allocation12 + $0xe8] sm:$0xff]
    %v1738 = vld [vmem:[#allocation12 + $0xf0] sm:$0xff]
    %v1739 = vld [vmem:[#allocation12 + $0xf8] sm:$0xff]
    %v1740 = vld [vmem:[#allocation12 + $0x100] sm:$0xff]
    %v1741 = vld [vmem:[#allocation12 + $0x108] sm:$0xff]
    %v1742 = vld [vmem:[#allocation12 + $0x110] sm:$0xff]
    %v1743 = vld [vmem:[#allocation12 + $0x118] sm:$0xff]
    %v1744 = vld [vmem:[#allocation12 + $0x120] sm:$0xff]
    %v1745 = vld [vmem:[#allocation12 + $0x128] sm:$0xff]
    %v1746 = vld [vmem:[#allocation12 + $0x130] sm:$0xff]
    %v1747 = vld [vmem:[#allocation12 + $0x138] sm:$0xff]
    %v1748 = vld [vmem:[#allocation12 + $0x140] sm:$0xff]
    %v1749 = vld [vmem:[#allocation12 + $0x148] sm:$0xff]
    %v1750 = vld [vmem:[#allocation12 + $0x150] sm:$0xff]
    %v1751 = vld [vmem:[#allocation12 + $0x158] sm:$0xff]
    %v1752 = vld [vmem:[#allocation12 + $0x160] sm:$0xff]
    %v1753 = vld [vmem:[#allocation12 + $0x168] sm:$0xff]
    %v1754 = vld [vmem:[#allocation12 + $0x170] sm:$0xff]
    %v1755 = vld [vmem:[#allocation12 + $0x178] sm:$0xff]
    %v1756 = vld [vmem:[%s7] sm:$0x7]
    %v1758 = vperm.slane %v1756, 0
    %v1759 = vperm.slane %v1756, 1
    %v1760 = vperm.slane %v1756, 2
    %1764 = vmatpush.msra.mxu0 %v1753
    %1765 = vmatpush.msra.mxu0 %v1750
    %1766 = vmatpush.msra.mxu0 %v1747
    %1767 = vmatpush.msra.mxu0 %v1744
    %1768 = vmatpush.msra.mxu0 %v1741
    %1769 = vmatpush.msra.mxu0 %v1738
    %1770 = vmatpush.msra.mxu0 %v1735
    %1771 = vmatpush.msra.mxu0 %v1732
    %1772 = vmatpush.msra.mxu0 %v1729
    %1773 = vmatpush.msra.mxu0 %v1726
    %1774 = vmatpush.msra.mxu0 %v1723
    %1775 = vmatpush.msra.mxu0 %v1720
    %1776 = vmatpush.msra.mxu0 %v1717
    %1777 = vmatpush.msra.mxu0 %v1714
    %1778 = vmatpush.msra.mxu0 %v1711
    %1779 = vmatpush.msra.mxu0 %v1708
    %1780 = vmatmul.f32.gmra.mxu0 %v1700
    %v1781 = vpop.f32.mrf.mxu0
    %v1782 = vadd.f32 %v1758, %v1781
    %1783 = vmatmul.f32.gmra.mxu0 %v1701
    %v1784 = vpop.f32.mrf.mxu0
    %v1785 = vadd.f32 %v1758, %v1784
    %1786 = vmatmul.f32.gmra.mxu0 %v1702
    %v1787 = vpop.f32.mrf.mxu0
    %v1788 = vadd.f32 %v1758, %v1787
    %1789 = vmatmul.f32.gmra.mxu0 %v1703
    %v1790 = vpop.f32.mrf.mxu0
    %v1791 = vadd.f32 %v1758, %v1790
    %1792 = vmatmul.f32.gmra.mxu0 %v1704
    %v1793 = vpop.f32.mrf.mxu0
    %v1794 = vadd.f32 %v1758, %v1793
    %1795 = vmatmul.f32.gmra.mxu0 %v1705
    %v1796 = vpop.f32.mrf.mxu0
    %v1797 = vadd.f32 %v1758, %v1796
    %1798 = vmatmul.f32.gmra.mxu0 %v1706
    %v1799 = vpop.f32.mrf.mxu0
    %v1800 = vadd.f32 %v1758, %v1799
    %1801 = vmatmul.f32.gmra.mxu0 %v1707
    %v1802 = vpop.f32.mrf.mxu0
    %v1803 = vadd.f32 %v1758, %v1802
    %1804 = vdwg.mxu0
    %1805 = vmatpush.msra.mxu0 %v1754
    %1806 = vmatpush.msra.mxu0 %v1751
    %1807 = vmatpush.msra.mxu0 %v1748
    %1808 = vmatpush.msra.mxu0 %v1745
    %1809 = vmatpush.msra.mxu0 %v1742
    %1810 = vmatpush.msra.mxu0 %v1739
    %1811 = vmatpush.msra.mxu0 %v1736
    %1812 = vmatpush.msra.mxu0 %v1733
    %1813 = vmatpush.msra.mxu0 %v1730
    %1814 = vmatpush.msra.mxu0 %v1727
    %1815 = vmatpush.msra.mxu0 %v1724
    %1816 = vmatpush.msra.mxu0 %v1721
    %1817 = vmatpush.msra.mxu0 %v1718
    %1818 = vmatpush.msra.mxu0 %v1715
    %1819 = vmatpush.msra.mxu0 %v1712
    %1820 = vmatpush.msra.mxu0 %v1709
    %1821 = vmatmul.f32.gmra.mxu0 %v1700
    %v1822 = vpop.f32.mrf.mxu0
    %v1823 = vadd.f32 %v1759, %v1822
    %1824 = vmatmul.f32.gmra.mxu0 %v1701
    %v1825 = vpop.f32.mrf.mxu0
    %v1826 = vadd.f32 %v1759, %v1825
    %1827 = vmatmul.f32.gmra.mxu0 %v1702
    %v1828 = vpop.f32.mrf.mxu0
    %v1829 = vadd.f32 %v1759, %v1828
    %1830 = vmatmul.f32.gmra.mxu0 %v1703
    %v1831 = vpop.f32.mrf.mxu0
    %v1832 = vadd.f32 %v1759, %v1831
    %1833 = vmatmul.f32.gmra.mxu0 %v1704
    %v1834 = vpop.f32.mrf.mxu0
    %v1835 = vadd.f32 %v1759, %v1834
    %1836 = vmatmul.f32.gmra.mxu0 %v1705
    %v1837 = vpop.f32.mrf.mxu0
    %v1838 = vadd.f32 %v1759, %v1837
    %1839 = vmatmul.f32.gmra.mxu0 %v1706
    %v1840 = vpop.f32.mrf.mxu0
    %v1841 = vadd.f32 %v1759, %v1840
    %1842 = vmatmul.f32.gmra.mxu0 %v1707
    %v1843 = vpop.f32.mrf.mxu0
    %v1844 = vadd.f32 %v1759, %v1843
    %1845 = vdwg.mxu0
    %1846 = vmatpush.msra.mxu0 %v1755
    %1847 = vmatpush.msra.mxu0 %v1752
    %1848 = vmatpush.msra.mxu0 %v1749
    %1849 = vmatpush.msra.mxu0 %v1746
    %1850 = vmatpush.msra.mxu0 %v1743
    %1851 = vmatpush.msra.mxu0 %v1740
    %1852 = vmatpush.msra.mxu0 %v1737
    %1853 = vmatpush.msra.mxu0 %v1734
    %1854 = vmatpush.msra.mxu0 %v1731
    %1855 = vmatpush.msra.mxu0 %v1728
    %1856 = vmatpush.msra.mxu0 %v1725
    %1857 = vmatpush.msra.mxu0 %v1722
    %1858 = vmatpush.msra.mxu0 %v1719
    %1859 = vmatpush.msra.mxu0 %v1716
    %1860 = vmatpush.msra.mxu0 %v1713
    %1861 = vmatpush.msra.mxu0 %v1710
    %1862 = vmatmul.f32.gmra.mxu0 %v1700
    %v1863 = vpop.f32.mrf.mxu0
    %v1864 = vadd.f32 %v1760, %v1863
    %1865 = vmatmul.f32.gmra.mxu0 %v1701
    %v1866 = vpop.f32.mrf.mxu0
    %v1867 = vadd.f32 %v1760, %v1866
    %1868 = vmatmul.f32.gmra.mxu0 %v1702
    %v1869 = vpop.f32.mrf.mxu0
    %v1870 = vadd.f32 %v1760, %v1869
    %1871 = vmatmul.f32.gmra.mxu0 %v1703
    %v1872 = vpop.f32.mrf.mxu0
    %v1873 = vadd.f32 %v1760, %v1872
    %1874 = vmatmul.f32.gmra.mxu0 %v1704
    %v1875 = vpop.f32.mrf.mxu0
    %v1876 = vadd.f32 %v1760, %v1875
    %1877 = vmatmul.f32.gmra.mxu0 %v1705
    %v1878 = vpop.f32.mrf.mxu0
    %v1879 = vadd.f32 %v1760, %v1878
    %1880 = vmatmul.f32.gmra.mxu0 %v1706
    %v1881 = vpop.f32.mrf.mxu0
    %v1882 = vadd.f32 %v1760, %v1881
    %1883 = vmatmul.f32.gmra.mxu0 %v1707
    %v1884 = vpop.f32.mrf.mxu0
    %v1885 = vadd.f32 %v1760, %v1884
    %1886 = vdwg.mxu0
    %1887 = vst [vmem:[#allocation2] sm:$0xff] %v1782
    %1888 = vst [vmem:[#allocation2 + $0x8] sm:$0xff] %v1823
    %1889 = vst [vmem:[#allocation2 + $0x10] sm:$0xff] %v1864
    %1890 = vst [vmem:[#allocation2 + $0x18] sm:$0xff] %v1785
    %1891 = vst [vmem:[#allocation2 + $0x20] sm:$0xff] %v1826
    %1892 = vst [vmem:[#allocation2 + $0x28] sm:$0xff] %v1867
    %1893 = vst [vmem:[#allocation2 + $0x30] sm:$0xff] %v1788
    %1894 = vst [vmem:[#allocation2 + $0x38] sm:$0xff] %v1829
    %1895 = vst [vmem:[#allocation2 + $0x40] sm:$0xff] %v1870
    %1896 = vst [vmem:[#allocation2 + $0x48] sm:$0xff] %v1791
    %1897 = vst [vmem:[#allocation2 + $0x50] sm:$0xff] %v1832
    %1898 = vst [vmem:[#allocation2 + $0x58] sm:$0xff] %v1873
    %1899 = vst [vmem:[#allocation2 + $0x60] sm:$0xff] %v1794
    %1900 = vst [vmem:[#allocation2 + $0x68] sm:$0xff] %v1835
    %1901 = vst [vmem:[#allocation2 + $0x70] sm:$0xff] %v1876
    %1902 = vst [vmem:[#allocation2 + $0x78] sm:$0xff] %v1797
    %1903 = vst [vmem:[#allocation2 + $0x80] sm:$0xff] %v1838
    %1904 = vst [vmem:[#allocation2 + $0x88] sm:$0xff] %v1879
    %1905 = vst [vmem:[#allocation2 + $0x90] sm:$0xff] %v1800
    %1906 = vst [vmem:[#allocation2 + $0x98] sm:$0xff] %v1841
    %1907 = vst [vmem:[#allocation2 + $0xa0] sm:$0xff] %v1882
    %1908 = vst [vmem:[#allocation2 + $0xa8] sm:$0xff] %v1803
    %1909 = vst [vmem:[#allocation2 + $0xb0] sm:$0xff] %v1844
    %1910 = vst [vmem:[#allocation2 + $0xb8] sm:$0xff] %v1885
    %v1911 = vld [vmem:[%s359] sm:$0xff]
    %v1912 = vld [vmem:[%s359 + $0x8] sm:$0xff]
    %v1913 = vld [vmem:[%s359 + $0x10] sm:$0xff]
    %v1914 = vld [vmem:[#allocation13] sm:$0xff]
    %v1915 = vld [vmem:[#allocation13 + $0x8] sm:$0xff]
    %v1916 = vld [vmem:[#allocation13 + $0x10] sm:$0xff]
    %v1917 = vld [vmem:[#allocation13 + $0x18] sm:$0xff]
    %v1918 = vld [vmem:[#allocation13 + $0x20] sm:$0xff]
    %v1919 = vld [vmem:[#allocation13 + $0x28] sm:$0xff]
    %v1920 = vld [vmem:[#allocation13 + $0x30] sm:$0xff]
    %v1921 = vld [vmem:[#allocation13 + $0x38] sm:$0xff]
    %v1922 = vld [vmem:[#allocation13 + $0x40] sm:$0xff]
    %v1923 = vld [vmem:[#allocation13 + $0x48] sm:$0xff]
    %v1924 = vld [vmem:[#allocation13 + $0x50] sm:$0xff]
    %v1925 = vld [vmem:[#allocation13 + $0x58] sm:$0xff]
    %v1926 = vld [vmem:[#allocation13 + $0x60] sm:$0xff]
    %v1927 = vld [vmem:[#allocation13 + $0x68] sm:$0xff]
    %v1928 = vld [vmem:[#allocation13 + $0x70] sm:$0xff]
    %v1929 = vld [vmem:[#allocation13 + $0x78] sm:$0xff]
    %v1930 = vld [vmem:[#allocation13 + $0x80] sm:$0xff]
    %v1931 = vld [vmem:[#allocation13 + $0x88] sm:$0xff]
    %v1932 = vld [vmem:[#allocation13 + $0x90] sm:$0xff]
    %v1933 = vld [vmem:[#allocation13 + $0x98] sm:$0xff]
    %v1934 = vld [vmem:[#allocation13 + $0xa0] sm:$0xff]
    %v1935 = vld [vmem:[#allocation13 + $0xa8] sm:$0xff]
    %v1936 = vld [vmem:[#allocation13 + $0xb0] sm:$0xff]
    %v1937 = vld [vmem:[#allocation13 + $0xb8] sm:$0xff]
    %v1938 = vld [vmem:[#allocation13 + $0xc0] sm:$0xff]
    %v1939 = vld [vmem:[#allocation13 + $0xc8] sm:$0xff]
    %v1940 = vld [vmem:[#allocation13 + $0xd0] sm:$0xff]
    %v1941 = vld [vmem:[#allocation13 + $0xd8] sm:$0xff]
    %v1942 = vld [vmem:[#allocation13 + $0xe0] sm:$0xff]
    %v1943 = vld [vmem:[#allocation13 + $0xe8] sm:$0xff]
    %v1944 = vld [vmem:[#allocation13 + $0xf0] sm:$0xff]
    %v1945 = vld [vmem:[#allocation13 + $0xf8] sm:$0xff]
    %v1946 = vld [vmem:[#allocation13 + $0x100] sm:$0xff]
    %v1947 = vld [vmem:[#allocation13 + $0x108] sm:$0xff]
    %v1948 = vld [vmem:[#allocation13 + $0x110] sm:$0xff]
    %v1949 = vld [vmem:[#allocation13 + $0x118] sm:$0xff]
    %v1950 = vld [vmem:[#allocation13 + $0x120] sm:$0xff]
    %v1951 = vld [vmem:[#allocation13 + $0x128] sm:$0xff]
    %v1952 = vld [vmem:[#allocation13 + $0x130] sm:$0xff]
    %v1953 = vld [vmem:[#allocation13 + $0x138] sm:$0xff]
    %v1954 = vld [vmem:[#allocation13 + $0x140] sm:$0xff]
    %v1955 = vld [vmem:[#allocation13 + $0x148] sm:$0xff]
    %v1956 = vld [vmem:[#allocation13 + $0x150] sm:$0xff]
    %v1957 = vld [vmem:[#allocation13 + $0x158] sm:$0xff]
    %v1958 = vld [vmem:[#allocation13 + $0x160] sm:$0xff]
    %v1959 = vld [vmem:[#allocation13 + $0x168] sm:$0xff]
    %v1960 = vld [vmem:[#allocation13 + $0x170] sm:$0xff]
    %v1961 = vld [vmem:[#allocation13 + $0x178] sm:$0xff]
    %1962 = vmatpush.msra.mxu0 %v1959
    %1963 = vmatpush.msra.mxu0 %v1956
    %1964 = vmatpush.msra.mxu0 %v1953
    %1965 = vmatpush.msra.mxu0 %v1950
    %1966 = vmatpush.msra.mxu0 %v1947
    %1967 = vmatpush.msra.mxu0 %v1944
    %1968 = vmatpush.msra.mxu0 %v1941
    %1969 = vmatpush.msra.mxu0 %v1938
    %1970 = vmatpush.msra.mxu0 %v1935
    %1971 = vmatpush.msra.mxu0 %v1932
    %1972 = vmatpush.msra.mxu0 %v1929
    %1973 = vmatpush.msra.mxu0 %v1926
    %1974 = vmatpush.msra.mxu0 %v1923
    %1975 = vmatpush.msra.mxu0 %v1920
    %1976 = vmatpush.msra.mxu0 %v1917
    %1977 = vmatpush.msra.mxu0 %v1914
    %1978 = vmatmul.f32.gmra.mxu0 0.0
    %v1979 = vpop.f32.mrf.mxu0
    %v1980 = vadd.f32 0.0, %v1979
    %1981 = vdwg.mxu0
    %1982 = vmatpush.msra.mxu0 %v1960
    %1983 = vmatpush.msra.mxu0 %v1957
    %1984 = vmatpush.msra.mxu0 %v1954
    %1985 = vmatpush.msra.mxu0 %v1951
    %1986 = vmatpush.msra.mxu0 %v1948
    %1987 = vmatpush.msra.mxu0 %v1945
    %1988 = vmatpush.msra.mxu0 %v1942
    %1989 = vmatpush.msra.mxu0 %v1939
    %1990 = vmatpush.msra.mxu0 %v1936
    %1991 = vmatpush.msra.mxu0 %v1933
    %1992 = vmatpush.msra.mxu0 %v1930
    %1993 = vmatpush.msra.mxu0 %v1927
    %1994 = vmatpush.msra.mxu0 %v1924
    %1995 = vmatpush.msra.mxu0 %v1921
    %1996 = vmatpush.msra.mxu0 %v1918
    %1997 = vmatpush.msra.mxu0 %v1915
    %1998 = vmatmul.f32.gmra.mxu0 0.0
    %v1999 = vpop.f32.mrf.mxu0
    %v2000 = vadd.f32 0.0, %v1999
    %2001 = vdwg.mxu0
    %2002 = vmatpush.msra.mxu0 %v1961
    %2003 = vmatpush.msra.mxu0 %v1958
    %2004 = vmatpush.msra.mxu0 %v1955
    %2005 = vmatpush.msra.mxu0 %v1952
    %2006 = vmatpush.msra.mxu0 %v1949
    %2007 = vmatpush.msra.mxu0 %v1946
    %2008 = vmatpush.msra.mxu0 %v1943
    %2009 = vmatpush.msra.mxu0 %v1940
    %2010 = vmatpush.msra.mxu0 %v1937
    %2011 = vmatpush.msra.mxu0 %v1934
    %2012 = vmatpush.msra.mxu0 %v1931
    %2013 = vmatpush.msra.mxu0 %v1928
    %2014 = vmatpush.msra.mxu0 %v1925
    %2015 = vmatpush.msra.mxu0 %v1922
    %2016 = vmatpush.msra.mxu0 %v1919
    %2017 = vmatpush.msra.mxu0 %v1916
    %2018 = vmatmul.f32.gmra.mxu0 0.0
    %v2019 = vpop.f32.mrf.mxu0
    %v2020 = vadd.f32 0.0, %v2019
    %2021 = vdwg.mxu0
    %v2022 = vadd.f32 %v1911, %v1980
    %v2023 = vadd.f32 %v1912, %v2000
    %v2024 = vxor.u32 %v2022, 2147483648
    %v2025 = vxor.u32 %v2023, 2147483648
    %v2026 = vmul.f32 %v2024, 1.442695
    %v2027 = vpow.pop %v2026
    %v2028 = vmul.f32 %v2025, 1.442695
    %v2029 = vpow.pop %v2028
    %v2030 = vadd.f32 %v2027, 1.0
    %v2031 = vadd.f32 %v2029, 1.0
    %v2032 = vrcp.pop %v2030
    %v2033 = vmul.f32 %v2030, %v2032
    %v2034 = vsub.f32 1.0, %v2033
    %v2035 = vmul.f32 %v2032, %v2034
    %v2036 = vadd.f32 %v2032, %v2035
    %vm2037 = vweird.f32 %v2030
    %vm2038 = vweird.f32 %v2032
    %vm2039 = vmor %vm2037, %vm2038
    %v2040 = vsel %vm2039, %v2032, %v2036
    %v2041 = vand.u32 2147483647, %v2030
    %vm2042 = vcmp.eq.f32.partialorder %v2041, 8.507059e+37
    %v2043 = vand.u32 %v2030, 2147483648
    %v2044 = vor.u32 1.1754944e-38, %v2043
    %v2045 = vsel %vm2042, %v2044, %v2040
    %v2046 = vmul.f32 1.0, %v2045
    %v2047 = vrcp.pop %v2031
    %v2048 = vmul.f32 %v2031, %v2047
    %v2049 = vsub.f32 1.0, %v2048
    %v2050 = vmul.f32 %v2047, %v2049
    %v2051 = vadd.f32 %v2047, %v2050
    %vm2052 = vweird.f32 %v2031
    %vm2053 = vweird.f32 %v2047
    %vm2054 = vmor %vm2052, %vm2053
    %v2055 = vsel %vm2054, %v2047, %v2051
    %v2056 = vand.u32 2147483647, %v2031
    %vm2057 = vcmp.eq.f32.partialorder %v2056, 8.507059e+37
    %v2058 = vand.u32 %v2031, 2147483648
    %v2059 = vor.u32 1.1754944e-38, %v2058
    %v2060 = vsel %vm2057, %v2059, %v2055
    %v2061 = vmul.f32 1.0, %v2060
    %v2062 = vld [vmem:[%s8] sm:$0x1]
    %v2064 = vperm.slane %v2062, 0
    %v2066 = vadd.f32 %v2020, %v2064
    %v2067 = vmul.f32 %v2046, %v2066
    %v2068 = vadd.f32 %v1913, %v2067
    %v2069 = vtanh.pop %v2068
    %v2070 = vsub.f32 1.0, %v2061
    %v2071 = vmul.f32 %v2070, %v2069
    %v2072 = vmul.f32 %v2061, 0.0
    %v2073 = vadd.f32 %v2071, %v2072
    %v2074 = vld [vmem:[%s526] sm:$0xff]
    %v2075 = vld [vmem:[%s526 + $0x8] sm:$0xff]
    %v2076 = vld [vmem:[%s526 + $0x10] sm:$0xff]
    %2077 = vmatpush.msra.mxu0 %v1959
    %2078 = vmatpush.msra.mxu0 %v1956
    %2079 = vmatpush.msra.mxu0 %v1953
    %2080 = vmatpush.msra.mxu0 %v1950
    %2081 = vmatpush.msra.mxu0 %v1947
    %2082 = vmatpush.msra.mxu0 %v1944
    %2083 = vmatpush.msra.mxu0 %v1941
    %2084 = vmatpush.msra.mxu0 %v1938
    %2085 = vmatpush.msra.mxu0 %v1935
    %2086 = vmatpush.msra.mxu0 %v1932
    %2087 = vmatpush.msra.mxu0 %v1929
    %2088 = vmatpush.msra.mxu0 %v1926
    %2089 = vmatpush.msra.mxu0 %v1923
    %2090 = vmatpush.msra.mxu0 %v1920
    %2091 = vmatpush.msra.mxu0 %v1917
    %2092 = vmatpush.msra.mxu0 %v1914
    %2093 = vmatmul.f32.gmra.mxu0 %v2073
    %v2094 = vpop.f32.mrf.mxu0
    %v2095 = vadd.f32 0.0, %v2094
    %2096 = vdwg.mxu0
    %2097 = vmatpush.msra.mxu0 %v1960
    %2098 = vmatpush.msra.mxu0 %v1957
    %2099 = vmatpush.msra.mxu0 %v1954
    %2100 = vmatpush.msra.mxu0 %v1951
    %2101 = vmatpush.msra.mxu0 %v1948
    %2102 = vmatpush.msra.mxu0 %v1945
    %2103 = vmatpush.msra.mxu0 %v1942
    %2104 = vmatpush.msra.mxu0 %v1939
    %2105 = vmatpush.msra.mxu0 %v1936
    %2106 = vmatpush.msra.mxu0 %v1933
    %2107 = vmatpush.msra.mxu0 %v1930
    %2108 = vmatpush.msra.mxu0 %v1927
    %2109 = vmatpush.msra.mxu0 %v1924
    %2110 = vmatpush.msra.mxu0 %v1921
    %2111 = vmatpush.msra.mxu0 %v1918
    %2112 = vmatpush.msra.mxu0 %v1915
    %2113 = vmatmul.f32.gmra.mxu0 %v2073
    %v2114 = vpop.f32.mrf.mxu0
    %v2115 = vadd.f32 0.0, %v2114
    %2116 = vdwg.mxu0
    %2117 = vmatpush.msra.mxu0 %v1961
    %2118 = vmatpush.msra.mxu0 %v1958
    %2119 = vmatpush.msra.mxu0 %v1955
    %2120 = vmatpush.msra.mxu0 %v1952
    %2121 = vmatpush.msra.mxu0 %v1949
    %2122 = vmatpush.msra.mxu0 %v1946
    %2123 = vmatpush.msra.mxu0 %v1943
    %2124 = vmatpush.msra.mxu0 %v1940
    %2125 = vmatpush.msra.mxu0 %v1937
    %2126 = vmatpush.msra.mxu0 %v1934
    %2127 = vmatpush.msra.mxu0 %v1931
    %2128 = vmatpush.msra.mxu0 %v1928
    %2129 = vmatpush.msra.mxu0 %v1925
    %2130 = vmatpush.msra.mxu0 %v1922
    %2131 = vmatpush.msra.mxu0 %v1919
    %2132 = vmatpush.msra.mxu0 %v1916
    %2133 = vmatmul.f32.gmra.mxu0 %v2073
    %v2134 = vpop.f32.mrf.mxu0
    %v2135 = vadd.f32 0.0, %v2134
    %2136 = vdwg.mxu0
    %v2137 = vadd.f32 %v2074, %v2095
    %v2138 = vadd.f32 %v2075, %v2115
    %v2139 = vxor.u32 %v2137, 2147483648
    %v2140 = vxor.u32 %v2138, 2147483648
    %v2141 = vmul.f32 %v2139, 1.442695
    %v2142 = vpow.pop %v2141
    %v2143 = vmul.f32 %v2140, 1.442695
    %v2144 = vpow.pop %v2143
    %v2145 = vadd.f32 %v2142, 1.0
    %v2146 = vadd.f32 %v2144, 1.0
    %v2147 = vrcp.pop %v2145
    %v2148 = vmul.f32 %v2145, %v2147
    %v2149 = vsub.f32 1.0, %v2148
    %v2150 = vmul.f32 %v2147, %v2149
    %v2151 = vadd.f32 %v2147, %v2150
    %vm2152 = vweird.f32 %v2145
    %vm2153 = vweird.f32 %v2147
    %vm2154 = vmor %vm2152, %vm2153
    %v2155 = vsel %vm2154, %v2147, %v2151
    %v2156 = vand.u32 2147483647, %v2145
    %vm2157 = vcmp.eq.f32.partialorder %v2156, 8.507059e+37
    %v2158 = vand.u32 %v2145, 2147483648
    %v2159 = vor.u32 1.1754944e-38, %v2158
    %v2160 = vsel %vm2157, %v2159, %v2155
    %v2161 = vmul.f32 1.0, %v2160
    %v2162 = vrcp.pop %v2146
    %v2163 = vmul.f32 %v2146, %v2162
    %v2164 = vsub.f32 1.0, %v2163
    %v2165 = vmul.f32 %v2162, %v2164
    %v2166 = vadd.f32 %v2162, %v2165
    %vm2167 = vweird.f32 %v2146
    %vm2168 = vweird.f32 %v2162
    %vm2169 = vmor %vm2167, %vm2168
    %v2170 = vsel %vm2169, %v2162, %v2166
    %v2171 = vand.u32 2147483647, %v2146
    %vm2172 = vcmp.eq.f32.partialorder %v2171, 8.507059e+37
    %v2173 = vand.u32 %v2146, 2147483648
    %v2174 = vor.u32 1.1754944e-38, %v2173
    %v2175 = vsel %vm2172, %v2174, %v2170
    %v2176 = vmul.f32 1.0, %v2175
    %v2177 = vadd.f32 %v2135, %v2064
    %v2178 = vmul.f32 %v2161, %v2177
    %v2179 = vadd.f32 %v2076, %v2178
    %v2180 = vtanh.pop %v2179
    %v2181 = vsub.f32 1.0, %v2176
    %v2182 = vmul.f32 %v2181, %v2180
    %v2183 = vmul.f32 %v2176, %v2073
    %v2184 = vadd.f32 %v2182, %v2183
    %v2185 = vld [vmem:[%s694] sm:$0xff]
    %v2186 = vld [vmem:[%s694 + $0x8] sm:$0xff]
    %v2187 = vld [vmem:[%s694 + $0x10] sm:$0xff]
    %2188 = vmatpush.msra.mxu0 %v1959
    %2189 = vmatpush.msra.mxu0 %v1956
    %2190 = vmatpush.msra.mxu0 %v1953
    %2191 = vmatpush.msra.mxu0 %v1950
    %2192 = vmatpush.msra.mxu0 %v1947
    %2193 = vmatpush.msra.mxu0 %v1944
    %2194 = vmatpush.msra.mxu0 %v1941
    %2195 = vmatpush.msra.mxu0 %v1938
    %2196 = vmatpush.msra.mxu0 %v1935
    %2197 = vmatpush.msra.mxu0 %v1932
    %2198 = vmatpush.msra.mxu0 %v1929
    %2199 = vmatpush.msra.mxu0 %v1926
    %2200 = vmatpush.msra.mxu0 %v1923
    %2201 = vmatpush.msra.mxu0 %v1920
    %2202 = vmatpush.msra.mxu0 %v1917
    %2203 = vmatpush.msra.mxu0 %v1914
    %2204 = vmatmul.f32.gmra.mxu0 %v2184
    %v2205 = vpop.f32.mrf.mxu0
    %v2206 = vadd.f32 0.0, %v2205
    %2207 = vdwg.mxu0
    %2208 = vmatpush.msra.mxu0 %v1960
    %2209 = vmatpush.msra.mxu0 %v1957
    %2210 = vmatpush.msra.mxu0 %v1954
    %2211 = vmatpush.msra.mxu0 %v1951
    %2212 = vmatpush.msra.mxu0 %v1948
    %2213 = vmatpush.msra.mxu0 %v1945
    %2214 = vmatpush.msra.mxu0 %v1942
    %2215 = vmatpush.msra.mxu0 %v1939
    %2216 = vmatpush.msra.mxu0 %v1936
    %2217 = vmatpush.msra.mxu0 %v1933
    %2218 = vmatpush.msra.mxu0 %v1930
    %2219 = vmatpush.msra.mxu0 %v1927
    %2220 = vmatpush.msra.mxu0 %v1924
    %2221 = vmatpush.msra.mxu0 %v1921
    %2222 = vmatpush.msra.mxu0 %v1918
    %2223 = vmatpush.msra.mxu0 %v1915
    %2224 = vmatmul.f32.gmra.mxu0 %v2184
    %v2225 = vpop.f32.mrf.mxu0
    %v2226 = vadd.f32 0.0, %v2225
    %2227 = vdwg.mxu0
    %2228 = vmatpush.msra.mxu0 %v1961
    %2229 = vmatpush.msra.mxu0 %v1958
    %2230 = vmatpush.msra.mxu0 %v1955
    %2231 = vmatpush.msra.mxu0 %v1952
    %2232 = vmatpush.msra.mxu0 %v1949
    %2233 = vmatpush.msra.mxu0 %v1946
    %2234 = vmatpush.msra.mxu0 %v1943
    %2235 = vmatpush.msra.mxu0 %v1940
    %2236 = vmatpush.msra.mxu0 %v1937
    %2237 = vmatpush.msra.mxu0 %v1934
    %2238 = vmatpush.msra.mxu0 %v1931
    %2239 = vmatpush.msra.mxu0 %v1928
    %2240 = vmatpush.msra.mxu0 %v1925
    %2241 = vmatpush.msra.mxu0 %v1922
    %2242 = vmatpush.msra.mxu0 %v1919
    %2243 = vmatpush.msra.mxu0 %v1916
    %2244 = vmatmul.f32.gmra.mxu0 %v2184
    %v2245 = vpop.f32.mrf.mxu0
    %v2246 = vadd.f32 0.0, %v2245
    %2247 = vdwg.mxu0
    %v2248 = vadd.f32 %v2185, %v2206
    %v2249 = vadd.f32 %v2186, %v2226
    %v2250 = vxor.u32 %v2248, 2147483648
    %v2251 = vxor.u32 %v2249, 2147483648
    %v2252 = vmul.f32 %v2250, 1.442695
    %v2253 = vpow.pop %v2252
    %v2254 = vmul.f32 %v2251, 1.442695
    %v2255 = vpow.pop %v2254
    %v2256 = vadd.f32 %v2253, 1.0
    %v2257 = vadd.f32 %v2255, 1.0
    %v2258 = vrcp.pop %v2256
    %v2259 = vmul.f32 %v2256, %v2258
    %v2260 = vsub.f32 1.0, %v2259
    %v2261 = vmul.f32 %v2258, %v2260
    %v2262 = vadd.f32 %v2258, %v2261
    %vm2263 = vweird.f32 %v2256
    %vm2264 = vweird.f32 %v2258
    %vm2265 = vmor %vm2263, %vm2264
    %v2266 = vsel %vm2265, %v2258, %v2262
    %v2267 = vand.u32 2147483647, %v2256
    %vm2268 = vcmp.eq.f32.partialorder %v2267, 8.507059e+37
    %v2269 = vand.u32 %v2256, 2147483648
    %v2270 = vor.u32 1.1754944e-38, %v2269
    %v2271 = vsel %vm2268, %v2270, %v2266
    %v2272 = vmul.f32 1.0, %v2271
    %v2273 = vrcp.pop %v2257
    %v2274 = vmul.f32 %v2257, %v2273
    %v2275 = vsub.f32 1.0, %v2274
    %v2276 = vmul.f32 %v2273, %v2275
    %v2277 = vadd.f32 %v2273, %v2276
    %vm2278 = vweird.f32 %v2257
    %vm2279 = vweird.f32 %v2273
    %vm2280 = vmor %vm2278, %vm2279
    %v2281 = vsel %vm2280, %v2273, %v2277
    %v2282 = vand.u32 2147483647, %v2257
    %vm2283 = vcmp.eq.f32.partialorder %v2282, 8.507059e+37
    %v2284 = vand.u32 %v2257, 2147483648
    %v2285 = vor.u32 1.1754944e-38, %v2284
    %v2286 = vsel %vm2283, %v2285, %v2281
    %v2287 = vmul.f32 1.0, %v2286
    %v2288 = vadd.f32 %v2246, %v2064
    %v2289 = vmul.f32 %v2272, %v2288
    %v2290 = vadd.f32 %v2187, %v2289
    %v2291 = vtanh.pop %v2290
    %v2292 = vsub.f32 1.0, %v2287
    %v2293 = vmul.f32 %v2292, %v2291
    %v2294 = vmul.f32 %v2287, %v2184
    %v2295 = vadd.f32 %v2293, %v2294
    %v2296 = vld [vmem:[%s862] sm:$0xff]
    %v2297 = vld [vmem:[%s862 + $0x8] sm:$0xff]
    %v2298 = vld [vmem:[%s862 + $0x10] sm:$0xff]
    %2299 = vmatpush.msra.mxu0 %v1959
    %2300 = vmatpush.msra.mxu0 %v1956
    %2301 = vmatpush.msra.mxu0 %v1953
    %2302 = vmatpush.msra.mxu0 %v1950
    %2303 = vmatpush.msra.mxu0 %v1947
    %2304 = vmatpush.msra.mxu0 %v1944
    %2305 = vmatpush.msra.mxu0 %v1941
    %2306 = vmatpush.msra.mxu0 %v1938
    %2307 = vmatpush.msra.mxu0 %v1935
    %2308 = vmatpush.msra.mxu0 %v1932
    %2309 = vmatpush.msra.mxu0 %v1929
    %2310 = vmatpush.msra.mxu0 %v1926
    %2311 = vmatpush.msra.mxu0 %v1923
    %2312 = vmatpush.msra.mxu0 %v1920
    %2313 = vmatpush.msra.mxu0 %v1917
    %2314 = vmatpush.msra.mxu0 %v1914
    %2315 = vmatmul.f32.gmra.mxu0 %v2295
    %v2316 = vpop.f32.mrf.mxu0
    %v2317 = vadd.f32 0.0, %v2316
    %2318 = vdwg.mxu0
    %2319 = vmatpush.msra.mxu0 %v1960
    %2320 = vmatpush.msra.mxu0 %v1957
    %2321 = vmatpush.msra.mxu0 %v1954
    %2322 = vmatpush.msra.mxu0 %v1951
    %2323 = vmatpush.msra.mxu0 %v1948
    %2324 = vmatpush.msra.mxu0 %v1945
    %2325 = vmatpush.msra.mxu0 %v1942
    %2326 = vmatpush.msra.mxu0 %v1939
    %2327 = vmatpush.msra.mxu0 %v1936
    %2328 = vmatpush.msra.mxu0 %v1933
    %2329 = vmatpush.msra.mxu0 %v1930
    %2330 = vmatpush.msra.mxu0 %v1927
    %2331 = vmatpush.msra.mxu0 %v1924
    %2332 = vmatpush.msra.mxu0 %v1921
    %2333 = vmatpush.msra.mxu0 %v1918
    %2334 = vmatpush.msra.mxu0 %v1915
    %2335 = vmatmul.f32.gmra.mxu0 %v2295
    %v2336 = vpop.f32.mrf.mxu0
    %v2337 = vadd.f32 0.0, %v2336
    %2338 = vdwg.mxu0
    %2339 = vmatpush.msra.mxu0 %v1961
    %2340 = vmatpush.msra.mxu0 %v1958
    %2341 = vmatpush.msra.mxu0 %v1955
    %2342 = vmatpush.msra.mxu0 %v1952
    %2343 = vmatpush.msra.mxu0 %v1949
    %2344 = vmatpush.msra.mxu0 %v1946
    %2345 = vmatpush.msra.mxu0 %v1943
    %2346 = vmatpush.msra.mxu0 %v1940
    %2347 = vmatpush.msra.mxu0 %v1937
    %2348 = vmatpush.msra.mxu0 %v1934
    %2349 = vmatpush.msra.mxu0 %v1931
    %2350 = vmatpush.msra.mxu0 %v1928
    %2351 = vmatpush.msra.mxu0 %v1925
    %2352 = vmatpush.msra.mxu0 %v1922
    %2353 = vmatpush.msra.mxu0 %v1919
    %2354 = vmatpush.msra.mxu0 %v1916
    %2355 = vmatmul.f32.gmra.mxu0 %v2295
    %v2356 = vpop.f32.mrf.mxu0
    %v2357 = vadd.f32 0.0, %v2356
    %2358 = vdwg.mxu0
    %v2359 = vadd.f32 %v2296, %v2317
    %v2360 = vadd.f32 %v2297, %v2337
    %v2361 = vxor.u32 %v2359, 2147483648
    %v2362 = vxor.u32 %v2360, 2147483648
    %v2363 = vmul.f32 %v2361, 1.442695
    %v2364 = vpow.pop %v2363
    %v2365 = vmul.f32 %v2362, 1.442695
    %v2366 = vpow.pop %v2365
    %v2367 = vadd.f32 %v2364, 1.0
    %v2368 = vadd.f32 %v2366, 1.0
    %v2369 = vrcp.pop %v2367
    %v2370 = vmul.f32 %v2367, %v2369
    %v2371 = vsub.f32 1.0, %v2370
    %v2372 = vmul.f32 %v2369, %v2371
    %v2373 = vadd.f32 %v2369, %v2372
    %vm2374 = vweird.f32 %v2367
    %vm2375 = vweird.f32 %v2369
    %vm2376 = vmor %vm2374, %vm2375
    %v2377 = vsel %vm2376, %v2369, %v2373
    %v2378 = vand.u32 2147483647, %v2367
    %vm2379 = vcmp.eq.f32.partialorder %v2378, 8.507059e+37
    %v2380 = vand.u32 %v2367, 2147483648
    %v2381 = vor.u32 1.1754944e-38, %v2380
    %v2382 = vsel %vm2379, %v2381, %v2377
    %v2383 = vmul.f32 1.0, %v2382
    %v2384 = vrcp.pop %v2368
    %v2385 = vmul.f32 %v2368, %v2384
    %v2386 = vsub.f32 1.0, %v2385
    %v2387 = vmul.f32 %v2384, %v2386
    %v2388 = vadd.f32 %v2384, %v2387
    %vm2389 = vweird.f32 %v2368
    %vm2390 = vweird.f32 %v2384
    %vm2391 = vmor %vm2389, %vm2390
    %v2392 = vsel %vm2391, %v2384, %v2388
    %v2393 = vand.u32 2147483647, %v2368
    %vm2394 = vcmp.eq.f32.partialorder %v2393, 8.507059e+37
    %v2395 = vand.u32 %v2368, 2147483648
    %v2396 = vor.u32 1.1754944e-38, %v2395
    %v2397 = vsel %vm2394, %v2396, %v2392
    %v2398 = vmul.f32 1.0, %v2397
    %v2399 = vadd.f32 %v2357, %v2064
    %v2400 = vmul.f32 %v2383, %v2399
    %v2401 = vadd.f32 %v2298, %v2400
    %v2402 = vtanh.pop %v2401
    %v2403 = vsub.f32 1.0, %v2398
    %v2404 = vmul.f32 %v2403, %v2402
    %v2405 = vmul.f32 %v2398, %v2295
    %v2406 = vadd.f32 %v2404, %v2405
    %v2407 = vld [vmem:[%s1030] sm:$0xff]
    %v2408 = vld [vmem:[%s1030 + $0x8] sm:$0xff]
    %v2409 = vld [vmem:[%s1030 + $0x10] sm:$0xff]
    %2410 = vmatpush.msra.mxu0 %v1959
    %2411 = vmatpush.msra.mxu0 %v1956
    %2412 = vmatpush.msra.mxu0 %v1953
    %2413 = vmatpush.msra.mxu0 %v1950
    %2414 = vmatpush.msra.mxu0 %v1947
    %2415 = vmatpush.msra.mxu0 %v1944
    %2416 = vmatpush.msra.mxu0 %v1941
    %2417 = vmatpush.msra.mxu0 %v1938
    %2418 = vmatpush.msra.mxu0 %v1935
    %2419 = vmatpush.msra.mxu0 %v1932
    %2420 = vmatpush.msra.mxu0 %v1929
    %2421 = vmatpush.msra.mxu0 %v1926
    %2422 = vmatpush.msra.mxu0 %v1923
    %2423 = vmatpush.msra.mxu0 %v1920
    %2424 = vmatpush.msra.mxu0 %v1917
    %2425 = vmatpush.msra.mxu0 %v1914
    %2426 = vmatmul.f32.gmra.mxu0 %v2406
    %v2427 = vpop.f32.mrf.mxu0
    %v2428 = vadd.f32 0.0, %v2427
    %2429 = vdwg.mxu0
    %2430 = vmatpush.msra.mxu0 %v1960
    %2431 = vmatpush.msra.mxu0 %v1957
    %2432 = vmatpush.msra.mxu0 %v1954
    %2433 = vmatpush.msra.mxu0 %v1951
    %2434 = vmatpush.msra.mxu0 %v1948
    %2435 = vmatpush.msra.mxu0 %v1945
    %2436 = vmatpush.msra.mxu0 %v1942
    %2437 = vmatpush.msra.mxu0 %v1939
    %2438 = vmatpush.msra.mxu0 %v1936
    %2439 = vmatpush.msra.mxu0 %v1933
    %2440 = vmatpush.msra.mxu0 %v1930
    %2441 = vmatpush.msra.mxu0 %v1927
    %2442 = vmatpush.msra.mxu0 %v1924
    %2443 = vmatpush.msra.mxu0 %v1921
    %2444 = vmatpush.msra.mxu0 %v1918
    %2445 = vmatpush.msra.mxu0 %v1915
    %2446 = vmatmul.f32.gmra.mxu0 %v2406
    %v2447 = vpop.f32.mrf.mxu0
    %v2448 = vadd.f32 0.0, %v2447
    %2449 = vdwg.mxu0
    %2450 = vmatpush.msra.mxu0 %v1961
    %2451 = vmatpush.msra.mxu0 %v1958
    %2452 = vmatpush.msra.mxu0 %v1955
    %2453 = vmatpush.msra.mxu0 %v1952
    %2454 = vmatpush.msra.mxu0 %v1949
    %2455 = vmatpush.msra.mxu0 %v1946
    %2456 = vmatpush.msra.mxu0 %v1943
    %2457 = vmatpush.msra.mxu0 %v1940
    %2458 = vmatpush.msra.mxu0 %v1937
    %2459 = vmatpush.msra.mxu0 %v1934
    %2460 = vmatpush.msra.mxu0 %v1931
    %2461 = vmatpush.msra.mxu0 %v1928
    %2462 = vmatpush.msra.mxu0 %v1925
    %2463 = vmatpush.msra.mxu0 %v1922
    %2464 = vmatpush.msra.mxu0 %v1919
    %2465 = vmatpush.msra.mxu0 %v1916
    %2466 = vmatmul.f32.gmra.mxu0 %v2406
    %v2467 = vpop.f32.mrf.mxu0
    %v2468 = vadd.f32 0.0, %v2467
    %2469 = vdwg.mxu0
    %v2470 = vadd.f32 %v2407, %v2428
    %v2471 = vadd.f32 %v2408, %v2448
    %v2472 = vxor.u32 %v2470, 2147483648
    %v2473 = vxor.u32 %v2471, 2147483648
    %v2474 = vmul.f32 %v2472, 1.442695
    %v2475 = vpow.pop %v2474
    %v2476 = vmul.f32 %v2473, 1.442695
    %v2477 = vpow.pop %v2476
    %v2478 = vadd.f32 %v2475, 1.0
    %v2479 = vadd.f32 %v2477, 1.0
    %v2480 = vrcp.pop %v2478
    %v2481 = vmul.f32 %v2478, %v2480
    %v2482 = vsub.f32 1.0, %v2481
    %v2483 = vmul.f32 %v2480, %v2482
    %v2484 = vadd.f32 %v2480, %v2483
    %vm2485 = vweird.f32 %v2478
    %vm2486 = vweird.f32 %v2480
    %vm2487 = vmor %vm2485, %vm2486
    %v2488 = vsel %vm2487, %v2480, %v2484
    %v2489 = vand.u32 2147483647, %v2478
    %vm2490 = vcmp.eq.f32.partialorder %v2489, 8.507059e+37
    %v2491 = vand.u32 %v2478, 2147483648
    %v2492 = vor.u32 1.1754944e-38, %v2491
    %v2493 = vsel %vm2490, %v2492, %v2488
    %v2494 = vmul.f32 1.0, %v2493
    %v2495 = vrcp.pop %v2479
    %v2496 = vmul.f32 %v2479, %v2495
    %v2497 = vsub.f32 1.0, %v2496
    %v2498 = vmul.f32 %v2495, %v2497
    %v2499 = vadd.f32 %v2495, %v2498
    %vm2500 = vweird.f32 %v2479
    %vm2501 = vweird.f32 %v2495
    %vm2502 = vmor %vm2500, %vm2501
    %v2503 = vsel %vm2502, %v2495, %v2499
    %v2504 = vand.u32 2147483647, %v2479
    %vm2505 = vcmp.eq.f32.partialorder %v2504, 8.507059e+37
    %v2506 = vand.u32 %v2479, 2147483648
    %v2507 = vor.u32 1.1754944e-38, %v2506
    %v2508 = vsel %vm2505, %v2507, %v2503
    %v2509 = vmul.f32 1.0, %v2508
    %v2510 = vadd.f32 %v2468, %v2064
    %v2511 = vmul.f32 %v2494, %v2510
    %v2512 = vadd.f32 %v2409, %v2511
    %v2513 = vtanh.pop %v2512
    %v2514 = vsub.f32 1.0, %v2509
    %v2515 = vmul.f32 %v2514, %v2513
    %v2516 = vmul.f32 %v2509, %v2406
    %v2517 = vadd.f32 %v2515, %v2516
    %v2518 = vld [vmem:[%s1198] sm:$0xff]
    %v2519 = vld [vmem:[%s1198 + $0x8] sm:$0xff]
    %v2520 = vld [vmem:[%s1198 + $0x10] sm:$0xff]
    %2521 = vmatpush.msra.mxu0 %v1959
    %2522 = vmatpush.msra.mxu0 %v1956
    %2523 = vmatpush.msra.mxu0 %v1953
    %2524 = vmatpush.msra.mxu0 %v1950
    %2525 = vmatpush.msra.mxu0 %v1947
    %2526 = vmatpush.msra.mxu0 %v1944
    %2527 = vmatpush.msra.mxu0 %v1941
    %2528 = vmatpush.msra.mxu0 %v1938
    %2529 = vmatpush.msra.mxu0 %v1935
    %2530 = vmatpush.msra.mxu0 %v1932
    %2531 = vmatpush.msra.mxu0 %v1929
    %2532 = vmatpush.msra.mxu0 %v1926
    %2533 = vmatpush.msra.mxu0 %v1923
    %2534 = vmatpush.msra.mxu0 %v1920
    %2535 = vmatpush.msra.mxu0 %v1917
    %2536 = vmatpush.msra.mxu0 %v1914
    %2537 = vmatmul.f32.gmra.mxu0 %v2517
    %v2538 = vpop.f32.mrf.mxu0
    %v2539 = vadd.f32 0.0, %v2538
    %2540 = vdwg.mxu0
    %2541 = vmatpush.msra.mxu0 %v1960
    %2542 = vmatpush.msra.mxu0 %v1957
    %2543 = vmatpush.msra.mxu0 %v1954
    %2544 = vmatpush.msra.mxu0 %v1951
    %2545 = vmatpush.msra.mxu0 %v1948
    %2546 = vmatpush.msra.mxu0 %v1945
    %2547 = vmatpush.msra.mxu0 %v1942
    %2548 = vmatpush.msra.mxu0 %v1939
    %2549 = vmatpush.msra.mxu0 %v1936
    %2550 = vmatpush.msra.mxu0 %v1933
    %2551 = vmatpush.msra.mxu0 %v1930
    %2552 = vmatpush.msra.mxu0 %v1927
    %2553 = vmatpush.msra.mxu0 %v1924
    %2554 = vmatpush.msra.mxu0 %v1921
    %2555 = vmatpush.msra.mxu0 %v1918
    %2556 = vmatpush.msra.mxu0 %v1915
    %2557 = vmatmul.f32.gmra.mxu0 %v2517
    %v2558 = vpop.f32.mrf.mxu0
    %v2559 = vadd.f32 0.0, %v2558
    %2560 = vdwg.mxu0
    %2561 = vmatpush.msra.mxu0 %v1961
    %2562 = vmatpush.msra.mxu0 %v1958
    %2563 = vmatpush.msra.mxu0 %v1955
    %2564 = vmatpush.msra.mxu0 %v1952
    %2565 = vmatpush.msra.mxu0 %v1949
    %2566 = vmatpush.msra.mxu0 %v1946
    %2567 = vmatpush.msra.mxu0 %v1943
    %2568 = vmatpush.msra.mxu0 %v1940
    %2569 = vmatpush.msra.mxu0 %v1937
    %2570 = vmatpush.msra.mxu0 %v1934
    %2571 = vmatpush.msra.mxu0 %v1931
    %2572 = vmatpush.msra.mxu0 %v1928
    %2573 = vmatpush.msra.mxu0 %v1925
    %2574 = vmatpush.msra.mxu0 %v1922
    %2575 = vmatpush.msra.mxu0 %v1919
    %2576 = vmatpush.msra.mxu0 %v1916
    %2577 = vmatmul.f32.gmra.mxu0 %v2517
    %v2578 = vpop.f32.mrf.mxu0
    %v2579 = vadd.f32 0.0, %v2578
    %2580 = vdwg.mxu0
    %v2581 = vadd.f32 %v2518, %v2539
    %v2582 = vadd.f32 %v2519, %v2559
    %v2583 = vxor.u32 %v2581, 2147483648
    %v2584 = vxor.u32 %v2582, 2147483648
    %v2585 = vmul.f32 %v2583, 1.442695
    %v2586 = vpow.pop %v2585
    %v2587 = vmul.f32 %v2584, 1.442695
    %v2588 = vpow.pop %v2587
    %v2589 = vadd.f32 %v2586, 1.0
    %v2590 = vadd.f32 %v2588, 1.0
    %v2591 = vrcp.pop %v2589
    %v2592 = vmul.f32 %v2589, %v2591
    %v2593 = vsub.f32 1.0, %v2592
    %v2594 = vmul.f32 %v2591, %v2593
    %v2595 = vadd.f32 %v2591, %v2594
    %vm2596 = vweird.f32 %v2589
    %vm2597 = vweird.f32 %v2591
    %vm2598 = vmor %vm2596, %vm2597
    %v2599 = vsel %vm2598, %v2591, %v2595
    %v2600 = vand.u32 2147483647, %v2589
    %vm2601 = vcmp.eq.f32.partialorder %v2600, 8.507059e+37
    %v2602 = vand.u32 %v2589, 2147483648
    %v2603 = vor.u32 1.1754944e-38, %v2602
    %v2604 = vsel %vm2601, %v2603, %v2599
    %v2605 = vmul.f32 1.0, %v2604
    %v2606 = vrcp.pop %v2590
    %v2607 = vmul.f32 %v2590, %v2606
    %v2608 = vsub.f32 1.0, %v2607
    %v2609 = vmul.f32 %v2606, %v2608
    %v2610 = vadd.f32 %v2606, %v2609
    %vm2611 = vweird.f32 %v2590
    %vm2612 = vweird.f32 %v2606
    %vm2613 = vmor %vm2611, %vm2612
    %v2614 = vsel %vm2613, %v2606, %v2610
    %v2615 = vand.u32 2147483647, %v2590
    %vm2616 = vcmp.eq.f32.partialorder %v2615, 8.507059e+37
    %v2617 = vand.u32 %v2590, 2147483648
    %v2618 = vor.u32 1.1754944e-38, %v2617
    %v2619 = vsel %vm2616, %v2618, %v2614
    %v2620 = vmul.f32 1.0, %v2619
    %v2621 = vadd.f32 %v2579, %v2064
    %v2622 = vmul.f32 %v2605, %v2621
    %v2623 = vadd.f32 %v2520, %v2622
    %v2624 = vtanh.pop %v2623
    %v2625 = vsub.f32 1.0, %v2620
    %v2626 = vmul.f32 %v2625, %v2624
    %v2627 = vmul.f32 %v2620, %v2517
    %v2628 = vadd.f32 %v2626, %v2627
    %v2629 = vld [vmem:[%s1366] sm:$0xff]
    %v2630 = vld [vmem:[%s1366 + $0x8] sm:$0xff]
    %v2631 = vld [vmem:[%s1366 + $0x10] sm:$0xff]
    %2632 = vmatpush.msra.mxu0 %v1959
    %2633 = vmatpush.msra.mxu0 %v1956
    %2634 = vmatpush.msra.mxu0 %v1953
    %2635 = vmatpush.msra.mxu0 %v1950
    %2636 = vmatpush.msra.mxu0 %v1947
    %2637 = vmatpush.msra.mxu0 %v1944
    %2638 = vmatpush.msra.mxu0 %v1941
    %2639 = vmatpush.msra.mxu0 %v1938
    %2640 = vmatpush.msra.mxu0 %v1935
    %2641 = vmatpush.msra.mxu0 %v1932
    %2642 = vmatpush.msra.mxu0 %v1929
    %2643 = vmatpush.msra.mxu0 %v1926
    %2644 = vmatpush.msra.mxu0 %v1923
    %2645 = vmatpush.msra.mxu0 %v1920
    %2646 = vmatpush.msra.mxu0 %v1917
    %2647 = vmatpush.msra.mxu0 %v1914
    %2648 = vmatmul.f32.gmra.mxu0 %v2628
    %v2649 = vpop.f32.mrf.mxu0
    %v2650 = vadd.f32 0.0, %v2649
    %2651 = vdwg.mxu0
    %2652 = vmatpush.msra.mxu0 %v1960
    %2653 = vmatpush.msra.mxu0 %v1957
    %2654 = vmatpush.msra.mxu0 %v1954
    %2655 = vmatpush.msra.mxu0 %v1951
    %2656 = vmatpush.msra.mxu0 %v1948
    %2657 = vmatpush.msra.mxu0 %v1945
    %2658 = vmatpush.msra.mxu0 %v1942
    %2659 = vmatpush.msra.mxu0 %v1939
    %2660 = vmatpush.msra.mxu0 %v1936
    %2661 = vmatpush.msra.mxu0 %v1933
    %2662 = vmatpush.msra.mxu0 %v1930
    %2663 = vmatpush.msra.mxu0 %v1927
    %2664 = vmatpush.msra.mxu0 %v1924
    %2665 = vmatpush.msra.mxu0 %v1921
    %2666 = vmatpush.msra.mxu0 %v1918
    %2667 = vmatpush.msra.mxu0 %v1915
    %2668 = vmatmul.f32.gmra.mxu0 %v2628
    %v2669 = vpop.f32.mrf.mxu0
    %v2670 = vadd.f32 0.0, %v2669
    %2671 = vdwg.mxu0
    %2672 = vmatpush.msra.mxu0 %v1961
    %2673 = vmatpush.msra.mxu0 %v1958
    %2674 = vmatpush.msra.mxu0 %v1955
    %2675 = vmatpush.msra.mxu0 %v1952
    %2676 = vmatpush.msra.mxu0 %v1949
    %2677 = vmatpush.msra.mxu0 %v1946
    %2678 = vmatpush.msra.mxu0 %v1943
    %2679 = vmatpush.msra.mxu0 %v1940
    %2680 = vmatpush.msra.mxu0 %v1937
    %2681 = vmatpush.msra.mxu0 %v1934
    %2682 = vmatpush.msra.mxu0 %v1931
    %2683 = vmatpush.msra.mxu0 %v1928
    %2684 = vmatpush.msra.mxu0 %v1925
    %2685 = vmatpush.msra.mxu0 %v1922
    %2686 = vmatpush.msra.mxu0 %v1919
    %2687 = vmatpush.msra.mxu0 %v1916
    %2688 = vmatmul.f32.gmra.mxu0 %v2628
    %v2689 = vpop.f32.mrf.mxu0
    %v2690 = vadd.f32 0.0, %v2689
    %2691 = vdwg.mxu0
    %v2692 = vadd.f32 %v2629, %v2650
    %v2693 = vadd.f32 %v2630, %v2670
    %v2694 = vxor.u32 %v2692, 2147483648
    %v2695 = vxor.u32 %v2693, 2147483648
    %v2696 = vmul.f32 %v2694, 1.442695
    %v2697 = vpow.pop %v2696
    %v2698 = vmul.f32 %v2695, 1.442695
    %v2699 = vpow.pop %v2698
    %v2700 = vadd.f32 %v2697, 1.0
    %v2701 = vadd.f32 %v2699, 1.0
    %v2702 = vrcp.pop %v2700
    %v2703 = vmul.f32 %v2700, %v2702
    %v2704 = vsub.f32 1.0, %v2703
    %v2705 = vmul.f32 %v2702, %v2704
    %v2706 = vadd.f32 %v2702, %v2705
    %vm2707 = vweird.f32 %v2700
    %vm2708 = vweird.f32 %v2702
    %vm2709 = vmor %vm2707, %vm2708
    %v2710 = vsel %vm2709, %v2702, %v2706
    %v2711 = vand.u32 2147483647, %v2700
    %vm2712 = vcmp.eq.f32.partialorder %v2711, 8.507059e+37
    %v2713 = vand.u32 %v2700, 2147483648
    %v2714 = vor.u32 1.1754944e-38, %v2713
    %v2715 = vsel %vm2712, %v2714, %v2710
    %v2716 = vmul.f32 1.0, %v2715
    %v2717 = vrcp.pop %v2701
    %v2718 = vmul.f32 %v2701, %v2717
    %v2719 = vsub.f32 1.0, %v2718
    %v2720 = vmul.f32 %v2717, %v2719
    %v2721 = vadd.f32 %v2717, %v2720
    %vm2722 = vweird.f32 %v2701
    %vm2723 = vweird.f32 %v2717
    %vm2724 = vmor %vm2722, %vm2723
    %v2725 = vsel %vm2724, %v2717, %v2721
    %v2726 = vand.u32 2147483647, %v2701
    %vm2727 = vcmp.eq.f32.partialorder %v2726, 8.507059e+37
    %v2728 = vand.u32 %v2701, 2147483648
    %v2729 = vor.u32 1.1754944e-38, %v2728
    %v2730 = vsel %vm2727, %v2729, %v2725
    %v2731 = vmul.f32 1.0, %v2730
    %v2732 = vadd.f32 %v2690, %v2064
    %v2733 = vmul.f32 %v2716, %v2732
    %v2734 = vadd.f32 %v2631, %v2733
    %v2735 = vtanh.pop %v2734
    %v2736 = vsub.f32 1.0, %v2731
    %v2737 = vmul.f32 %v2736, %v2735
    %v2738 = vmul.f32 %v2731, %v2628
    %v2739 = vadd.f32 %v2737, %v2738
    %v2740 = vld [vmem:[%s1534] sm:$0xff]
    %v2741 = vld [vmem:[%s1534 + $0x8] sm:$0xff]
    %v2742 = vld [vmem:[%s1534 + $0x10] sm:$0xff]
    %2743 = vmatpush.msra.mxu0 %v1959
    %2744 = vmatpush.msra.mxu0 %v1956
    %2745 = vmatpush.msra.mxu0 %v1953
    %2746 = vmatpush.msra.mxu0 %v1950
    %2747 = vmatpush.msra.mxu0 %v1947
    %2748 = vmatpush.msra.mxu0 %v1944
    %2749 = vmatpush.msra.mxu0 %v1941
    %2750 = vmatpush.msra.mxu0 %v1938
    %2751 = vmatpush.msra.mxu0 %v1935
    %2752 = vmatpush.msra.mxu0 %v1932
    %2753 = vmatpush.msra.mxu0 %v1929
    %2754 = vmatpush.msra.mxu0 %v1926
    %2755 = vmatpush.msra.mxu0 %v1923
    %2756 = vmatpush.msra.mxu0 %v1920
    %2757 = vmatpush.msra.mxu0 %v1917
    %2758 = vmatpush.msra.mxu0 %v1914
    %2759 = vmatmul.f32.gmra.mxu0 %v2739
    %v2760 = vpop.f32.mrf.mxu0
    %v2761 = vadd.f32 0.0, %v2760
    %2762 = vdwg.mxu0
    %2763 = vmatpush.msra.mxu0 %v1960
    %2764 = vmatpush.msra.mxu0 %v1957
    %2765 = vmatpush.msra.mxu0 %v1954
    %2766 = vmatpush.msra.mxu0 %v1951
    %2767 = vmatpush.msra.mxu0 %v1948
    %2768 = vmatpush.msra.mxu0 %v1945
    %2769 = vmatpush.msra.mxu0 %v1942
    %2770 = vmatpush.msra.mxu0 %v1939
    %2771 = vmatpush.msra.mxu0 %v1936
    %2772 = vmatpush.msra.mxu0 %v1933
    %2773 = vmatpush.msra.mxu0 %v1930
    %2774 = vmatpush.msra.mxu0 %v1927
    %2775 = vmatpush.msra.mxu0 %v1924
    %2776 = vmatpush.msra.mxu0 %v1921
    %2777 = vmatpush.msra.mxu0 %v1918
    %2778 = vmatpush.msra.mxu0 %v1915
    %2779 = vmatmul.f32.gmra.mxu0 %v2739
    %v2780 = vpop.f32.mrf.mxu0
    %v2781 = vadd.f32 0.0, %v2780
    %2782 = vdwg.mxu0
    %2783 = vmatpush.msra.mxu0 %v1961
    %2784 = vmatpush.msra.mxu0 %v1958
    %2785 = vmatpush.msra.mxu0 %v1955
    %2786 = vmatpush.msra.mxu0 %v1952
    %2787 = vmatpush.msra.mxu0 %v1949
    %2788 = vmatpush.msra.mxu0 %v1946
    %2789 = vmatpush.msra.mxu0 %v1943
    %2790 = vmatpush.msra.mxu0 %v1940
    %2791 = vmatpush.msra.mxu0 %v1937
    %2792 = vmatpush.msra.mxu0 %v1934
    %2793 = vmatpush.msra.mxu0 %v1931
    %2794 = vmatpush.msra.mxu0 %v1928
    %2795 = vmatpush.msra.mxu0 %v1925
    %2796 = vmatpush.msra.mxu0 %v1922
    %2797 = vmatpush.msra.mxu0 %v1919
    %2798 = vmatpush.msra.mxu0 %v1916
    %2799 = vmatmul.f32.gmra.mxu0 %v2739
    %v2800 = vpop.f32.mrf.mxu0
    %v2801 = vadd.f32 0.0, %v2800
    %2802 = vdwg.mxu0
    %v2803 = vadd.f32 %v2740, %v2761
    %v2804 = vadd.f32 %v2741, %v2781
    %v2805 = vxor.u32 %v2803, 2147483648
    %v2806 = vxor.u32 %v2804, 2147483648
    %v2807 = vmul.f32 %v2805, 1.442695
    %v2808 = vpow.pop %v2807
    %v2809 = vmul.f32 %v2806, 1.442695
    %v2810 = vpow.pop %v2809
    %v2811 = vadd.f32 %v2808, 1.0
    %v2812 = vadd.f32 %v2810, 1.0
    %v2813 = vrcp.pop %v2811
    %v2814 = vmul.f32 %v2811, %v2813
    %v2815 = vsub.f32 1.0, %v2814
    %v2816 = vmul.f32 %v2813, %v2815
    %v2817 = vadd.f32 %v2813, %v2816
    %vm2818 = vweird.f32 %v2811
    %vm2819 = vweird.f32 %v2813
    %vm2820 = vmor %vm2818, %vm2819
    %v2821 = vsel %vm2820, %v2813, %v2817
    %v2822 = vand.u32 2147483647, %v2811
    %vm2823 = vcmp.eq.f32.partialorder %v2822, 8.507059e+37
    %v2824 = vand.u32 %v2811, 2147483648
    %v2825 = vor.u32 1.1754944e-38, %v2824
    %v2826 = vsel %vm2823, %v2825, %v2821
    %v2827 = vmul.f32 1.0, %v2826
    %v2828 = vrcp.pop %v2812
    %v2829 = vmul.f32 %v2812, %v2828
    %v2830 = vsub.f32 1.0, %v2829
    %v2831 = vmul.f32 %v2828, %v2830
    %v2832 = vadd.f32 %v2828, %v2831
    %vm2833 = vweird.f32 %v2812
    %vm2834 = vweird.f32 %v2828
    %vm2835 = vmor %vm2833, %vm2834
    %v2836 = vsel %vm2835, %v2828, %v2832
    %v2837 = vand.u32 2147483647, %v2812
    %vm2838 = vcmp.eq.f32.partialorder %v2837, 8.507059e+37
    %v2839 = vand.u32 %v2812, 2147483648
    %v2840 = vor.u32 1.1754944e-38, %v2839
    %v2841 = vsel %vm2838, %v2840, %v2836
    %v2842 = vmul.f32 1.0, %v2841
    %v2843 = vadd.f32 %v2801, %v2064
    %v2844 = vmul.f32 %v2827, %v2843
    %v2845 = vadd.f32 %v2742, %v2844
    %v2846 = vtanh.pop %v2845
    %v2847 = vsub.f32 1.0, %v2842
    %v2848 = vmul.f32 %v2847, %v2846
    %v2849 = vmul.f32 %v2842, %v2739
    %v2850 = vadd.f32 %v2848, %v2849
    %v2851 = vld [vmem:[#allocation15] sm:$0xff]
    %v2852 = vld [vmem:[#allocation15 + $0x8] sm:$0xff]
    %v2853 = vld [vmem:[#allocation15 + $0x10] sm:$0xff]
    %v2854 = vld [vmem:[#allocation15 + $0x18] sm:$0xff]
    %v2855 = vld [vmem:[#allocation15 + $0x20] sm:$0xff]
    %v2856 = vld [vmem:[#allocation15 + $0x28] sm:$0xff]
    %v2857 = vld [vmem:[#allocation15 + $0x30] sm:$0xff]
    %v2858 = vld [vmem:[#allocation15 + $0x38] sm:$0xff]
    %v2859 = vld [vmem:[#allocation15 + $0x40] sm:$0xff]
    %v2860 = vld [vmem:[#allocation15 + $0x48] sm:$0xff]
    %v2861 = vld [vmem:[#allocation15 + $0x50] sm:$0xff]
    %v2862 = vld [vmem:[#allocation15 + $0x58] sm:$0xff]
    %v2863 = vld [vmem:[#allocation15 + $0x60] sm:$0xff]
    %v2864 = vld [vmem:[#allocation15 + $0x68] sm:$0xff]
    %v2865 = vld [vmem:[#allocation15 + $0x70] sm:$0xff]
    %v2866 = vld [vmem:[#allocation15 + $0x78] sm:$0xff]
    %v2867 = vld [vmem:[%s10] sm:$0x1]
    %v2869 = vperm.slane %v2867, 0
    %2871 = vmatpush.msra.mxu0 %v2866
    %2872 = vmatpush.msra.mxu0 %v2865
    %2873 = vmatpush.msra.mxu0 %v2864
    %2874 = vmatpush.msra.mxu0 %v2863
    %2875 = vmatpush.msra.mxu0 %v2862
    %2876 = vmatpush.msra.mxu0 %v2861
    %2877 = vmatpush.msra.mxu0 %v2860
    %2878 = vmatpush.msra.mxu0 %v2859
    %2879 = vmatpush.msra.mxu0 %v2858
    %2880 = vmatpush.msra.mxu0 %v2857
    %2881 = vmatpush.msra.mxu0 %v2856
    %2882 = vmatpush.msra.mxu0 %v2855
    %2883 = vmatpush.msra.mxu0 %v2854
    %2884 = vmatpush.msra.mxu0 %v2853
    %2885 = vmatpush.msra.mxu0 %v2852
    %2886 = vmatpush.msra.mxu0 %v2851
    %2887 = vmatmul.f32.gmra.mxu0 %v2850
    %v2888 = vpop.f32.mrf.mxu0
    %v2889 = vadd.f32 %v2869, %v2888
    %2890 = vdwg.mxu0
    %v2891 = vmax.f32 %v2889, 0.0
    %2892 = vst [vmem:[#allocation16] sm:$0xff] %v2891
    // Predicated region
    $region74: #{tpu_custom_call.1} parent=1 // pred_check
      _
    $region75: #{tpu_custom_call.1} parent=1 // pred_check_branch
      %2894 = sbr.rel (0) target = $region77
    $region76: #{tpu_custom_call.1} parent=1 // pred_region
      %2896 = vsyncadd [#allocation6], 0
      %s2898 = sshll.u32 [#allocation16], 4
      %s2899 = int_to_ptr.vmem [resolvable:$true] %s2898
      %s2900 = sshll.u32 %s11, 4
      %s2901 = int_to_ptr.hbm [resolvable:$true] %s2900
      %2903 = dma.vmem_to_hbm [thread:$0]  %s2899, 128, %s2901, [#allocation6]
    $region77: #{tpu_custom_call.1} parent=1 // pred_fallthru
      _
    // Predicated region
    $region78: #{tpu_custom_call.1} parent=1 // pred_check
      _
    $region79: #{tpu_custom_call.1} parent=1 // pred_check_branch
      %2905 = sbr.rel (0) target = $region81
    $region80: #{tpu_custom_call.1} parent=1 // pred_region
      %2907 = dma.done [#allocation6], 128
    $region81: #{tpu_custom_call.1} parent=1 // pred_fallthru
      _
    %2908 = vsyncpa [#allocation5], 1
    %2909 = vsyncpa [#allocation8], 1
    %2910 = vsyncpa [#allocation11], 1
    %2911 = vsyncpa [#allocation14], 1
    %2912 = vsyncpa [#allocation6], 1

</llo_original>
